<compile_context>
chip_gen: v5e
topology: v5e:2x2
jax: 0.10.0
libtpu: 0.0.40
codegen_flags: <defaults>
</compile_context>

<pallas_src>
import functools
import math

import jax
import jax.numpy as jnp
from jax import lax
from jax.experimental import pallas as pl
from jax.experimental.pallas import tpu as pltpu

LANE = 128


def _round_up(x, m):
    return (x + m - 1) // m * m


# -----------------------------------------------------------------------------
# Static configuration (row-stride / padding bookkeeping for the flat conv layout)
# -----------------------------------------------------------------------------
class CriticConfig:
    def __init__(self, obs_shape, action_dim, hidden_dim, feature_dim,
                 num_layers, num_filters):
        C, H, W = obs_shape
        assert H % 2 == 0 and W % 2 == 0, "even spatial dims expected"
        self.c_in = C
        self.num_layers = num_layers
        self.num_filters = num_filters
        self.feature_dim = feature_dim
        self.hidden_dim = hidden_dim
        self.action_dim = action_dim
        self.hh, self.ws = H // 2, W // 2           # phase-plane height / row stride
        self.c_pad = _round_up(num_filters, LANE)   # lane-dense conv output channels

        # real conv output sizes (k=3; stride 2 for layer 1, stride 1 afterwards)
        oh = [(H - 3) // 2 + 1]
        ow = [(W - 3) // 2 + 1]
        for _ in range(1, num_layers):
            oh.append(oh[-1] - 2)
            ow.append(ow[-1] - 2)
        self.oh, self.ow = oh, ow

        # flat rows each layer writes (row stride = ws); sized so that every valid
        # output is covered AND the next layer's shifted reads stay in-bounds.
        out_rows = [0] * num_layers
        out_rows[-1] = _round_up(oh[-1] * self.ws, 8)
        for k in range(num_layers - 2, -1, -1):
            need = max(oh[k] * self.ws, 2 * self.ws + 2 + out_rows[k + 1])
            out_rows[k] = _round_up(need, 8)
        self.out_rows = out_rows
        self.in_rows_phase = _round_up(
            max(self.hh * self.ws, self.ws + 1 + out_rows[0]), 8)

        # static shift lists for the shifted-matmul accumulation
        shifts = [tuple(dy * self.ws + dx for dy in range(2) for dx in range(2))]
        for _ in range(1, num_layers):
            shifts.append(tuple(kh * self.ws + kw for kh in range(3) for kw in range(3)))
        self.shifts = shifts

        self.flat_dim = num_filters * oh[-1] * ow[-1]   # torch flatten size
        self.flat_pad = self.c_pad * oh[-1] * ow[-1]    # kernel-side flatten size


# -----------------------------------------------------------------------------
# Pallas kernels
# -----------------------------------------------------------------------------
def _conv_kernel(x_ref, w_ref, b_ref, o_ref, *, shifts, out_rows):
    """One conv layer for one image: sum of shifted flat matmuls + bias + ReLU.

    x_ref: (in_rows, Cin)  channels-last, flat spatial rows (row stride = ws)
    w_ref: (T, Cin, Cout)  packed per-shift weights (Cout zero-padded to 128 lanes)
    b_ref: (1, Cout)
    o_ref: (out_rows, Cout)
    """
    cout = o_ref.shape[-1]
    acc = jnp.zeros((out_rows, cout), jnp.float32)
    for t, d in enumerate(shifts):                      # unrolled: 4 or 9 taps
        acc = acc + jnp.dot(x_ref[pl.ds(d, out_rows), :], w_ref[t],
                            preferred_element_type=jnp.float32)
    o_ref[...] = jnp.maximum(acc + b_ref[...], 0.0)


def conv_layer(x, w, b, *, shifts, out_rows):
    B, in_rows, cin = x.shape
    T, _, cout = w.shape
    flops = 2 * B * out_rows * cin * cout * T
    bytes_accessed = 4 * (B * (in_rows * cin + out_rows * cout)
                          + int(w.size) + int(b.size))
    return pl.pallas_call(
        functools.partial(_conv_kernel, shifts=shifts, out_rows=out_rows),
        out_shape=jax.ShapeDtypeStruct((B, out_rows, cout), jnp.float32),
        grid=(B,),
        in_specs=[
            pl.BlockSpec((None, in_rows, cin), lambda bi: (bi, 0, 0)),
            pl.BlockSpec((T, cin, cout), lambda bi: (0, 0, 0)),
            pl.BlockSpec((1, cout), lambda bi: (0, 0)),
        ],
        out_specs=pl.BlockSpec((None, out_rows, cout), lambda bi: (bi, 0, 0)),
        compiler_params=pltpu.CompilerParams(dimension_semantics=("parallel",)),
        cost_estimate=pl.CostEstimate(flops=flops, transcendentals=0,
                                      bytes_accessed=bytes_accessed),
    )(x, w, b)


def _head_kernel(h_ref, a_ref, fcw_ref, fcb_ref, g_ref, be_ref,
                 w1h_ref, w1a_ref, b1_ref, w2_ref, b2_ref, w3_ref, b3_ref,
                 o_ref):
    """Fused encoder fc + LayerNorm + both Q heads (packed wide matmuls)."""
    h = jnp.dot(h_ref[...], fcw_ref[...],
                preferred_element_type=jnp.float32) + fcb_ref[...]
    mean = jnp.mean(h, axis=-1, keepdims=True)
    var = jnp.mean(jnp.square(h - mean), axis=-1, keepdims=True)
    h = (h - mean) * lax.rsqrt(var + 1e-5) * g_ref[...] + be_ref[...]
    # concat([h, action]) @ W1.T  ==  h @ W1h + action @ W1a   (both heads packed)
    z1 = jnp.maximum(
        jnp.dot(h, w1h_ref[...], preferred_element_type=jnp.float32)
        + jnp.dot(a_ref[...], w1a_ref[...], preferred_element_type=jnp.float32)
        + b1_ref[...], 0.0)
    z2 = jnp.maximum(
        jnp.dot(z1, w2_ref[...], preferred_element_type=jnp.float32) + b2_ref[...],
        0.0)
    o_ref[...] = jnp.dot(z2, w3_ref[...],
                         preferred_element_type=jnp.float32) + b3_ref[...]


def head_call(h, action, hp):
    B, D = h.shape
    A = action.shape[1]
    bm = B if B <= 256 else 256
    grid = (pl.cdiv(B, bm),)

    weights = (hp["fc_w"], hp["fc_b"], hp["ln_g"], hp["ln_b"],
               hp["w1h"], hp["w1a"], hp["b1"], hp["w2"], hp["b2"],
               hp["w3"], hp["b3"])

    def row_spec(n):
        return pl.BlockSpec((bm, n), lambda i: (i, 0))

    def full_spec(a):
        return pl.BlockSpec(a.shape, lambda i, _nd=a.ndim: (0,) * _nd)

    feat = hp["fc_w"].shape[1]
    h2 = hp["w2"].shape[0]
    flops = 2 * B * (D * feat + (feat + A) * h2 + h2 * h2 + h2 * LANE)
    bytes_accessed = 4 * (B * (D + A + LANE) + sum(int(w.size) for w in weights))
    return pl.pallas_call(
        _head_kernel,
        out_shape=jax.ShapeDtypeStruct((B, LANE), jnp.float32),
        grid=grid,
        in_specs=[row_spec(D), row_spec(A)] + [full_spec(w) for w in weights],
        out_specs=row_spec(LANE),
        compiler_params=pltpu.CompilerParams(dimension_semantics=("parallel",)),
        cost_estimate=pl.CostEstimate(flops=flops, transcendentals=B,
                                      bytes_accessed=bytes_accessed),
    )(h, action, *weights)


# -----------------------------------------------------------------------------
# Forward pass (jitted; wrapper does only cheap data-movement glue)
# -----------------------------------------------------------------------------
def make_critic_forward(cfg):
    oh_l, ow_l = cfg.oh[-1], cfg.ow[-1]

    @jax.jit
    def forward(packed, obs, action):
        B = obs.shape[0]
        # Space-to-depth (one pass over obs, no arithmetic; /255. is folded into
        # the layer-1 weights): channel index = (py*2+px)*C + c.
        x = obs.astype(jnp.float32)
        x = x.reshape(B, cfg.c_in, cfg.hh, 2, cfg.ws, 2)
        x = x.transpose(0, 2, 4, 3, 5, 1).reshape(B, cfg.hh * cfg.ws, 4 * cfg.c_in)
        x = jnp.pad(x, ((0, 0), (0, cfg.in_rows_phase - cfg.hh * cfg.ws), (0, 0)))

        for li in range(cfg.num_layers):
            x = conv_layer(x, packed["conv_w"][li], packed["conv_b"][li],
                           shifts=cfg.shifts[li], out_rows=cfg.out_rows[li])

        # Crop garbage rows/columns and flatten; the NCHW flatten permutation and
        # the channel zero-padding are folded into packed["fc_w"] at init time.
        h = x[:, :oh_l * cfg.ws, :].reshape(B, oh_l, cfg.ws, cfg.c_pad)
        h = h[:, :, :ow_l, :].reshape(B, oh_l * ow_l * cfg.c_pad)

        q = head_call(h, action, packed)           # (B, 128): col 0 = q1, col 1 = q2
        return q[:, 0:1], q[:, 1:2]

    return forward


# -----------------------------------------------------------------------------
# Parameters: torch-layout init (mirrors weight_init) + one-time packing
# -----------------------------------------------------------------------------
def _orthogonal(key, rows, cols, gain=1.0):
    a = jax.random.normal(key, (rows, cols) if rows >= cols else (cols, rows),
                          jnp.float32)
    q, r = jnp.linalg.qr(a)
    q = q * jnp.sign(jnp.diagonal(r))
    if rows < cols:
        q = q.T
    return gain * q


def init_raw_params(key, cfg, dense_taps=False):
    """Torch-layout parameters. dense_taps=True fills all 3x3 taps (self-test only)."""
    keys = iter(jax.random.split(key, 4 * cfg.num_layers + 16))
    gain_relu = math.sqrt(2.0)
    convs = []
    in_c = cfg.c_in
    for _ in range(cfg.num_layers):
        out_c = cfg.num_filters
        if dense_taps:
            w = 0.3 * jax.random.normal(next(keys), (out_c, in_c, 3, 3), jnp.float32)
        else:  # weight_init: zeros except orthogonal center tap (relu gain)
            w = jnp.zeros((out_c, in_c, 3, 3), jnp.float32)
            w = w.at[:, :, 1, 1].set(_orthogonal(next(keys), out_c, in_c, gain_relu))
        convs.append((w, jnp.zeros((out_c,), jnp.float32)))
        in_c = out_c

    fc_w = _orthogonal(next(keys), cfg.feature_dim, cfg.flat_dim)   # torch (feat, flat)
    fc_b = jnp.zeros((cfg.feature_dim,), jnp.float32)
    ln_g = jnp.ones((cfg.feature_dim,), jnp.float32)
    ln_b = jnp.zeros((cfg.feature_dim,), jnp.float32)

    def qfn():
        return dict(
            w1=_orthogonal(next(keys), cfg.hidden_dim, cfg.feature_dim + cfg.action_dim),
            b1=jnp.zeros((cfg.hidden_dim,), jnp.float32),
            w2=_orthogonal(next(keys), cfg.hidden_dim, cfg.hidden_dim),
            b2=jnp.zeros((cfg.hidden_dim,), jnp.float32),
            w3=_orthogonal(next(keys), 1, cfg.hidden_dim),
            b3=jnp.zeros((1,), jnp.float32))

    return dict(convs=convs, fc_w=fc_w, fc_b=fc_b, ln_g=ln_g, ln_b=ln_b,
                q1=qfn(), q2=qfn())


def pack_params(raw, cfg):
    ws, c_pad = cfg.ws, cfg.c_pad
    conv_w, conv_b = [], []

    # Layer 1: stride-2 conv over the 4 space-to-depth phases (4 shifted matmuls),
    # with the /255. preprocessing folded into the weights.
    w0, b0 = raw["convs"][0]
    o, c = w0.shape[0], w0.shape[1]
    mats = []
    for dy in range(2):
        for dx in range(2):
            m = jnp.zeros((4 * c, c_pad), jnp.float32)
            for kh in range(3):
                for kw in range(3):
                    if kh // 2 == dy and kw // 2 == dx:
                        p = (kh % 2) * 2 + (kw % 2)
                        m = m.at[p * c:(p + 1) * c, :o].set(w0[:, :, kh, kw].T / 255.0)
            mats.append(m)
    conv_w.append(jnp.stack(mats, 0))
    conv_b.append(jnp.zeros((1, c_pad), jnp.float32).at[0, :o].set(b0))

    # Layers >= 2: stride-1, 9 shifted taps on the flat (row stride = ws) layout.
    for li in range(1, cfg.num_layers):
        w, b = raw["convs"][li]
        o, c = w.shape[0], w.shape[1]
        mats = []
        for kh in range(3):
            for kw in range(3):
                m = jnp.zeros((c_pad, c_pad), jnp.float32)
                m = m.at[:c, :o].set(w[:, :, kh, kw].T)
                mats.append(m)
        conv_w.append(jnp.stack(mats, 0))
        conv_b.append(jnp.zeros((1, c_pad), jnp.float32).at[0, :o].set(b))

    # Encoder fc: fold NCHW flatten permutation + channel padding into the rows.
    feat, hid = cfg.feature_dim, cfg.hidden_dim
    hw = cfg.oh[-1] * cfg.ow[-1]
    fc_w = raw["fc_w"].T.reshape(cfg.num_filters, hw, feat)     # (C, OH*OW, feat)
    fc_w = jnp.transpose(fc_w, (1, 0, 2))                       # (OH*OW, C, feat)
    fc_w = jnp.pad(fc_w, ((0, 0), (0, c_pad - cfg.num_filters), (0, 0)))
    fc_w = fc_w.reshape(hw * c_pad, feat)

    # Both Q heads packed into wide matrices (N = 2*hidden, final N = 128 lanes).
    q1, q2 = raw["q1"], raw["q2"]
    w1_1, w1_2 = q1["w1"].T, q2["w1"].T                         # (feat+A, hid)
    w1h = jnp.concatenate([w1_1[:feat], w1_2[:feat]], axis=1)   # (feat, 2*hid)
    w1a = jnp.concatenate([w1_1[feat:], w1_2[feat:]], axis=1)   # (A, 2*hid)
    b1 = jnp.concatenate([q1["b1"], q2["b1"]])[None, :]
    w2 = jnp.zeros((2 * hid, 2 * hid), jnp.float32)
    w2 = w2.at[:hid, :hid].set(q1["w2"].T).at[hid:, hid:].set(q2["w2"].T)
    b2 = jnp.concatenate([q1["b2"], q2["b2"]])[None, :]
    w3 = jnp.zeros((2 * hid, LANE), jnp.float32)
    w3 = w3.at[:hid, 0].set(q1["w3"][0]).at[hid:, 1].set(q2["w3"][0])
    b3 = jnp.zeros((1, LANE), jnp.float32)
    b3 = b3.at[0, 0].set(q1["b3"][0]).at[0, 1].set(q2["b3"][0])

    return dict(conv_w=conv_w, conv_b=conv_b,
                fc_w=fc_w, fc_b=raw["fc_b"][None, :],
                ln_g=raw["ln_g"][None, :], ln_b=raw["ln_b"][None, :],
                w1h=w1h, w1a=w1a, b1=b1, w2=w2, b2=b2, w3=w3, b3=b3)


# -----------------------------------------------------------------------------
# Pure-JAX reference (torch semantics) for the self-check
# -----------------------------------------------------------------------------
def reference_forward(raw, obs, action, num_layers):
    hp = lax.Precision.HIGHEST
    x = obs.astype(jnp.float32) / 255.0
    for li in range(num_layers):
        w, b = raw["convs"][li]
        s = 2 if li == 0 else 1
        x = lax.conv_general_dilated(x, w, (s, s), "VALID",
                                     dimension_numbers=("NCHW", "OIHW", "NCHW"),
                                     precision=hp)
        x = jnp.maximum(x + b[None, :, None, None], 0.0)
    h = jnp.dot(x.reshape(x.shape[0], -1), raw["fc_w"].T, precision=hp) + raw["fc_b"]
    mean = jnp.mean(h, -1, keepdims=True)
    var = jnp.mean(jnp.square(h - mean), -1, keepdims=True)
    h = (h - mean) * lax.rsqrt(var + 1e-5) * raw["ln_g"] + raw["ln_b"]

    def q(qp):
        z = jnp.concatenate([h, action], axis=1)
        z1 = jnp.maximum(jnp.dot(z, qp["w1"].T, precision=hp) + qp["b1"], 0.0)
        z2 = jnp.maximum(jnp.dot(z1, qp["w2"].T, precision=hp) + qp["b2"], 0.0)
        return jnp.dot(z2, qp["w3"].T, precision=hp) + qp["b3"]

    return q(raw["q1"]), q(raw["q2"])


# -----------------------------------------------------------------------------
if __name__ == "__main__":
    batch = 2
    obs_shape = (4, 16, 16)          # (C, H, W), NCHW pixel obs
    action_shape = (6,)
    hidden_dim = 32
    encoder_feature_dim = 32
    num_layers = 2
    num_filters = 8

    cfg = CriticConfig(obs_shape, action_shape[0], hidden_dim,
                       encoder_feature_dim, num_layers, num_filters)
    forward = make_critic_forward(cfg)

    root = jax.random.PRNGKey(0)
    k_param, k_dense, k_obs, k_act = jax.random.split(root, 4)

    obs = jax.random.uniform(k_obs, (batch,) + obs_shape, jnp.float32, 0.0, 255.0)
    action = jax.random.uniform(k_act, (batch, action_shape[0]), jnp.float32, -1.0, 1.0)

    # Self-check vs. a pure-JAX reference using dense (all-tap) random conv weights so
    # every shifted-matmul path, the head packing and the flatten permutation are hit.
    raw_dense = init_raw_params(k_dense, cfg, dense_taps=True)
    q1_k, q2_k = forward(pack_params(raw_dense, cfg), obs, action)
    q1_r, q2_r = reference_forward(raw_dense, obs, action, num_layers)
    assert bool(jnp.allclose(q1_k, q1_r, atol=5e-2, rtol=5e-2))
    assert bool(jnp.allclose(q2_k, q2_r, atol=5e-2, rtol=5e-2))

    # The Critic itself: weight_init-faithful parameters.
    raw = init_raw_params(k_param, cfg, dense_taps=False)
    params = pack_params(raw, cfg)
    q1, q2 = forward(params, obs, action)
    jax.block_until_ready((q1, q2))

    assert q1.shape == (batch, 1) and q2.shape == (batch, 1)
    assert q1.dtype == jnp.float32 and q2.dtype == jnp.float32
    assert bool(jnp.all(jnp.isfinite(q1))) and bool(jnp.all(jnp.isfinite(q2)))
    print("KERNEL_OK")
</pallas_src>

<mosaic_0001>
module attributes {stable_mosaic.version = 11 : i64} {
  func.func @_conv_kernel(%arg0: i32, %arg1: memref<1x80x16xf32, #tpu.memory_space<vmem>>, %arg2: memref<4x16x128xf32, #tpu.memory_space<vmem>>, %arg3: memref<1x128xf32, #tpu.memory_space<vmem>>, %arg4: memref<1x64x128xf32, #tpu.memory_space<vmem>>) attributes {dimension_semantics = [#tpu.dimension_semantics<parallel>], iteration_bounds = array<i64: 2>, scalar_prefetch = 0 : i64, scratch_operands = 0 : i64, tpu.core_type = #tpu.core_type<tc>, window_params = [{transform_indices = @transform_0, window_bounds = array<i64: 1, 80, 16>}, {pipeline_mode = #tpu.pipeline_mode<synchronous>, transform_indices = @transform_1, window_bounds = array<i64: 4, 16, 128>}, {pipeline_mode = #tpu.pipeline_mode<synchronous>, transform_indices = @transform_2, window_bounds = array<i64: 1, 128>}, {transform_indices = @transform_3, window_bounds = array<i64: 1, 64, 128>}]} {
    %cst = arith.constant 0.000000e+00 : f32
    %0 = vector.broadcast %cst : f32 to vector<64x128xf32>
    %c0 = arith.constant 0 : index
    %c0_0 = arith.constant 0 : index
    %c0_1 = arith.constant 0 : index
    %1 = vector.load %arg1[%c0, %c0_0, %c0_1] : memref<1x80x16xf32, #tpu.memory_space<vmem>>, vector<1x64x16xf32>
    %2 = vector.shape_cast %1 : vector<1x64x16xf32> to vector<64x16xf32>
    %c0_2 = arith.constant 0 : index
    %c0_3 = arith.constant 0 : index
    %c0_4 = arith.constant 0 : index
    %3 = vector.load %arg2[%c0_2, %c0_3, %c0_4] : memref<4x16x128xf32, #tpu.memory_space<vmem>>, vector<1x16x128xf32>
    %4 = vector.shape_cast %3 : vector<1x16x128xf32> to vector<16x128xf32>
    %cst_5 = arith.constant dense<0.000000e+00> : vector<64x128xf32>
    %5 = tpu.matmul %2, %4, %cst_5 {dimension_numbers = #tpu.dot_dimension_numbers<[1], [0], [0], [1], [0, 0, 1, 1], [], []>} : vector<64x16xf32>, vector<16x128xf32>, vector<64x128xf32> -> vector<64x128xf32>
    %6 = arith.addf %0, %5 : vector<64x128xf32>
    %c0_6 = arith.constant 0 : index
    %c1 = arith.constant 1 : index
    %c0_7 = arith.constant 0 : index
    %7 = vector.load %arg1[%c0_6, %c1, %c0_7] : memref<1x80x16xf32, #tpu.memory_space<vmem>>, vector<1x64x16xf32>
    %8 = vector.shape_cast %7 : vector<1x64x16xf32> to vector<64x16xf32>
    %c1_8 = arith.constant 1 : index
    %c0_9 = arith.constant 0 : index
    %c0_10 = arith.constant 0 : index
    %9 = vector.load %arg2[%c1_8, %c0_9, %c0_10] : memref<4x16x128xf32, #tpu.memory_space<vmem>>, vector<1x16x128xf32>
    %10 = vector.shape_cast %9 : vector<1x16x128xf32> to vector<16x128xf32>
    %cst_11 = arith.constant dense<0.000000e+00> : vector<64x128xf32>
    %11 = tpu.matmul %8, %10, %cst_11 {dimension_numbers = #tpu.dot_dimension_numbers<[1], [0], [0], [1], [0, 0, 1, 1], [], []>} : vector<64x16xf32>, vector<16x128xf32>, vector<64x128xf32> -> vector<64x128xf32>
    %12 = arith.addf %6, %11 : vector<64x128xf32>
    %c0_12 = arith.constant 0 : index
    %c8 = arith.constant 8 : index
    %c0_13 = arith.constant 0 : index
    %13 = vector.load %arg1[%c0_12, %c8, %c0_13] : memref<1x80x16xf32, #tpu.memory_space<vmem>>, vector<1x64x16xf32>
    %14 = vector.shape_cast %13 : vector<1x64x16xf32> to vector<64x16xf32>
    %c2 = arith.constant 2 : index
    %c0_14 = arith.constant 0 : index
    %c0_15 = arith.constant 0 : index
    %15 = vector.load %arg2[%c2, %c0_14, %c0_15] : memref<4x16x128xf32, #tpu.memory_space<vmem>>, vector<1x16x128xf32>
    %16 = vector.shape_cast %15 : vector<1x16x128xf32> to vector<16x128xf32>
    %cst_16 = arith.constant dense<0.000000e+00> : vector<64x128xf32>
    %17 = tpu.matmul %14, %16, %cst_16 {dimension_numbers = #tpu.dot_dimension_numbers<[1], [0], [0], [1], [0, 0, 1, 1], [], []>} : vector<64x16xf32>, vector<16x128xf32>, vector<64x128xf32> -> vector<64x128xf32>
    %18 = arith.addf %12, %17 : vector<64x128xf32>
    %c0_17 = arith.constant 0 : index
    %c9 = arith.constant 9 : index
    %c0_18 = arith.constant 0 : index
    %19 = vector.load %arg1[%c0_17, %c9, %c0_18] : memref<1x80x16xf32, #tpu.memory_space<vmem>>, vector<1x64x16xf32>
    %20 = vector.shape_cast %19 : vector<1x64x16xf32> to vector<64x16xf32>
    %c3 = arith.constant 3 : index
    %c0_19 = arith.constant 0 : index
    %c0_20 = arith.constant 0 : index
    %21 = vector.load %arg2[%c3, %c0_19, %c0_20] : memref<4x16x128xf32, #tpu.memory_space<vmem>>, vector<1x16x128xf32>
    %22 = vector.shape_cast %21 : vector<1x16x128xf32> to vector<16x128xf32>
    %cst_21 = arith.constant dense<0.000000e+00> : vector<64x128xf32>
    %23 = tpu.matmul %20, %22, %cst_21 {dimension_numbers = #tpu.dot_dimension_numbers<[1], [0], [0], [1], [0, 0, 1, 1], [], []>} : vector<64x16xf32>, vector<16x128xf32>, vector<64x128xf32> -> vector<64x128xf32>
    %24 = arith.addf %18, %23 : vector<64x128xf32>
    %c0_22 = arith.constant 0 : index
    %c0_23 = arith.constant 0 : index
    %25 = vector.load %arg3[%c0_22, %c0_23] : memref<1x128xf32, #tpu.memory_space<vmem>>, vector<1x128xf32>
    %26 = vector.broadcast %25 : vector<1x128xf32> to vector<64x128xf32>
    %27 = arith.addf %24, %26 : vector<64x128xf32>
    %cst_24 = arith.constant 0.000000e+00 : f32
    %28 = vector.broadcast %cst_24 : f32 to vector<64x128xf32>
    %29 = arith.maximumf %27, %28 : vector<64x128xf32>
    %c0_25 = arith.constant 0 : index
    %c0_26 = arith.constant 0 : index
    %c0_27 = arith.constant 0 : index
    %30 = vector.load %arg4[%c0_25, %c0_26, %c0_27] : memref<1x64x128xf32, #tpu.memory_space<vmem>>, vector<1x64x128xf32>
    %31 = vector.shape_cast %30 : vector<1x64x128xf32> to vector<64x128xf32>
    %32 = vector.shape_cast %29 : vector<64x128xf32> to vector<1x64x128xf32>
    tpu.vector_store %arg4[%c0_25, %c0_26, %c0_27], %32 {strides = array<i32>} : memref<1x64x128xf32, #tpu.memory_space<vmem>>, vector<1x64x128xf32>,
    return
  }
  func.func @transform_0(%arg0: i32) -> (i32, i32, i32) {
    %c0_i32 = arith.constant 0 : i32
    %c0_i32_0 = arith.constant 0 : i32
    %c0_i32_1 = arith.constant 0 : i32
    return %arg0, %c0_i32, %c0_i32_0 : i32, i32, i32
  }
  func.func @transform_1(%arg0: i32) -> (i32, i32, i32) {
    %c0_i32 = arith.constant 0 : i32
    %c0_i32_0 = arith.constant 0 : i32
    %c0_i32_1 = arith.constant 0 : i32
    %c0_i32_2 = arith.constant 0 : i32
    return %c0_i32, %c0_i32_0, %c0_i32_1 : i32, i32, i32
  }
  func.func @transform_2(%arg0: i32) -> (i32, i32) {
    %c0_i32 = arith.constant 0 : i32
    %c0_i32_0 = arith.constant 0 : i32
    %c0_i32_1 = arith.constant 0 : i32
    return %c0_i32, %c0_i32_0 : i32, i32
  }
  func.func @transform_3(%arg0: i32) -> (i32, i32, i32) {
    %c0_i32 = arith.constant 0 : i32
    %c0_i32_0 = arith.constant 0 : i32
    %c0_i32_1 = arith.constant 0 : i32
    return %arg0, %c0_i32, %c0_i32_0 : i32, i32, i32
  }
}

module attributes {stable_mosaic.version = 11 : i64} {
  func.func @_conv_kernel(%arg0: i32, %arg1: memref<1x64x128xf32, #tpu.memory_space<vmem>>, %arg2: memref<9x128x128xf32, #tpu.memory_space<vmem>>, %arg3: memref<1x128xf32, #tpu.memory_space<vmem>>, %arg4: memref<1x40x128xf32, #tpu.memory_space<vmem>>) attributes {dimension_semantics = [#tpu.dimension_semantics<parallel>], iteration_bounds = array<i64: 2>, scalar_prefetch = 0 : i64, scratch_operands = 0 : i64, tpu.core_type = #tpu.core_type<tc>, window_params = [{transform_indices = @transform_0, window_bounds = array<i64: 1, 64, 128>}, {pipeline_mode = #tpu.pipeline_mode<synchronous>, transform_indices = @transform_1, window_bounds = array<i64: 9, 128, 128>}, {pipeline_mode = #tpu.pipeline_mode<synchronous>, transform_indices = @transform_2, window_bounds = array<i64: 1, 128>}, {transform_indices = @transform_3, window_bounds = array<i64: 1, 40, 128>}]} {
    %cst = arith.constant 0.000000e+00 : f32
    %0 = vector.broadcast %cst : f32 to vector<40x128xf32>
    %c0 = arith.constant 0 : index
    %c0_0 = arith.constant 0 : index
    %c0_1 = arith.constant 0 : index
    %1 = vector.load %arg1[%c0, %c0_0, %c0_1] : memref<1x64x128xf32, #tpu.memory_space<vmem>>, vector<1x40x128xf32>
    %2 = vector.shape_cast %1 : vector<1x40x128xf32> to vector<40x128xf32>
    %c0_2 = arith.constant 0 : index
    %c0_3 = arith.constant 0 : index
    %c0_4 = arith.constant 0 : index
    %3 = vector.load %arg2[%c0_2, %c0_3, %c0_4] : memref<9x128x128xf32, #tpu.memory_space<vmem>>, vector<1x128x128xf32>
    %4 = vector.shape_cast %3 : vector<1x128x128xf32> to vector<128x128xf32>
    %cst_5 = arith.constant dense<0.000000e+00> : vector<40x128xf32>
    %5 = tpu.matmul %2, %4, %cst_5 {dimension_numbers = #tpu.dot_dimension_numbers<[1], [0], [0], [1], [0, 0, 1, 1], [], []>} : vector<40x128xf32>, vector<128x128xf32>, vector<40x128xf32> -> vector<40x128xf32>
    %6 = arith.addf %0, %5 : vector<40x128xf32>
    %c0_6 = arith.constant 0 : index
    %c1 = arith.constant 1 : index
    %c0_7 = arith.constant 0 : index
    %7 = vector.load %arg1[%c0_6, %c1, %c0_7] : memref<1x64x128xf32, #tpu.memory_space<vmem>>, vector<1x40x128xf32>
    %8 = vector.shape_cast %7 : vector<1x40x128xf32> to vector<40x128xf32>
    %c1_8 = arith.constant 1 : index
    %c0_9 = arith.constant 0 : index
    %c0_10 = arith.constant 0 : index
    %9 = vector.load %arg2[%c1_8, %c0_9, %c0_10] : memref<9x128x128xf32, #tpu.memory_space<vmem>>, vector<1x128x128xf32>
    %10 = vector.shape_cast %9 : vector<1x128x128xf32> to vector<128x128xf32>
    %cst_11 = arith.constant dense<0.000000e+00> : vector<40x128xf32>
    %11 = tpu.matmul %8, %10, %cst_11 {dimension_numbers = #tpu.dot_dimension_numbers<[1], [0], [0], [1], [0, 0, 1, 1], [], []>} : vector<40x128xf32>, vector<128x128xf32>, vector<40x128xf32> -> vector<40x128xf32>
    %12 = arith.addf %6, %11 : vector<40x128xf32>
    %c0_12 = arith.constant 0 : index
    %c2 = arith.constant 2 : index
    %c0_13 = arith.constant 0 : index
    %13 = vector.load %arg1[%c0_12, %c2, %c0_13] : memref<1x64x128xf32, #tpu.memory_space<vmem>>, vector<1x40x128xf32>
    %14 = vector.shape_cast %13 : vector<1x40x128xf32> to vector<40x128xf32>
    %c2_14 = arith.constant 2 : index
    %c0_15 = arith.constant 0 : index
    %c0_16 = arith.constant 0 : index
    %15 = vector.load %arg2[%c2_14, %c0_15, %c0_16] : memref<9x128x128xf32, #tpu.memory_space<vmem>>, vector<1x128x128xf32>
    %16 = vector.shape_cast %15 : vector<1x128x128xf32> to vector<128x128xf32>
    %cst_17 = arith.constant dense<0.000000e+00> : vector<40x128xf32>
    %17 = tpu.matmul %14, %16, %cst_17 {dimension_numbers = #tpu.dot_dimension_numbers<[1], [0], [0], [1], [0, 0, 1, 1], [], []>} : vector<40x128xf32>, vector<128x128xf32>, vector<40x128xf32> -> vector<40x128xf32>
    %18 = arith.addf %12, %17 : vector<40x128xf32>
    %c0_18 = arith.constant 0 : index
    %c8 = arith.constant 8 : index
    %c0_19 = arith.constant 0 : index
    %19 = vector.load %arg1[%c0_18, %c8, %c0_19] : memref<1x64x128xf32, #tpu.memory_space<vmem>>, vector<1x40x128xf32>
    %20 = vector.shape_cast %19 : vector<1x40x128xf32> to vector<40x128xf32>
    %c3 = arith.constant 3 : index
    %c0_20 = arith.constant 0 : index
    %c0_21 = arith.constant 0 : index
    %21 = vector.load %arg2[%c3, %c0_20, %c0_21] : memref<9x128x128xf32, #tpu.memory_space<vmem>>, vector<1x128x128xf32>
    %22 = vector.shape_cast %21 : vector<1x128x128xf32> to vector<128x128xf32>
    %cst_22 = arith.constant dense<0.000000e+00> : vector<40x128xf32>
    %23 = tpu.matmul %20, %22, %cst_22 {dimension_numbers = #tpu.dot_dimension_numbers<[1], [0], [0], [1], [0, 0, 1, 1], [], []>} : vector<40x128xf32>, vector<128x128xf32>, vector<40x128xf32> -> vector<40x128xf32>
    %24 = arith.addf %18, %23 : vector<40x128xf32>
    %c0_23 = arith.constant 0 : index
    %c9 = arith.constant 9 : index
    %c0_24 = arith.constant 0 : index
    %25 = vector.load %arg1[%c0_23, %c9, %c0_24] : memref<1x64x128xf32, #tpu.memory_space<vmem>>, vector<1x40x128xf32>
    %26 = vector.shape_cast %25 : vector<1x40x128xf32> to vector<40x128xf32>
    %c4 = arith.constant 4 : index
    %c0_25 = arith.constant 0 : index
    %c0_26 = arith.constant 0 : index
    %27 = vector.load %arg2[%c4, %c0_25, %c0_26] : memref<9x128x128xf32, #tpu.memory_space<vmem>>, vector<1x128x128xf32>
    %28 = vector.shape_cast %27 : vector<1x128x128xf32> to vector<128x128xf32>
    %cst_27 = arith.constant dense<0.000000e+00> : vector<40x128xf32>
    %29 = tpu.matmul %26, %28, %cst_27 {dimension_numbers = #tpu.dot_dimension_numbers<[1], [0], [0], [1], [0, 0, 1, 1], [], []>} : vector<40x128xf32>, vector<128x128xf32>, vector<40x128xf32> -> vector<40x128xf32>
    %30 = arith.addf %24, %29 : vector<40x128xf32>
    %c0_28 = arith.constant 0 : index
    %c10 = arith.constant 10 : index
    %c0_29 = arith.constant 0 : index
    %31 = vector.load %arg1[%c0_28, %c10, %c0_29] : memref<1x64x128xf32, #tpu.memory_space<vmem>>, vector<1x40x128xf32>
    %32 = vector.shape_cast %31 : vector<1x40x128xf32> to vector<40x128xf32>
    %c5 = arith.constant 5 : index
    %c0_30 = arith.constant 0 : index
    %c0_31 = arith.constant 0 : index
    %33 = vector.load %arg2[%c5, %c0_30, %c0_31] : memref<9x128x128xf32, #tpu.memory_space<vmem>>, vector<1x128x128xf32>
    %34 = vector.shape_cast %33 : vector<1x128x128xf32> to vector<128x128xf32>
    %cst_32 = arith.constant dense<0.000000e+00> : vector<40x128xf32>
    %35 = tpu.matmul %32, %34, %cst_32 {dimension_numbers = #tpu.dot_dimension_numbers<[1], [0], [0], [1], [0, 0, 1, 1], [], []>} : vector<40x128xf32>, vector<128x128xf32>, vector<40x128xf32> -> vector<40x128xf32>
    %36 = arith.addf %30, %35 : vector<40x128xf32>
    %c0_33 = arith.constant 0 : index
    %c16 = arith.constant 16 : index
    %c0_34 = arith.constant 0 : index
    %37 = vector.load %arg1[%c0_33, %c16, %c0_34] : memref<1x64x128xf32, #tpu.memory_space<vmem>>, vector<1x40x128xf32>
    %38 = vector.shape_cast %37 : vector<1x40x128xf32> to vector<40x128xf32>
    %c6 = arith.constant 6 : index
    %c0_35 = arith.constant 0 : index
    %c0_36 = arith.constant 0 : index
    %39 = vector.load %arg2[%c6, %c0_35, %c0_36] : memref<9x128x128xf32, #tpu.memory_space<vmem>>, vector<1x128x128xf32>
    %40 = vector.shape_cast %39 : vector<1x128x128xf32> to vector<128x128xf32>
    %cst_37 = arith.constant dense<0.000000e+00> : vector<40x128xf32>
    %41 = tpu.matmul %38, %40, %cst_37 {dimension_numbers = #tpu.dot_dimension_numbers<[1], [0], [0], [1], [0, 0, 1, 1], [], []>} : vector<40x128xf32>, vector<128x128xf32>, vector<40x128xf32> -> vector<40x128xf32>
    %42 = arith.addf %36, %41 : vector<40x128xf32>
    %c0_38 = arith.constant 0 : index
    %c17 = arith.constant 17 : index
    %c0_39 = arith.constant 0 : index
    %43 = vector.load %arg1[%c0_38, %c17, %c0_39] : memref<1x64x128xf32, #tpu.memory_space<vmem>>, vector<1x40x128xf32>
    %44 = vector.shape_cast %43 : vector<1x40x128xf32> to vector<40x128xf32>
    %c7 = arith.constant 7 : index
    %c0_40 = arith.constant 0 : index
    %c0_41 = arith.constant 0 : index
    %45 = vector.load %arg2[%c7, %c0_40, %c0_41] : memref<9x128x128xf32, #tpu.memory_space<vmem>>, vector<1x128x128xf32>
    %46 = vector.shape_cast %45 : vector<1x128x128xf32> to vector<128x128xf32>
    %cst_42 = arith.constant dense<0.000000e+00> : vector<40x128xf32>
    %47 = tpu.matmul %44, %46, %cst_42 {dimension_numbers = #tpu.dot_dimension_numbers<[1], [0], [0], [1], [0, 0, 1, 1], [], []>} : vector<40x128xf32>, vector<128x128xf32>, vector<40x128xf32> -> vector<40x128xf32>
    %48 = arith.addf %42, %47 : vector<40x128xf32>
    %c0_43 = arith.constant 0 : index
    %c18 = arith.constant 18 : index
    %c0_44 = arith.constant 0 : index
    %49 = vector.load %arg1[%c0_43, %c18, %c0_44] : memref<1x64x128xf32, #tpu.memory_space<vmem>>, vector<1x40x128xf32>
    %50 = vector.shape_cast %49 : vector<1x40x128xf32> to vector<40x128xf32>
    %c8_45 = arith.constant 8 : index
    %c0_46 = arith.constant 0 : index
    %c0_47 = arith.constant 0 : index
    %51 = vector.load %arg2[%c8_45, %c0_46, %c0_47] : memref<9x128x128xf32, #tpu.memory_space<vmem>>, vector<1x128x128xf32>
    %52 = vector.shape_cast %51 : vector<1x128x128xf32> to vector<128x128xf32>
    %cst_48 = arith.constant dense<0.000000e+00> : vector<40x128xf32>
    %53 = tpu.matmul %50, %52, %cst_48 {dimension_numbers = #tpu.dot_dimension_numbers<[1], [0], [0], [1], [0, 0, 1, 1], [], []>} : vector<40x128xf32>, vector<128x128xf32>, vector<40x128xf32> -> vector<40x128xf32>
    %54 = arith.addf %48, %53 : vector<40x128xf32>
    %c0_49 = arith.constant 0 : index
    %c0_50 = arith.constant 0 : index
    %55 = vector.load %arg3[%c0_49, %c0_50] : memref<1x128xf32, #tpu.memory_space<vmem>>, vector<1x128xf32>
    %56 = vector.broadcast %55 : vector<1x128xf32> to vector<40x128xf32>
    %57 = arith.addf %54, %56 : vector<40x128xf32>
    %cst_51 = arith.constant 0.000000e+00 : f32
    %58 = vector.broadcast %cst_51 : f32 to vector<40x128xf32>
    %59 = arith.maximumf %57, %58 : vector<40x128xf32>
    %c0_52 = arith.constant 0 : index
    %c0_53 = arith.constant 0 : index
    %c0_54 = arith.constant 0 : index
    %60 = vector.load %arg4[%c0_52, %c0_53, %c0_54] : memref<1x40x128xf32, #tpu.memory_space<vmem>>, vector<1x40x128xf32>
    %61 = vector.shape_cast %60 : vector<1x40x128xf32> to vector<40x128xf32>
    %62 = vector.shape_cast %59 : vector<40x128xf32> to vector<1x40x128xf32>
    tpu.vector_store %arg4[%c0_52, %c0_53, %c0_54], %62 {strides = array<i32>} : memref<1x40x128xf32, #tpu.memory_space<vmem>>, vector<1x40x128xf32>,
    return
  }
  func.func @transform_0(%arg0: i32) -> (i32, i32, i32) {
    %c0_i32 = arith.constant 0 : i32
    %c0_i32_0 = arith.constant 0 : i32
    %c0_i32_1 = arith.constant 0 : i32
    return %arg0, %c0_i32, %c0_i32_0 : i32, i32, i32
  }
  func.func @transform_1(%arg0: i32) -> (i32, i32, i32) {
    %c0_i32 = arith.constant 0 : i32
    %c0_i32_0 = arith.constant 0 : i32
    %c0_i32_1 = arith.constant 0 : i32
    %c0_i32_2 = arith.constant 0 : i32
    return %c0_i32, %c0_i32_0, %c0_i32_1 : i32, i32, i32
  }
  func.func @transform_2(%arg0: i32) -> (i32, i32) {
    %c0_i32 = arith.constant 0 : i32
    %c0_i32_0 = arith.constant 0 : i32
    %c0_i32_1 = arith.constant 0 : i32
    return %c0_i32, %c0_i32_0 : i32, i32
  }
  func.func @transform_3(%arg0: i32) -> (i32, i32, i32) {
    %c0_i32 = arith.constant 0 : i32
    %c0_i32_0 = arith.constant 0 : i32
    %c0_i32_1 = arith.constant 0 : i32
    return %arg0, %c0_i32, %c0_i32_0 : i32, i32, i32
  }
}

module attributes {stable_mosaic.version = 11 : i64} {
  func.func @_head_kernel(%arg0: i32, %arg1: memref<2x3200xf32, #tpu.memory_space<vmem>>, %arg2: memref<2x6xf32, #tpu.memory_space<vmem>>, %arg3: memref<3200x32xf32, #tpu.memory_space<vmem>>, %arg4: memref<1x32xf32, #tpu.memory_space<vmem>>, %arg5: memref<1x32xf32, #tpu.memory_space<vmem>>, %arg6: memref<1x32xf32, #tpu.memory_space<vmem>>, %arg7: memref<32x64xf32, #tpu.memory_space<vmem>>, %arg8: memref<6x64xf32, #tpu.memory_space<vmem>>, %arg9: memref<1x64xf32, #tpu.memory_space<vmem>>, %arg10: memref<64x64xf32, #tpu.memory_space<vmem>>, %arg11: memref<1x64xf32, #tpu.memory_space<vmem>>, %arg12: memref<64x128xf32, #tpu.memory_space<vmem>>, %arg13: memref<1x128xf32, #tpu.memory_space<vmem>>, %arg14: memref<2x128xf32, #tpu.memory_space<vmem>>) attributes {dimension_semantics = [#tpu.dimension_semantics<parallel>], iteration_bounds = array<i64: 1>, scalar_prefetch = 0 : i64, scratch_operands = 0 : i64, tpu.core_type = #tpu.core_type<tc>, window_params = [{transform_indices = @transform_0, window_bounds = array<i64: 2, 3200>}, {transform_indices = @transform_1, window_bounds = array<i64: 2, 6>}, {pipeline_mode = #tpu.pipeline_mode<synchronous>, transform_indices = @transform_2, window_bounds = array<i64: 3200, 32>}, {pipeline_mode = #tpu.pipeline_mode<synchronous>, transform_indices = @transform_3, window_bounds = array<i64: 1, 32>}, {pipeline_mode = #tpu.pipeline_mode<synchronous>, transform_indices = @transform_4, window_bounds = array<i64: 1, 32>}, {pipeline_mode = #tpu.pipeline_mode<synchronous>, transform_indices = @transform_5, window_bounds = array<i64: 1, 32>}, {pipeline_mode = #tpu.pipeline_mode<synchronous>, transform_indices = @transform_6, window_bounds = array<i64: 32, 64>}, {pipeline_mode = #tpu.pipeline_mode<synchronous>, transform_indices = @transform_7, window_bounds = array<i64: 6, 64>}, {pipeline_mode = #tpu.pipeline_mode<synchronous>, transform_indices = @transform_8, window_bounds = array<i64: 1, 64>}, {pipeline_mode = #tpu.pipeline_mode<synchronous>, transform_indices = @transform_9, window_bounds = array<i64: 64, 64>}, {pipeline_mode = #tpu.pipeline_mode<synchronous>, transform_indices = @transform_10, window_bounds = array<i64: 1, 64>}, {pipeline_mode = #tpu.pipeline_mode<synchronous>, transform_indices = @transform_11, window_bounds = array<i64: 64, 128>}, {pipeline_mode = #tpu.pipeline_mode<synchronous>, transform_indices = @transform_12, window_bounds = array<i64: 1, 128>}, {transform_indices = @transform_13, window_bounds = array<i64: 2, 128>}]} {
    %c0 = arith.constant 0 : index
    %c0_0 = arith.constant 0 : index
    %0 = vector.load %arg1[%c0, %c0_0] : memref<2x3200xf32, #tpu.memory_space<vmem>>, vector<2x3200xf32>
    %c0_1 = arith.constant 0 : index
    %c0_2 = arith.constant 0 : index
    %1 = vector.load %arg3[%c0_1, %c0_2] : memref<3200x32xf32, #tpu.memory_space<vmem>>, vector<3200x32xf32>
    %cst = arith.constant dense<0.000000e+00> : vector<2x32xf32>
    %2 = tpu.matmul %0, %1, %cst {dimension_numbers = #tpu.dot_dimension_numbers<[1], [0], [0], [1], [0, 0, 1, 1], [], []>} : vector<2x3200xf32>, vector<3200x32xf32>, vector<2x32xf32> -> vector<2x32xf32>
    %c0_3 = arith.constant 0 : index
    %c0_4 = arith.constant 0 : index
    %3 = vector.load %arg4[%c0_3, %c0_4] : memref<1x32xf32, #tpu.memory_space<vmem>>, vector<1x32xf32>
    %4 = vector.broadcast %3 : vector<1x32xf32> to vector<2x32xf32>
    %5 = arith.addf %2, %4 : vector<2x32xf32>
    %cst_5 = arith.constant dense<0.000000e+00> : vector<2xf32>
    %6 = vector.multi_reduction <add>, %5, %cst_5 [1] : vector<2x32xf32> to vector<2xf32>
    %7 = vector.shape_cast %6 : vector<2xf32> to vector<2x1xf32>
    %cst_6 = arith.constant 3.200000e+01 : f32
    %8 = vector.broadcast %cst_6 : f32 to vector<2x1xf32>
    %9 = arith.divf %7, %8 : vector<2x1xf32>
    %10 = vector.broadcast %9 : vector<2x1xf32> to vector<2x32xf32>
    %11 = arith.subf %5, %10 : vector<2x32xf32>
    %12 = arith.mulf %11, %11 : vector<2x32xf32>
    %cst_7 = arith.constant dense<0.000000e+00> : vector<2xf32>
    %13 = vector.multi_reduction <add>, %12, %cst_7 [1] : vector<2x32xf32> to vector<2xf32>
    %14 = vector.shape_cast %13 : vector<2xf32> to vector<2x1xf32>
    %cst_8 = arith.constant 3.200000e+01 : f32
    %15 = vector.broadcast %cst_8 : f32 to vector<2x1xf32>
    %16 = arith.divf %14, %15 : vector<2x1xf32>
    %17 = vector.broadcast %9 : vector<2x1xf32> to vector<2x32xf32>
    %18 = arith.subf %5, %17 : vector<2x32xf32>
    %cst_9 = arith.constant 9.99999974E-6 : f32
    %19 = vector.broadcast %cst_9 : f32 to vector<2x1xf32>
    %20 = arith.addf %16, %19 : vector<2x1xf32>
    %21 = math.rsqrt %20 : vector<2x1xf32>
    %22 = vector.broadcast %21 : vector<2x1xf32> to vector<2x32xf32>
    %23 = arith.mulf %18, %22 : vector<2x32xf32>
    %c0_10 = arith.constant 0 : index
    %c0_11 = arith.constant 0 : index
    %24 = vector.load %arg5[%c0_10, %c0_11] : memref<1x32xf32, #tpu.memory_space<vmem>>, vector<1x32xf32>
    %25 = vector.broadcast %24 : vector<1x32xf32> to vector<2x32xf32>
    %26 = arith.mulf %23, %25 : vector<2x32xf32>
    %c0_12 = arith.constant 0 : index
    %c0_13 = arith.constant 0 : index
    %27 = vector.load %arg6[%c0_12, %c0_13] : memref<1x32xf32, #tpu.memory_space<vmem>>, vector<1x32xf32>
    %28 = vector.broadcast %27 : vector<1x32xf32> to vector<2x32xf32>
    %29 = arith.addf %26, %28 : vector<2x32xf32>
    %c0_14 = arith.constant 0 : index
    %c0_15 = arith.constant 0 : index
    %30 = vector.load %arg7[%c0_14, %c0_15] : memref<32x64xf32, #tpu.memory_space<vmem>>, vector<32x64xf32>
    %cst_16 = arith.constant dense<0.000000e+00> : vector<2x64xf32>
    %31 = tpu.matmul %29, %30, %cst_16 {dimension_numbers = #tpu.dot_dimension_numbers<[1], [0], [0], [1], [0, 0, 1, 1], [], []>} : vector<2x32xf32>, vector<32x64xf32>, vector<2x64xf32> -> vector<2x64xf32>
    %c0_17 = arith.constant 0 : index
    %c0_18 = arith.constant 0 : index
    %32 = vector.load %arg2[%c0_17, %c0_18] : memref<2x6xf32, #tpu.memory_space<vmem>>, vector<2x6xf32>
    %c0_19 = arith.constant 0 : index
    %c0_20 = arith.constant 0 : index
    %33 = vector.load %arg8[%c0_19, %c0_20] : memref<6x64xf32, #tpu.memory_space<vmem>>, vector<6x64xf32>
    %cst_21 = arith.constant dense<0.000000e+00> : vector<2x64xf32>
    %34 = tpu.matmul %32, %33, %cst_21 {dimension_numbers = #tpu.dot_dimension_numbers<[1], [0], [0], [1], [0, 0, 1, 1], [], []>} : vector<2x6xf32>, vector<6x64xf32>, vector<2x64xf32> -> vector<2x64xf32>
    %35 = arith.addf %31, %34 : vector<2x64xf32>
    %c0_22 = arith.constant 0 : index
    %c0_23 = arith.constant 0 : index
    %36 = vector.load %arg9[%c0_22, %c0_23] : memref<1x64xf32, #tpu.memory_space<vmem>>, vector<1x64xf32>
    %37 = vector.broadcast %36 : vector<1x64xf32> to vector<2x64xf32>
    %38 = arith.addf %35, %37 : vector<2x64xf32>
    %cst_24 = arith.constant 0.000000e+00 : f32
    %39 = vector.broadcast %cst_24 : f32 to vector<2x64xf32>
    %40 = arith.maximumf %38, %39 : vector<2x64xf32>
    %c0_25 = arith.constant 0 : index
    %c0_26 = arith.constant 0 : index
    %41 = vector.load %arg10[%c0_25, %c0_26] : memref<64x64xf32, #tpu.memory_space<vmem>>, vector<64x64xf32>
    %cst_27 = arith.constant dense<0.000000e+00> : vector<2x64xf32>
    %42 = tpu.matmul %40, %41, %cst_27 {dimension_numbers = #tpu.dot_dimension_numbers<[1], [0], [0], [1], [0, 0, 1, 1], [], []>} : vector<2x64xf32>, vector<64x64xf32>, vector<2x64xf32> -> vector<2x64xf32>
    %c0_28 = arith.constant 0 : index
    %c0_29 = arith.constant 0 : index
    %43 = vector.load %arg11[%c0_28, %c0_29] : memref<1x64xf32, #tpu.memory_space<vmem>>, vector<1x64xf32>
    %44 = vector.broadcast %43 : vector<1x64xf32> to vector<2x64xf32>
    %45 = arith.addf %42, %44 : vector<2x64xf32>
    %cst_30 = arith.constant 0.000000e+00 : f32
    %46 = vector.broadcast %cst_30 : f32 to vector<2x64xf32>
    %47 = arith.maximumf %45, %46 : vector<2x64xf32>
    %c0_31 = arith.constant 0 : index
    %c0_32 = arith.constant 0 : index
    %48 = vector.load %arg12[%c0_31, %c0_32] : memref<64x128xf32, #tpu.memory_space<vmem>>, vector<64x128xf32>
    %cst_33 = arith.constant dense<0.000000e+00> : vector<2x128xf32>
    %49 = tpu.matmul %47, %48, %cst_33 {dimension_numbers = #tpu.dot_dimension_numbers<[1], [0], [0], [1], [0, 0, 1, 1], [], []>} : vector<2x64xf32>, vector<64x128xf32>, vector<2x128xf32> -> vector<2x128xf32>
    %c0_34 = arith.constant 0 : index
    %c0_35 = arith.constant 0 : index
    %50 = vector.load %arg13[%c0_34, %c0_35] : memref<1x128xf32, #tpu.memory_space<vmem>>, vector<1x128xf32>
    %51 = vector.broadcast %50 : vector<1x128xf32> to vector<2x128xf32>
    %52 = arith.addf %49, %51 : vector<2x128xf32>
    %c0_36 = arith.constant 0 : index
    %c0_37 = arith.constant 0 : index
    %53 = vector.load %arg14[%c0_36, %c0_37] : memref<2x128xf32, #tpu.memory_space<vmem>>, vector<2x128xf32>
    tpu.vector_store %arg14[%c0_36, %c0_37], %52 {strides = array<i32>} : memref<2x128xf32, #tpu.memory_space<vmem>>, vector<2x128xf32>,
    return
  }
  func.func @transform_0(%arg0: i32) -> (i32, i32) {
    %c0_i32 = arith.constant 0 : i32
    %c0_i32_0 = arith.constant 0 : i32
    return %arg0, %c0_i32 : i32, i32
  }
  func.func @transform_1(%arg0: i32) -> (i32, i32) {
    %c0_i32 = arith.constant 0 : i32
    %c0_i32_0 = arith.constant 0 : i32
    return %arg0, %c0_i32 : i32, i32
  }
  func.func @transform_2(%arg0: i32) -> (i32, i32) {
    %c0_i32 = arith.constant 0 : i32
    %c0_i32_0 = arith.constant 0 : i32
    %c0_i32_1 = arith.constant 0 : i32
    return %c0_i32, %c0_i32_0 : i32, i32
  }
  func.func @transform_3(%arg0: i32) -> (i32, i32) {
    %c0_i32 = arith.constant 0 : i32
    %c0_i32_0 = arith.constant 0 : i32
    %c0_i32_1 = arith.constant 0 : i32
    return %c0_i32, %c0_i32_0 : i32, i32
  }
  func.func @transform_4(%arg0: i32) -> (i32, i32) {
    %c0_i32 = arith.constant 0 : i32
    %c0_i32_0 = arith.constant 0 : i32
    %c0_i32_1 = arith.constant 0 : i32
    return %c0_i32, %c0_i32_0 : i32, i32
  }
  func.func @transform_5(%arg0: i32) -> (i32, i32) {
    %c0_i32 = arith.constant 0 : i32
    %c0_i32_0 = arith.constant 0 : i32
    %c0_i32_1 = arith.constant 0 : i32
    return %c0_i32, %c0_i32_0 : i32, i32
  }
  func.func @transform_6(%arg0: i32) -> (i32, i32) {
    %c0_i32 = arith.constant 0 : i32
    %c0_i32_0 = arith.constant 0 : i32
    %c0_i32_1 = arith.constant 0 : i32
    return %c0_i32, %c0_i32_0 : i32, i32
  }
  func.func @transform_7(%arg0: i32) -> (i32, i32) {
    %c0_i32 = arith.constant 0 : i32
    %c0_i32_0 = arith.constant 0 : i32
    %c0_i32_1 = arith.constant 0 : i32
    return %c0_i32, %c0_i32_0 : i32, i32
  }
  func.func @transform_8(%arg0: i32) -> (i32, i32) {
    %c0_i32 = arith.constant 0 : i32
    %c0_i32_0 = arith.constant 0 : i32
    %c0_i32_1 = arith.constant 0 : i32
    return %c0_i32, %c0_i32_0 : i32, i32
  }
  func.func @transform_9(%arg0: i32) -> (i32, i32) {
    %c0_i32 = arith.constant 0 : i32
    %c0_i32_0 = arith.constant 0 : i32
    %c0_i32_1 = arith.constant 0 : i32
    return %c0_i32, %c0_i32_0 : i32, i32
  }
  func.func @transform_10(%arg0: i32) -> (i32, i32) {
    %c0_i32 = arith.constant 0 : i32
    %c0_i32_0 = arith.constant 0 : i32
    %c0_i32_1 = arith.constant 0 : i32
    return %c0_i32, %c0_i32_0 : i32, i32
  }
  func.func @transform_11(%arg0: i32) -> (i32, i32) {
    %c0_i32 = arith.constant 0 : i32
    %c0_i32_0 = arith.constant 0 : i32
    %c0_i32_1 = arith.constant 0 : i32
    return %c0_i32, %c0_i32_0 : i32, i32
  }
  func.func @transform_12(%arg0: i32) -> (i32, i32) {
    %c0_i32 = arith.constant 0 : i32
    %c0_i32_0 = arith.constant 0 : i32
    %c0_i32_1 = arith.constant 0 : i32
    return %c0_i32, %c0_i32_0 : i32, i32
  }
  func.func @transform_13(%arg0: i32) -> (i32, i32) {
    %c0_i32 = arith.constant 0 : i32
    %c0_i32_0 = arith.constant 0 : i32
    return %arg0, %c0_i32 : i32, i32
  }
}

</mosaic_0001>

<llo_original>
// kernel: forward.4
$region0: #{forward.4}
  #allocation0 [shape = 'u32[]', space=smem, size = 0x4, offset = 0x4, fixed_abs, tag = 'smem constant byte address 0x4 - core index']
  #allocation1 [shape = 'u32[72,128]{1,0:T(1,128)}', space=vmem, size = 0x9000, scoped, tag = 'internal scratch']
  %s0 = inlined_call_operand.vmem [shape: f32[2,64,128], index: 0, kind: input, shape index: {}]
  %s1 = inlined_call_operand.vmem [shape: f32[9,128,128], index: 1, kind: input, shape index: {}]
  %s2 = inlined_call_operand.hbm [shape: f32[1,128], index: 2, kind: input, shape index: {}]
  %s3 = inlined_call_operand.vmem [shape: f32[2,40,128], index: 3, kind: output, shape index: {}]
  %s4 = sld [smem:[#allocation0]]
  $region49: #{forward.4} parent=0
    _
  %s6 = ssub.s32 1, %s4
  %s7 = scalar_select 0, %s6, %s4
  $region1: #{forward.4} parent=0
    #allocation2 [shape = 'u8[512]{0}', space=vmem, size = 0x400, scoped, tag = 'input window, operand 2, single buffered']
    #allocation3 [shape = 's32[2]{0}', space=sflag, size = 0x8, scoped, tag = 'scoped memory for forward.4']
    %8 = vsyncpa [#allocation3], 0
    loop: start=0, step=1, limit=4
    $region2: #{forward.4} parent=1 // loop_pre_header
      _
    $region3: #{forward.4} parent=1 // loop_header
      %s10 = sphi 0, %s14
      %p11 = scmp.ge.s32.totalorder %s10, 4
      %s20 = sphi 0, %s22
      %s23 = sphi 0, %s20
      %s24 = sphi 0, %s23
      %s40 = sphi 0, %s24
      %s44 = sphi 0, %s44
      %s46 = sphi 0, %s44
      %s47 = sphi 0, %s46
      %s61 = sphi 0, %s47
      %s65 = sphi 0, %s65
      %s67 = sphi 0, %s65
      %s68 = sphi 0, %s67
      %s82 = sphi 0, %s68
      %s88 = sphi 0, %s90
      %s91 = sphi 0, %s88
      %s92 = sphi 0, %s91
      %s108 = sphi 0, %s92
    $region4: #{forward.4} parent=1 // loop_header_branch
      %13 = sbr.rel (%p11) target = $region8
    $region5: #{forward.4} parent=1 // loop_body
      %s15 = ssub.s32 %s10, 1
      %s16 = ssub.s32 %s10, 2
      %s17 = sadd.s32 %s10, 1
      %s18 = ssub.s32 %s10, %s17
      %p19 = scmp.eq.s32.totalorder %s18, 0
      %s21 = sadd.s32 %s20, 1
      %s22 = scalar_select %p19, %s20, %s21
      %p25 = pneg %p19
      %p26 = scmp.eq.s32.totalorder %s10, 1
      %p27 = por %p25, %p26
      %p28 = scmp.ne.s32.totalorder %s20, %s23
      %p29 = scmp.eq.s32.totalorder %s10, 0
      %p30 = por %p28, %p29
      %p31 = scmp.ne.s32.totalorder %s20, %s23
      %p32 = scmp.eq.s32.totalorder %s15, 1
      %p33 = por %p31, %p32
      %p34 = scmp.ne.s32.totalorder %s23, %s24
      %p35 = scmp.eq.s32.totalorder %s15, 0
      %p36 = por %p34, %p35
      %p37 = scmp.ne.s32.totalorder %s23, %s24
      %p38 = scmp.eq.s32.totalorder %s16, 1
      %p39 = por %p37, %p38
      %p41 = scmp.ne.s32.totalorder %s24, %s40
      %p42 = scmp.eq.s32.totalorder %s16, 0
      %p43 = por %p41, %p42
      %s45 = sadd.s32 %s44, 1
      %p48 = scmp.eq.s32.totalorder %s10, 1
      %p49 = scmp.ne.s32.totalorder %s44, %s46
      %p50 = scmp.eq.s32.totalorder %s10, 0
      %p51 = por %p49, %p50
      %p52 = scmp.ne.s32.totalorder %s44, %s46
      %p53 = scmp.eq.s32.totalorder %s15, 1
      %p54 = por %p52, %p53
      %p55 = scmp.ne.s32.totalorder %s46, %s47
      %p56 = scmp.eq.s32.totalorder %s15, 0
      %p57 = por %p55, %p56
      %p58 = scmp.ne.s32.totalorder %s46, %s47
      %p59 = scmp.eq.s32.totalorder %s16, 1
      %p60 = por %p58, %p59
      %p62 = scmp.ne.s32.totalorder %s47, %s61
      %p63 = scmp.eq.s32.totalorder %s16, 0
      %p64 = por %p62, %p63
      %s66 = sadd.s32 %s65, 1
      %p69 = scmp.eq.s32.totalorder %s10, 1
      %p70 = scmp.ne.s32.totalorder %s65, %s67
      %p71 = scmp.eq.s32.totalorder %s10, 0
      %p72 = por %p70, %p71
      %p73 = scmp.ne.s32.totalorder %s65, %s67
      %p74 = scmp.eq.s32.totalorder %s15, 1
      %p75 = por %p73, %p74
      %p76 = scmp.ne.s32.totalorder %s67, %s68
      %p77 = scmp.eq.s32.totalorder %s15, 0
      %p78 = por %p76, %p77
      %p79 = scmp.ne.s32.totalorder %s67, %s68
      %p80 = scmp.eq.s32.totalorder %s16, 1
      %p81 = por %p79, %p80
      %p83 = scmp.ne.s32.totalorder %s68, %s82
      %p84 = scmp.eq.s32.totalorder %s16, 0
      %p85 = por %p83, %p84
      %s86 = ssub.s32 %s10, %s17
      %p87 = scmp.eq.s32.totalorder %s86, 0
      %s89 = sadd.s32 %s88, 1
      %s90 = scalar_select %p87, %s88, %s89
      %p93 = pneg %p87
      %p94 = scmp.eq.s32.totalorder %s10, 1
      %p95 = por %p93, %p94
      %p96 = scmp.ne.s32.totalorder %s88, %s91
      %p97 = scmp.eq.s32.totalorder %s10, 0
      %p98 = por %p96, %p97
      %p99 = scmp.ne.s32.totalorder %s88, %s91
      %p100 = scmp.eq.s32.totalorder %s15, 1
      %p101 = por %p99, %p100
      %p102 = scmp.ne.s32.totalorder %s91, %s92
      %p103 = scmp.eq.s32.totalorder %s15, 0
      %p104 = por %p102, %p103
      %p105 = scmp.ne.s32.totalorder %s91, %s92
      %p106 = scmp.eq.s32.totalorder %s16, 1
      %p107 = por %p105, %p106
      %p109 = scmp.ne.s32.totalorder %s92, %s108
      %p110 = scmp.eq.s32.totalorder %s16, 0
      %p111 = por %p109, %p110
      %p112 = scmp.le.s32.totalorder 1, %s10
      %p113 = scmp.lt.s32.totalorder %s10, 3
      %p114 = pnand %p112, %p113
      %p115 = pneg %p114
      // Predicated region
      $region9: #{forward.4} parent=5 // pred_check
        _
      $region10: #{forward.4} parent=5 // pred_check_branch
        %117 = sbr.rel (%p114) target = $region12
      $region11: #{forward.4} parent=5 // pred_region
        %s118 = ssub.s32 %s10, 1
        // Predicated region
        $region13: #{forward.4} parent=11 // pred_check
          %p119 = pneg %p57
        $region14: #{forward.4} parent=11 // pred_check_branch
          %121 = sbr.rel (%p119) target = $region16
        $region15: #{forward.4} parent=11 // pred_region
          _
        $region16: #{forward.4} parent=11 // pred_fallthru
          _
        // Predicated region
        $region17: #{forward.4} parent=11 // pred_check
          %p122 = pneg %p78
        $region18: #{forward.4} parent=11 // pred_check_branch
          %124 = sbr.rel (%p122) target = $region20
        $region19: #{forward.4} parent=11 // pred_region
          %126 = vsyncadd [#allocation3], 0
          %s128 = sshll.u32 %s2, 4
          %s129 = int_to_ptr.hbm [resolvable:$true] %s128
          %s130 = sshll.u32 [#allocation2], 4
          %s131 = int_to_ptr.vmem [resolvable:$true] %s130
          %133 = dma.hbm_to_vmem [thread:$0]  %s129, 16, %s131, [#allocation3]
        $region20: #{forward.4} parent=11 // pred_fallthru
          _
      $region12: #{forward.4} parent=5 // pred_fallthru
        _
      %p134 = scmp.lt.s32.totalorder %s10, 2
      // Predicated region
      $region21: #{forward.4} parent=5 // pred_check
        %p135 = pneg %p134
      $region22: #{forward.4} parent=5 // pred_check_branch
        %137 = sbr.rel (%p135) target = $region24
      $region23: #{forward.4} parent=5 // pred_region
        // Predicated region
        $region25: #{forward.4} parent=23 // pred_check
          %p138 = pneg %p30
        $region26: #{forward.4} parent=23 // pred_check_branch
          %140 = sbr.rel (%p138) target = $region28
        $region27: #{forward.4} parent=23 // pred_region
          %p141 = scmp.lt.s32.totalorder %s10, 1
          %s142 = scalar_select %p141, %s10, 1
          %s143 = smul.addr %s142, 8
          %s144 = smul.addr %s143, 8
          %s145 = scalar_lea.vmem %s0, %s144
        $region28: #{forward.4} parent=23 // pred_fallthru
          _
      $region24: #{forward.4} parent=5 // pred_fallthru
        _
      %p146 = scmp.le.s32.totalorder 1, %s10
      %p147 = scmp.lt.s32.totalorder %s10, 3
      %p148 = pnand %p146, %p147
      %p149 = pneg %p148
      // Predicated region
      $region29: #{forward.4} parent=5 // pred_check
        _
      $region30: #{forward.4} parent=5 // pred_check_branch
        %151 = sbr.rel (%p148) target = $region32
      $region31: #{forward.4} parent=5 // pred_region
        %s152 = ssub.s32 %s10, 1
        // Predicated region
        $region33: #{forward.4} parent=31 // pred_check
          %p153 = pneg %p78
        $region34: #{forward.4} parent=31 // pred_check_branch
          %155 = sbr.rel (%p153) target = $region36
        $region35: #{forward.4} parent=31 // pred_region
          %157 = dma.done [#allocation3], 16
        $region36: #{forward.4} parent=31 // pred_fallthru
          _
        %p158 = scmp.lt.s32.totalorder %s15, 1
        %s159 = scalar_select %p158, %s15, 1
        %s160 = smul.addr %s159, 8
        %s161 = smul.addr %s160, 8
        %s162 = scalar_lea.vmem %s0, %s161
        %p163 = pneg %p36
        %p164 = pneg %p33
        %p165 = pneg %p57
        %p166 = pneg %p54
        %p167 = pneg %p78
        %p168 = pneg %p75
        %p169 = pneg %p104
        %p170 = pneg %p101
        %p171 = scmp.lt.s32.totalorder %s15, 1
        %s172 = scalar_select %p171, %s15, 1
        %s173 = smul.addr %s172, 5
        %s174 = smul.addr %s173, 8
        %s175 = scalar_lea.vmem %s3, %s174
        %p176 = scmp.lt.s32.totalorder %s15, 1
        %s177 = scalar_select %p176, %s15, 1
        %s178 = smul.addr %s177, 8
        %s179 = smul.addr %s178, 8
        %s180 = scalar_lea.vmem %s0, %s179
        %p181 = scmp.lt.s32.totalorder %s15, 1
        %s182 = scalar_select %p181, %s15, 1
        %s183 = smul.addr %s182, 5
        %s184 = smul.addr %s183, 8
        %s185 = scalar_lea.vmem %s3, %s184
        %v186 = vld [vmem:[%s180] sm:$0xff]
        %v187 = vld [vmem:[%s180 + $0x8] sm:$0xff]
        %v188 = vld [vmem:[%s180 + $0x10] sm:$0xff]
        %v189 = vld [vmem:[%s180 + $0x18] sm:$0xff]
        %v190 = vld [vmem:[%s180 + $0x20] sm:$0xff]
        %v191 = vld [vmem:[%s1] sm:$0xff]
        %v192 = vld [vmem:[%s1 + $0x8] sm:$0xff]
        %v193 = vld [vmem:[%s1 + $0x10] sm:$0xff]
        %v194 = vld [vmem:[%s1 + $0x18] sm:$0xff]
        %v195 = vld [vmem:[%s1 + $0x20] sm:$0xff]
        %v196 = vld [vmem:[%s1 + $0x28] sm:$0xff]
        %v197 = vld [vmem:[%s1 + $0x30] sm:$0xff]
        %v198 = vld [vmem:[%s1 + $0x38] sm:$0xff]
        %v199 = vld [vmem:[%s1 + $0x40] sm:$0xff]
        %v200 = vld [vmem:[%s1 + $0x48] sm:$0xff]
        %v201 = vld [vmem:[%s1 + $0x50] sm:$0xff]
        %v202 = vld [vmem:[%s1 + $0x58] sm:$0xff]
        %v203 = vld [vmem:[%s1 + $0x60] sm:$0xff]
        %v204 = vld [vmem:[%s1 + $0x68] sm:$0xff]
        %v205 = vld [vmem:[%s1 + $0x70] sm:$0xff]
        %v206 = vld [vmem:[%s1 + $0x78] sm:$0xff]
        %v207 = vld [vmem:[%s180 + $0x1] sm:$0xff]
        %v208 = vld [vmem:[%s180 + $0x9] sm:$0xff]
        %v209 = vld [vmem:[%s180 + $0x11] sm:$0xff]
        %v210 = vld [vmem:[%s180 + $0x19] sm:$0xff]
        %v211 = vld [vmem:[%s180 + $0x21] sm:$0xff]
        %s212 = scalar_lea.vmem %s1, 128
        %v213 = vld [vmem:[%s212] sm:$0xff]
        %v214 = vld [vmem:[%s212 + $0x8] sm:$0xff]
        %v215 = vld [vmem:[%s212 + $0x10] sm:$0xff]
        %v216 = vld [vmem:[%s212 + $0x18] sm:$0xff]
        %v217 = vld [vmem:[%s212 + $0x20] sm:$0xff]
        %v218 = vld [vmem:[%s212 + $0x28] sm:$0xff]
        %v219 = vld [vmem:[%s212 + $0x30] sm:$0xff]
        %v220 = vld [vmem:[%s212 + $0x38] sm:$0xff]
        %v221 = vld [vmem:[%s212 + $0x40] sm:$0xff]
        %v222 = vld [vmem:[%s212 + $0x48] sm:$0xff]
        %v223 = vld [vmem:[%s212 + $0x50] sm:$0xff]
        %v224 = vld [vmem:[%s212 + $0x58] sm:$0xff]
        %v225 = vld [vmem:[%s212 + $0x60] sm:$0xff]
        %v226 = vld [vmem:[%s212 + $0x68] sm:$0xff]
        %v227 = vld [vmem:[%s212 + $0x70] sm:$0xff]
        %v228 = vld [vmem:[%s212 + $0x78] sm:$0xff]
        %229 = vmatpush.msra.mxu0 %v228
        %230 = vmatpush.msra.mxu0 %v227
        %231 = vmatpush.msra.mxu0 %v226
        %232 = vmatpush.msra.mxu0 %v225
        %233 = vmatpush.msra.mxu0 %v224
        %234 = vmatpush.msra.mxu0 %v223
        %235 = vmatpush.msra.mxu0 %v222
        %236 = vmatpush.msra.mxu0 %v221
        %237 = vmatpush.msra.mxu0 %v220
        %238 = vmatpush.msra.mxu0 %v219
        %239 = vmatpush.msra.mxu0 %v218
        %240 = vmatpush.msra.mxu0 %v217
        %241 = vmatpush.msra.mxu0 %v216
        %242 = vmatpush.msra.mxu0 %v215
        %243 = vmatpush.msra.mxu0 %v214
        %244 = vmatpush.msra.mxu0 %v213
        %245 = vmatmul.f32.gmra.mxu0 %v207
        %v246 = vpop.f32.mrf.mxu0
        %v247 = vadd.f32 0.0, %v246
        %248 = vmatmul.f32.gmra.mxu0 %v208
        %v249 = vpop.f32.mrf.mxu0
        %v250 = vadd.f32 0.0, %v249
        %251 = vmatmul.f32.gmra.mxu0 %v209
        %v252 = vpop.f32.mrf.mxu0
        %v253 = vadd.f32 0.0, %v252
        %254 = vmatmul.f32.gmra.mxu0 %v210
        %v255 = vpop.f32.mrf.mxu0
        %v256 = vadd.f32 0.0, %v255
        %257 = vmatmul.f32.gmra.mxu0 %v211
        %v258 = vpop.f32.mrf.mxu0
        %v259 = vadd.f32 0.0, %v258
        %260 = vdwg.mxu0
        %261 = vmatpush.msra.mxu0 %v206
        %262 = vmatpush.msra.mxu0 %v205
        %263 = vmatpush.msra.mxu0 %v204
        %264 = vmatpush.msra.mxu0 %v203
        %265 = vmatpush.msra.mxu0 %v202
        %266 = vmatpush.msra.mxu0 %v201
        %267 = vmatpush.msra.mxu0 %v200
        %268 = vmatpush.msra.mxu0 %v199
        %269 = vmatpush.msra.mxu0 %v198
        %270 = vmatpush.msra.mxu0 %v197
        %271 = vmatpush.msra.mxu0 %v196
        %272 = vmatpush.msra.mxu0 %v195
        %273 = vmatpush.msra.mxu0 %v194
        %274 = vmatpush.msra.mxu0 %v193
        %275 = vmatpush.msra.mxu0 %v192
        %276 = vmatpush.msra.mxu0 %v191
        %277 = vmatmul.f32.gmra.mxu0 %v186
        %v278 = vpop.f32.mrf.mxu0
        %v279 = vadd.f32 %v247, %v278
        %280 = vmatmul.f32.gmra.mxu0 %v187
        %v281 = vpop.f32.mrf.mxu0
        %v282 = vadd.f32 %v250, %v281
        %283 = vmatmul.f32.gmra.mxu0 %v188
        %v284 = vpop.f32.mrf.mxu0
        %v285 = vadd.f32 %v253, %v284
        %286 = vmatmul.f32.gmra.mxu0 %v189
        %v287 = vpop.f32.mrf.mxu0
        %v288 = vadd.f32 %v256, %v287
        %289 = vmatmul.f32.gmra.mxu0 %v190
        %v290 = vpop.f32.mrf.mxu0
        %v291 = vadd.f32 %v259, %v290
        %292 = vdwg.mxu0
        %v293 = vld [vmem:[%s180 + $0x2] sm:$0xff]
        %v294 = vld [vmem:[%s180 + $0xa] sm:$0xff]
        %v295 = vld [vmem:[%s180 + $0x12] sm:$0xff]
        %v296 = vld [vmem:[%s180 + $0x1a] sm:$0xff]
        %v297 = vld [vmem:[%s180 + $0x22] sm:$0xff]
        %s298 = scalar_lea.vmem %s1, 256
        %v299 = vld [vmem:[%s298] sm:$0xff]
        %v300 = vld [vmem:[%s298 + $0x8] sm:$0xff]
        %v301 = vld [vmem:[%s298 + $0x10] sm:$0xff]
        %v302 = vld [vmem:[%s298 + $0x18] sm:$0xff]
        %v303 = vld [vmem:[%s298 + $0x20] sm:$0xff]
        %v304 = vld [vmem:[%s298 + $0x28] sm:$0xff]
        %v305 = vld [vmem:[%s298 + $0x30] sm:$0xff]
        %v306 = vld [vmem:[%s298 + $0x38] sm:$0xff]
        %v307 = vld [vmem:[%s298 + $0x40] sm:$0xff]
        %v308 = vld [vmem:[%s298 + $0x48] sm:$0xff]
        %v309 = vld [vmem:[%s298 + $0x50] sm:$0xff]
        %v310 = vld [vmem:[%s298 + $0x58] sm:$0xff]
        %v311 = vld [vmem:[%s298 + $0x60] sm:$0xff]
        %v312 = vld [vmem:[%s298 + $0x68] sm:$0xff]
        %v313 = vld [vmem:[%s298 + $0x70] sm:$0xff]
        %v314 = vld [vmem:[%s298 + $0x78] sm:$0xff]
        %315 = vmatpush.msra.mxu0 %v314
        %316 = vmatpush.msra.mxu0 %v313
        %317 = vmatpush.msra.mxu0 %v312
        %318 = vmatpush.msra.mxu0 %v311
        %319 = vmatpush.msra.mxu0 %v310
        %320 = vmatpush.msra.mxu0 %v309
        %321 = vmatpush.msra.mxu0 %v308
        %322 = vmatpush.msra.mxu0 %v307
        %323 = vmatpush.msra.mxu0 %v306
        %324 = vmatpush.msra.mxu0 %v305
        %325 = vmatpush.msra.mxu0 %v304
        %326 = vmatpush.msra.mxu0 %v303
        %327 = vmatpush.msra.mxu0 %v302
        %328 = vmatpush.msra.mxu0 %v301
        %329 = vmatpush.msra.mxu0 %v300
        %330 = vmatpush.msra.mxu0 %v299
        %331 = vmatmul.f32.gmra.mxu0 %v293
        %v332 = vpop.f32.mrf.mxu0
        %v333 = vadd.f32 0.0, %v332
        %334 = vmatmul.f32.gmra.mxu0 %v294
        %v335 = vpop.f32.mrf.mxu0
        %v336 = vadd.f32 0.0, %v335
        %337 = vmatmul.f32.gmra.mxu0 %v295
        %v338 = vpop.f32.mrf.mxu0
        %v339 = vadd.f32 0.0, %v338
        %340 = vmatmul.f32.gmra.mxu0 %v296
        %v341 = vpop.f32.mrf.mxu0
        %v342 = vadd.f32 0.0, %v341
        %343 = vmatmul.f32.gmra.mxu0 %v297
        %v344 = vpop.f32.mrf.mxu0
        %v345 = vadd.f32 0.0, %v344
        %346 = vdwg.mxu0
        %v347 = vadd.f32 %v279, %v333
        %v348 = vadd.f32 %v282, %v336
        %v349 = vadd.f32 %v285, %v339
        %v350 = vadd.f32 %v288, %v342
        %v351 = vadd.f32 %v291, %v345
        %v352 = vld [vmem:[%s180 + $0x8] sm:$0xff]
        %v353 = vld [vmem:[%s180 + $0x10] sm:$0xff]
        %v354 = vld [vmem:[%s180 + $0x18] sm:$0xff]
        %v355 = vld [vmem:[%s180 + $0x20] sm:$0xff]
        %v356 = vld [vmem:[%s180 + $0x28] sm:$0xff]
        %s357 = scalar_lea.vmem %s1, 384
        %v358 = vld [vmem:[%s357] sm:$0xff]
        %v359 = vld [vmem:[%s357 + $0x8] sm:$0xff]
        %v360 = vld [vmem:[%s357 + $0x10] sm:$0xff]
        %v361 = vld [vmem:[%s357 + $0x18] sm:$0xff]
        %v362 = vld [vmem:[%s357 + $0x20] sm:$0xff]
        %v363 = vld [vmem:[%s357 + $0x28] sm:$0xff]
        %v364 = vld [vmem:[%s357 + $0x30] sm:$0xff]
        %v365 = vld [vmem:[%s357 + $0x38] sm:$0xff]
        %v366 = vld [vmem:[%s357 + $0x40] sm:$0xff]
        %v367 = vld [vmem:[%s357 + $0x48] sm:$0xff]
        %v368 = vld [vmem:[%s357 + $0x50] sm:$0xff]
        %v369 = vld [vmem:[%s357 + $0x58] sm:$0xff]
        %v370 = vld [vmem:[%s357 + $0x60] sm:$0xff]
        %v371 = vld [vmem:[%s357 + $0x68] sm:$0xff]
        %v372 = vld [vmem:[%s357 + $0x70] sm:$0xff]
        %v373 = vld [vmem:[%s357 + $0x78] sm:$0xff]
        %374 = vmatpush.msra.mxu0 %v373
        %375 = vmatpush.msra.mxu0 %v372
        %376 = vmatpush.msra.mxu0 %v371
        %377 = vmatpush.msra.mxu0 %v370
        %378 = vmatpush.msra.mxu0 %v369
        %379 = vmatpush.msra.mxu0 %v368
        %380 = vmatpush.msra.mxu0 %v367
        %381 = vmatpush.msra.mxu0 %v366
        %382 = vmatpush.msra.mxu0 %v365
        %383 = vmatpush.msra.mxu0 %v364
        %384 = vmatpush.msra.mxu0 %v363
        %385 = vmatpush.msra.mxu0 %v362
        %386 = vmatpush.msra.mxu0 %v361
        %387 = vmatpush.msra.mxu0 %v360
        %388 = vmatpush.msra.mxu0 %v359
        %389 = vmatpush.msra.mxu0 %v358
        %390 = vmatmul.f32.gmra.mxu0 %v352
        %v391 = vpop.f32.mrf.mxu0
        %v392 = vadd.f32 0.0, %v391
        %393 = vmatmul.f32.gmra.mxu0 %v353
        %v394 = vpop.f32.mrf.mxu0
        %v395 = vadd.f32 0.0, %v394
        %396 = vmatmul.f32.gmra.mxu0 %v354
        %v397 = vpop.f32.mrf.mxu0
        %v398 = vadd.f32 0.0, %v397
        %399 = vmatmul.f32.gmra.mxu0 %v355
        %v400 = vpop.f32.mrf.mxu0
        %v401 = vadd.f32 0.0, %v400
        %402 = vmatmul.f32.gmra.mxu0 %v356
        %v403 = vpop.f32.mrf.mxu0
        %v404 = vadd.f32 0.0, %v403
        %405 = vdwg.mxu0
        %v406 = vadd.f32 %v347, %v392
        %v407 = vadd.f32 %v348, %v395
        %v408 = vadd.f32 %v349, %v398
        %v409 = vadd.f32 %v350, %v401
        %v410 = vadd.f32 %v351, %v404
        %v411 = vld [vmem:[%s180 + $0x9] sm:$0xff]
        %v412 = vld [vmem:[%s180 + $0x11] sm:$0xff]
        %v413 = vld [vmem:[%s180 + $0x19] sm:$0xff]
        %v414 = vld [vmem:[%s180 + $0x21] sm:$0xff]
        %v415 = vld [vmem:[%s180 + $0x29] sm:$0xff]
        %s416 = scalar_lea.vmem %s1, 512
        %v417 = vld [vmem:[%s416] sm:$0xff]
        %v418 = vld [vmem:[%s416 + $0x8] sm:$0xff]
        %v419 = vld [vmem:[%s416 + $0x10] sm:$0xff]
        %v420 = vld [vmem:[%s416 + $0x18] sm:$0xff]
        %v421 = vld [vmem:[%s416 + $0x20] sm:$0xff]
        %v422 = vld [vmem:[%s416 + $0x28] sm:$0xff]
        %v423 = vld [vmem:[%s416 + $0x30] sm:$0xff]
        %v424 = vld [vmem:[%s416 + $0x38] sm:$0xff]
        %v425 = vld [vmem:[%s416 + $0x40] sm:$0xff]
        %v426 = vld [vmem:[%s416 + $0x48] sm:$0xff]
        %v427 = vld [vmem:[%s416 + $0x50] sm:$0xff]
        %v428 = vld [vmem:[%s416 + $0x58] sm:$0xff]
        %v429 = vld [vmem:[%s416 + $0x60] sm:$0xff]
        %v430 = vld [vmem:[%s416 + $0x68] sm:$0xff]
        %v431 = vld [vmem:[%s416 + $0x70] sm:$0xff]
        %v432 = vld [vmem:[%s416 + $0x78] sm:$0xff]
        %433 = vmatpush.msra.mxu0 %v432
        %434 = vmatpush.msra.mxu0 %v431
        %435 = vmatpush.msra.mxu0 %v430
        %436 = vmatpush.msra.mxu0 %v429
        %437 = vmatpush.msra.mxu0 %v428
        %438 = vmatpush.msra.mxu0 %v427
        %439 = vmatpush.msra.mxu0 %v426
        %440 = vmatpush.msra.mxu0 %v425
        %441 = vmatpush.msra.mxu0 %v424
        %442 = vmatpush.msra.mxu0 %v423
        %443 = vmatpush.msra.mxu0 %v422
        %444 = vmatpush.msra.mxu0 %v421
        %445 = vmatpush.msra.mxu0 %v420
        %446 = vmatpush.msra.mxu0 %v419
        %447 = vmatpush.msra.mxu0 %v418
        %448 = vmatpush.msra.mxu0 %v417
        %449 = vmatmul.f32.gmra.mxu0 %v411
        %v450 = vpop.f32.mrf.mxu0
        %v451 = vadd.f32 0.0, %v450
        %452 = vmatmul.f32.gmra.mxu0 %v412
        %v453 = vpop.f32.mrf.mxu0
        %v454 = vadd.f32 0.0, %v453
        %455 = vmatmul.f32.gmra.mxu0 %v413
        %v456 = vpop.f32.mrf.mxu0
        %v457 = vadd.f32 0.0, %v456
        %458 = vmatmul.f32.gmra.mxu0 %v414
        %v459 = vpop.f32.mrf.mxu0
        %v460 = vadd.f32 0.0, %v459
        %461 = vmatmul.f32.gmra.mxu0 %v415
        %v462 = vpop.f32.mrf.mxu0
        %v463 = vadd.f32 0.0, %v462
        %464 = vdwg.mxu0
        %v465 = vadd.f32 %v406, %v451
        %v466 = vadd.f32 %v407, %v454
        %v467 = vadd.f32 %v408, %v457
        %v468 = vadd.f32 %v409, %v460
        %v469 = vadd.f32 %v410, %v463
        %v470 = vld [vmem:[%s180 + $0xa] sm:$0xff]
        %v471 = vld [vmem:[%s180 + $0x12] sm:$0xff]
        %v472 = vld [vmem:[%s180 + $0x1a] sm:$0xff]
        %v473 = vld [vmem:[%s180 + $0x22] sm:$0xff]
        %v474 = vld [vmem:[%s180 + $0x2a] sm:$0xff]
        %s475 = scalar_lea.vmem %s1, 640
        %v476 = vld [vmem:[%s475] sm:$0xff]
        %v477 = vld [vmem:[%s475 + $0x8] sm:$0xff]
        %v478 = vld [vmem:[%s475 + $0x10] sm:$0xff]
        %v479 = vld [vmem:[%s475 + $0x18] sm:$0xff]
        %v480 = vld [vmem:[%s475 + $0x20] sm:$0xff]
        %v481 = vld [vmem:[%s475 + $0x28] sm:$0xff]
        %v482 = vld [vmem:[%s475 + $0x30] sm:$0xff]
        %v483 = vld [vmem:[%s475 + $0x38] sm:$0xff]
        %v484 = vld [vmem:[%s475 + $0x40] sm:$0xff]
        %v485 = vld [vmem:[%s475 + $0x48] sm:$0xff]
        %v486 = vld [vmem:[%s475 + $0x50] sm:$0xff]
        %v487 = vld [vmem:[%s475 + $0x58] sm:$0xff]
        %v488 = vld [vmem:[%s475 + $0x60] sm:$0xff]
        %v489 = vld [vmem:[%s475 + $0x68] sm:$0xff]
        %v490 = vld [vmem:[%s475 + $0x70] sm:$0xff]
        %v491 = vld [vmem:[%s475 + $0x78] sm:$0xff]
        %492 = vmatpush.msra.mxu0 %v491
        %493 = vmatpush.msra.mxu0 %v490
        %494 = vmatpush.msra.mxu0 %v489
        %495 = vmatpush.msra.mxu0 %v488
        %496 = vmatpush.msra.mxu0 %v487
        %497 = vmatpush.msra.mxu0 %v486
        %498 = vmatpush.msra.mxu0 %v485
        %499 = vmatpush.msra.mxu0 %v484
        %500 = vmatpush.msra.mxu0 %v483
        %501 = vmatpush.msra.mxu0 %v482
        %502 = vmatpush.msra.mxu0 %v481
        %503 = vmatpush.msra.mxu0 %v480
        %504 = vmatpush.msra.mxu0 %v479
        %505 = vmatpush.msra.mxu0 %v478
        %506 = vmatpush.msra.mxu0 %v477
        %507 = vmatpush.msra.mxu0 %v476
        %508 = vmatmul.f32.gmra.mxu0 %v470
        %v509 = vpop.f32.mrf.mxu0
        %v510 = vadd.f32 0.0, %v509
        %511 = vmatmul.f32.gmra.mxu0 %v471
        %v512 = vpop.f32.mrf.mxu0
        %v513 = vadd.f32 0.0, %v512
        %514 = vmatmul.f32.gmra.mxu0 %v472
        %v515 = vpop.f32.mrf.mxu0
        %v516 = vadd.f32 0.0, %v515
        %517 = vmatmul.f32.gmra.mxu0 %v473
        %v518 = vpop.f32.mrf.mxu0
        %v519 = vadd.f32 0.0, %v518
        %520 = vmatmul.f32.gmra.mxu0 %v474
        %v521 = vpop.f32.mrf.mxu0
        %v522 = vadd.f32 0.0, %v521
        %523 = vdwg.mxu0
        %v524 = vadd.f32 %v465, %v510
        %v525 = vadd.f32 %v466, %v513
        %v526 = vadd.f32 %v467, %v516
        %v527 = vadd.f32 %v468, %v519
        %v528 = vadd.f32 %v469, %v522
        %v529 = vld [vmem:[%s180 + $0x10] sm:$0xff]
        %v530 = vld [vmem:[%s180 + $0x18] sm:$0xff]
        %v531 = vld [vmem:[%s180 + $0x20] sm:$0xff]
        %v532 = vld [vmem:[%s180 + $0x28] sm:$0xff]
        %v533 = vld [vmem:[%s180 + $0x30] sm:$0xff]
        %s534 = scalar_lea.vmem %s1, 768
        %v535 = vld [vmem:[%s534] sm:$0xff]
        %v536 = vld [vmem:[%s534 + $0x8] sm:$0xff]
        %v537 = vld [vmem:[%s534 + $0x10] sm:$0xff]
        %v538 = vld [vmem:[%s534 + $0x18] sm:$0xff]
        %v539 = vld [vmem:[%s534 + $0x20] sm:$0xff]
        %v540 = vld [vmem:[%s534 + $0x28] sm:$0xff]
        %v541 = vld [vmem:[%s534 + $0x30] sm:$0xff]
        %v542 = vld [vmem:[%s534 + $0x38] sm:$0xff]
        %v543 = vld [vmem:[%s534 + $0x40] sm:$0xff]
        %v544 = vld [vmem:[%s534 + $0x48] sm:$0xff]
        %v545 = vld [vmem:[%s534 + $0x50] sm:$0xff]
        %v546 = vld [vmem:[%s534 + $0x58] sm:$0xff]
        %v547 = vld [vmem:[%s534 + $0x60] sm:$0xff]
        %v548 = vld [vmem:[%s534 + $0x68] sm:$0xff]
        %v549 = vld [vmem:[%s534 + $0x70] sm:$0xff]
        %v550 = vld [vmem:[%s534 + $0x78] sm:$0xff]
        %551 = vmatpush.msra.mxu0 %v550
        %552 = vmatpush.msra.mxu0 %v549
        %553 = vmatpush.msra.mxu0 %v548
        %554 = vmatpush.msra.mxu0 %v547
        %555 = vmatpush.msra.mxu0 %v546
        %556 = vmatpush.msra.mxu0 %v545
        %557 = vmatpush.msra.mxu0 %v544
        %558 = vmatpush.msra.mxu0 %v543
        %559 = vmatpush.msra.mxu0 %v542
        %560 = vmatpush.msra.mxu0 %v541
        %561 = vmatpush.msra.mxu0 %v540
        %562 = vmatpush.msra.mxu0 %v539
        %563 = vmatpush.msra.mxu0 %v538
        %564 = vmatpush.msra.mxu0 %v537
        %565 = vmatpush.msra.mxu0 %v536
        %566 = vmatpush.msra.mxu0 %v535
        %567 = vmatmul.f32.gmra.mxu0 %v529
        %v568 = vpop.f32.mrf.mxu0
        %v569 = vadd.f32 0.0, %v568
        %570 = vmatmul.f32.gmra.mxu0 %v530
        %v571 = vpop.f32.mrf.mxu0
        %v572 = vadd.f32 0.0, %v571
        %573 = vmatmul.f32.gmra.mxu0 %v531
        %v574 = vpop.f32.mrf.mxu0
        %v575 = vadd.f32 0.0, %v574
        %576 = vmatmul.f32.gmra.mxu0 %v532
        %v577 = vpop.f32.mrf.mxu0
        %v578 = vadd.f32 0.0, %v577
        %579 = vmatmul.f32.gmra.mxu0 %v533
        %v580 = vpop.f32.mrf.mxu0
        %v581 = vadd.f32 0.0, %v580
        %582 = vdwg.mxu0
        %v583 = vadd.f32 %v524, %v569
        %v584 = vadd.f32 %v525, %v572
        %v585 = vadd.f32 %v526, %v575
        %v586 = vadd.f32 %v527, %v578
        %v587 = vadd.f32 %v528, %v581
        %v588 = vld [vmem:[%s180 + $0x11] sm:$0xff]
        %v589 = vld [vmem:[%s180 + $0x19] sm:$0xff]
        %v590 = vld [vmem:[%s180 + $0x21] sm:$0xff]
        %v591 = vld [vmem:[%s180 + $0x29] sm:$0xff]
        %v592 = vld [vmem:[%s180 + $0x31] sm:$0xff]
        %s593 = scalar_lea.vmem %s1, 896
        %v594 = vld [vmem:[%s593] sm:$0xff]
        %v595 = vld [vmem:[%s593 + $0x8] sm:$0xff]
        %v596 = vld [vmem:[%s593 + $0x10] sm:$0xff]
        %v597 = vld [vmem:[%s593 + $0x18] sm:$0xff]
        %v598 = vld [vmem:[%s593 + $0x20] sm:$0xff]
        %v599 = vld [vmem:[%s593 + $0x28] sm:$0xff]
        %v600 = vld [vmem:[%s593 + $0x30] sm:$0xff]
        %v601 = vld [vmem:[%s593 + $0x38] sm:$0xff]
        %v602 = vld [vmem:[%s593 + $0x40] sm:$0xff]
        %v603 = vld [vmem:[%s593 + $0x48] sm:$0xff]
        %v604 = vld [vmem:[%s593 + $0x50] sm:$0xff]
        %v605 = vld [vmem:[%s593 + $0x58] sm:$0xff]
        %v606 = vld [vmem:[%s593 + $0x60] sm:$0xff]
        %v607 = vld [vmem:[%s593 + $0x68] sm:$0xff]
        %v608 = vld [vmem:[%s593 + $0x70] sm:$0xff]
        %v609 = vld [vmem:[%s593 + $0x78] sm:$0xff]
        %610 = vmatpush.msra.mxu0 %v609
        %611 = vmatpush.msra.mxu0 %v608
        %612 = vmatpush.msra.mxu0 %v607
        %613 = vmatpush.msra.mxu0 %v606
        %614 = vmatpush.msra.mxu0 %v605
        %615 = vmatpush.msra.mxu0 %v604
        %616 = vmatpush.msra.mxu0 %v603
        %617 = vmatpush.msra.mxu0 %v602
        %618 = vmatpush.msra.mxu0 %v601
        %619 = vmatpush.msra.mxu0 %v600
        %620 = vmatpush.msra.mxu0 %v599
        %621 = vmatpush.msra.mxu0 %v598
        %622 = vmatpush.msra.mxu0 %v597
        %623 = vmatpush.msra.mxu0 %v596
        %624 = vmatpush.msra.mxu0 %v595
        %625 = vmatpush.msra.mxu0 %v594
        %626 = vmatmul.f32.gmra.mxu0 %v588
        %v627 = vpop.f32.mrf.mxu0
        %v628 = vadd.f32 0.0, %v627
        %629 = vmatmul.f32.gmra.mxu0 %v589
        %v630 = vpop.f32.mrf.mxu0
        %v631 = vadd.f32 0.0, %v630
        %632 = vmatmul.f32.gmra.mxu0 %v590
        %v633 = vpop.f32.mrf.mxu0
        %v634 = vadd.f32 0.0, %v633
        %635 = vmatmul.f32.gmra.mxu0 %v591
        %v636 = vpop.f32.mrf.mxu0
        %v637 = vadd.f32 0.0, %v636
        %638 = vmatmul.f32.gmra.mxu0 %v592
        %v639 = vpop.f32.mrf.mxu0
        %v640 = vadd.f32 0.0, %v639
        %641 = vdwg.mxu0
        %v642 = vadd.f32 %v583, %v628
        %v643 = vadd.f32 %v584, %v631
        %v644 = vadd.f32 %v585, %v634
        %v645 = vadd.f32 %v586, %v637
        %v646 = vadd.f32 %v587, %v640
        %v647 = vld [vmem:[%s180 + $0x12] sm:$0xff]
        %v648 = vld [vmem:[%s180 + $0x1a] sm:$0xff]
        %v649 = vld [vmem:[%s180 + $0x22] sm:$0xff]
        %v650 = vld [vmem:[%s180 + $0x2a] sm:$0xff]
        %v651 = vld [vmem:[%s180 + $0x32] sm:$0xff]
        %s652 = scalar_lea.vmem %s1, 1024
        %v653 = vld [vmem:[%s652] sm:$0xff]
        %v654 = vld [vmem:[%s652 + $0x8] sm:$0xff]
        %v655 = vld [vmem:[%s652 + $0x10] sm:$0xff]
        %v656 = vld [vmem:[%s652 + $0x18] sm:$0xff]
        %v657 = vld [vmem:[%s652 + $0x20] sm:$0xff]
        %v658 = vld [vmem:[%s652 + $0x28] sm:$0xff]
        %v659 = vld [vmem:[%s652 + $0x30] sm:$0xff]
        %v660 = vld [vmem:[%s652 + $0x38] sm:$0xff]
        %v661 = vld [vmem:[%s652 + $0x40] sm:$0xff]
        %v662 = vld [vmem:[%s652 + $0x48] sm:$0xff]
        %v663 = vld [vmem:[%s652 + $0x50] sm:$0xff]
        %v664 = vld [vmem:[%s652 + $0x58] sm:$0xff]
        %v665 = vld [vmem:[%s652 + $0x60] sm:$0xff]
        %v666 = vld [vmem:[%s652 + $0x68] sm:$0xff]
        %v667 = vld [vmem:[%s652 + $0x70] sm:$0xff]
        %v668 = vld [vmem:[%s652 + $0x78] sm:$0xff]
        %669 = vmatpush.msra.mxu0 %v668
        %670 = vmatpush.msra.mxu0 %v667
        %671 = vmatpush.msra.mxu0 %v666
        %672 = vmatpush.msra.mxu0 %v665
        %673 = vmatpush.msra.mxu0 %v664
        %674 = vmatpush.msra.mxu0 %v663
        %675 = vmatpush.msra.mxu0 %v662
        %676 = vmatpush.msra.mxu0 %v661
        %677 = vmatpush.msra.mxu0 %v660
        %678 = vmatpush.msra.mxu0 %v659
        %679 = vmatpush.msra.mxu0 %v658
        %680 = vmatpush.msra.mxu0 %v657
        %681 = vmatpush.msra.mxu0 %v656
        %682 = vmatpush.msra.mxu0 %v655
        %683 = vmatpush.msra.mxu0 %v654
        %684 = vmatpush.msra.mxu0 %v653
        %685 = vmatmul.f32.gmra.mxu0 %v647
        %v686 = vpop.f32.mrf.mxu0
        %v687 = vadd.f32 0.0, %v686
        %688 = vmatmul.f32.gmra.mxu0 %v648
        %v689 = vpop.f32.mrf.mxu0
        %v690 = vadd.f32 0.0, %v689
        %691 = vmatmul.f32.gmra.mxu0 %v649
        %v692 = vpop.f32.mrf.mxu0
        %v693 = vadd.f32 0.0, %v692
        %694 = vmatmul.f32.gmra.mxu0 %v650
        %v695 = vpop.f32.mrf.mxu0
        %v696 = vadd.f32 0.0, %v695
        %697 = vmatmul.f32.gmra.mxu0 %v651
        %v698 = vpop.f32.mrf.mxu0
        %v699 = vadd.f32 0.0, %v698
        %700 = vdwg.mxu0
        %v701 = vadd.f32 %v642, %v687
        %v702 = vadd.f32 %v643, %v690
        %v703 = vadd.f32 %v644, %v693
        %v704 = vadd.f32 %v645, %v696
        %v705 = vadd.f32 %v646, %v699
        %v706 = vld [vmem:[#allocation2] sm:$0x1]
        %v708 = vperm.slane %v706, 0
        %v710 = vadd.f32 %v701, %v708
        %v711 = vadd.f32 %v702, %v708
        %v712 = vadd.f32 %v703, %v708
        %v713 = vadd.f32 %v704, %v708
        %v714 = vadd.f32 %v705, %v708
        %v715 = vmax.f32 %v710, 0.0
        %v716 = vmax.f32 %v711, 0.0
        %v717 = vmax.f32 %v712, 0.0
        %v718 = vmax.f32 %v713, 0.0
        %v719 = vmax.f32 %v714, 0.0
        %720 = vst [vmem:[%s185] sm:$0xff] %v715
        %721 = vst [vmem:[%s185 + $0x8] sm:$0xff] %v716
        %722 = vst [vmem:[%s185 + $0x10] sm:$0xff] %v717
        %723 = vst [vmem:[%s185 + $0x18] sm:$0xff] %v718
        %724 = vst [vmem:[%s185 + $0x20] sm:$0xff] %v719
        %p725 = scmp.lt.s32.totalorder %s15, 1
        %s726 = scalar_select %p725, %s15, 1
        %s727 = smul.addr %s726, 5
        %s728 = smul.addr %s727, 8
        %s729 = scalar_lea.vmem %s3, %s728
        // Predicated region
        $region37: #{forward.4} parent=31 // pred_check
          %p730 = pneg %p101
        $region38: #{forward.4} parent=31 // pred_check_branch
          %732 = sbr.rel (%p730) target = $region40
        $region39: #{forward.4} parent=31 // pred_region
          _
        $region40: #{forward.4} parent=31 // pred_fallthru
          _
      $region32: #{forward.4} parent=5 // pred_fallthru
        _
      %p733 = scmp.le.s32.totalorder 2, %s10
      // Predicated region
      $region41: #{forward.4} parent=5 // pred_check
        %p734 = pneg %p733
      $region42: #{forward.4} parent=5 // pred_check_branch
        %736 = sbr.rel (%p734) target = $region44
      $region43: #{forward.4} parent=5 // pred_region
        %s737 = ssub.s32 %s10, 2
        // Predicated region
        $region45: #{forward.4} parent=43 // pred_check
          %p738 = pneg %p107
        $region46: #{forward.4} parent=43 // pred_check_branch
          %740 = sbr.rel (%p738) target = $region48
        $region47: #{forward.4} parent=43 // pred_region
          %p741 = scmp.lt.s32.totalorder %s16, 1
          %s742 = scalar_select %p741, %s16, 1
          %s743 = smul.addr %s742, 5
          %s744 = smul.addr %s743, 8
          %s745 = scalar_lea.vmem %s3, %s744
        $region48: #{forward.4} parent=43 // pred_fallthru
          _
      $region44: #{forward.4} parent=5 // pred_fallthru
        _
    $region6: #{forward.4} parent=1 // loop_footer
      %s14 = sadd.s32 1, %s10
    $region7: #{forward.4} parent=1 // loop_footer_branch
      %9 = sbr.rel target = $region3
    $region8: #{forward.4} parent=1 // loop_exit
      _
    %746 = vsyncpa [#allocation3], 1
    %s747 = scalar_lea.sflag [#allocation3], 1
    %748 = vsyncpa %s747, 1

// kernel: forward.3
$region0: #{forward.3}
  #allocation0 [shape = 'u32[]', space=smem, size = 0x4, offset = 0x4, fixed_abs, tag = 'smem constant byte address 0x4 - core index']
  #allocation1 [shape = 'u32[72,128]{1,0:T(1,128)}', space=vmem, size = 0x9000, scoped, tag = 'internal scratch']
  %s0 = inlined_call_operand.vmem [shape: f32[2,80,16], index: 0, kind: input, shape index: {}]
  %s1 = inlined_call_operand.hbm [shape: f32[4,16,128], index: 1, kind: input, shape index: {}]
  %s2 = inlined_call_operand.hbm [shape: f32[1,128], index: 2, kind: input, shape index: {}]
  %s3 = inlined_call_operand.vmem [shape: f32[2,64,128], index: 3, kind: output, shape index: {}]
  %s4 = sld [smem:[#allocation0]]
  $region53: #{forward.3} parent=0
    _
  %s6 = ssub.s32 1, %s4
  %s7 = scalar_select 0, %s6, %s4
  $region1: #{forward.3} parent=0
    #allocation2 [shape = 'u8[32768]{0}', space=vmem, size = 0x8000, scoped, tag = 'input window, operand 1, single buffered']
    #allocation3 [shape = 's32[2]{0}', space=sflag, size = 0x8, scoped, tag = 'scoped memory for forward.3']
    #allocation4 [shape = 'u8[512]{0}', space=vmem, size = 0x400, scoped, tag = 'input window, operand 2, single buffered']
    #allocation5 [shape = 's32[1]{0}', space=sflag, size = 0x4, scoped, tag = 'scoped memory for forward.3']
    %8 = vsyncpa [#allocation3], 0
    %9 = vsyncpa [#allocation5], 0
    loop: start=0, step=1, limit=4
    $region2: #{forward.3} parent=1 // loop_pre_header
      _
    $region3: #{forward.3} parent=1 // loop_header
      %s11 = sphi 0, %s15
      %p12 = scmp.ge.s32.totalorder %s11, 4
      %s21 = sphi 0, %s23
      %s24 = sphi 0, %s21
      %s25 = sphi 0, %s24
      %s41 = sphi 0, %s25
      %s45 = sphi 0, %s45
      %s47 = sphi 0, %s45
      %s48 = sphi 0, %s47
      %s62 = sphi 0, %s48
      %s66 = sphi 0, %s66
      %s68 = sphi 0, %s66
      %s69 = sphi 0, %s68
      %s83 = sphi 0, %s69
      %s89 = sphi 0, %s91
      %s92 = sphi 0, %s89
      %s93 = sphi 0, %s92
      %s109 = sphi 0, %s93
    $region4: #{forward.3} parent=1 // loop_header_branch
      %14 = sbr.rel (%p12) target = $region8
    $region5: #{forward.3} parent=1 // loop_body
      %s16 = ssub.s32 %s11, 1
      %s17 = ssub.s32 %s11, 2
      %s18 = sadd.s32 %s11, 1
      %s19 = ssub.s32 %s11, %s18
      %p20 = scmp.eq.s32.totalorder %s19, 0
      %s22 = sadd.s32 %s21, 1
      %s23 = scalar_select %p20, %s21, %s22
      %p26 = pneg %p20
      %p27 = scmp.eq.s32.totalorder %s11, 1
      %p28 = por %p26, %p27
      %p29 = scmp.ne.s32.totalorder %s21, %s24
      %p30 = scmp.eq.s32.totalorder %s11, 0
      %p31 = por %p29, %p30
      %p32 = scmp.ne.s32.totalorder %s21, %s24
      %p33 = scmp.eq.s32.totalorder %s16, 1
      %p34 = por %p32, %p33
      %p35 = scmp.ne.s32.totalorder %s24, %s25
      %p36 = scmp.eq.s32.totalorder %s16, 0
      %p37 = por %p35, %p36
      %p38 = scmp.ne.s32.totalorder %s24, %s25
      %p39 = scmp.eq.s32.totalorder %s17, 1
      %p40 = por %p38, %p39
      %p42 = scmp.ne.s32.totalorder %s25, %s41
      %p43 = scmp.eq.s32.totalorder %s17, 0
      %p44 = por %p42, %p43
      %s46 = sadd.s32 %s45, 1
      %p49 = scmp.eq.s32.totalorder %s11, 1
      %p50 = scmp.ne.s32.totalorder %s45, %s47
      %p51 = scmp.eq.s32.totalorder %s11, 0
      %p52 = por %p50, %p51
      %p53 = scmp.ne.s32.totalorder %s45, %s47
      %p54 = scmp.eq.s32.totalorder %s16, 1
      %p55 = por %p53, %p54
      %p56 = scmp.ne.s32.totalorder %s47, %s48
      %p57 = scmp.eq.s32.totalorder %s16, 0
      %p58 = por %p56, %p57
      %p59 = scmp.ne.s32.totalorder %s47, %s48
      %p60 = scmp.eq.s32.totalorder %s17, 1
      %p61 = por %p59, %p60
      %p63 = scmp.ne.s32.totalorder %s48, %s62
      %p64 = scmp.eq.s32.totalorder %s17, 0
      %p65 = por %p63, %p64
      %s67 = sadd.s32 %s66, 1
      %p70 = scmp.eq.s32.totalorder %s11, 1
      %p71 = scmp.ne.s32.totalorder %s66, %s68
      %p72 = scmp.eq.s32.totalorder %s11, 0
      %p73 = por %p71, %p72
      %p74 = scmp.ne.s32.totalorder %s66, %s68
      %p75 = scmp.eq.s32.totalorder %s16, 1
      %p76 = por %p74, %p75
      %p77 = scmp.ne.s32.totalorder %s68, %s69
      %p78 = scmp.eq.s32.totalorder %s16, 0
      %p79 = por %p77, %p78
      %p80 = scmp.ne.s32.totalorder %s68, %s69
      %p81 = scmp.eq.s32.totalorder %s17, 1
      %p82 = por %p80, %p81
      %p84 = scmp.ne.s32.totalorder %s69, %s83
      %p85 = scmp.eq.s32.totalorder %s17, 0
      %p86 = por %p84, %p85
      %s87 = ssub.s32 %s11, %s18
      %p88 = scmp.eq.s32.totalorder %s87, 0
      %s90 = sadd.s32 %s89, 1
      %s91 = scalar_select %p88, %s89, %s90
      %p94 = pneg %p88
      %p95 = scmp.eq.s32.totalorder %s11, 1
      %p96 = por %p94, %p95
      %p97 = scmp.ne.s32.totalorder %s89, %s92
      %p98 = scmp.eq.s32.totalorder %s11, 0
      %p99 = por %p97, %p98
      %p100 = scmp.ne.s32.totalorder %s89, %s92
      %p101 = scmp.eq.s32.totalorder %s16, 1
      %p102 = por %p100, %p101
      %p103 = scmp.ne.s32.totalorder %s92, %s93
      %p104 = scmp.eq.s32.totalorder %s16, 0
      %p105 = por %p103, %p104
      %p106 = scmp.ne.s32.totalorder %s92, %s93
      %p107 = scmp.eq.s32.totalorder %s17, 1
      %p108 = por %p106, %p107
      %p110 = scmp.ne.s32.totalorder %s93, %s109
      %p111 = scmp.eq.s32.totalorder %s17, 0
      %p112 = por %p110, %p111
      %p113 = scmp.le.s32.totalorder 1, %s11
      %p114 = scmp.lt.s32.totalorder %s11, 3
      %p115 = pnand %p113, %p114
      %p116 = pneg %p115
      // Predicated region
      $region9: #{forward.3} parent=5 // pred_check
        _
      $region10: #{forward.3} parent=5 // pred_check_branch
        %118 = sbr.rel (%p115) target = $region12
      $region11: #{forward.3} parent=5 // pred_region
        %s119 = ssub.s32 %s11, 1
        // Predicated region
        $region13: #{forward.3} parent=11 // pred_check
          %p120 = pneg %p58
        $region14: #{forward.3} parent=11 // pred_check_branch
          %122 = sbr.rel (%p120) target = $region16
        $region15: #{forward.3} parent=11 // pred_region
          %124 = vsyncadd [#allocation3], 0
          %s125 = sshll.u32 %s1, 4
          %s126 = int_to_ptr.hbm [resolvable:$true] %s125
          %s127 = sshll.u32 [#allocation2], 4
          %s128 = int_to_ptr.vmem [resolvable:$true] %s127
          %133 = dma.hbm_to_vmem [thread:$0]  %s126, 1024, %s128, [#allocation3], 128, 128, 8
        $region16: #{forward.3} parent=11 // pred_fallthru
          _
        // Predicated region
        $region17: #{forward.3} parent=11 // pred_check
          %p134 = pneg %p79
        $region18: #{forward.3} parent=11 // pred_check_branch
          %136 = sbr.rel (%p134) target = $region20
        $region19: #{forward.3} parent=11 // pred_region
          %138 = vsyncadd [#allocation5], 0
          %s140 = sshll.u32 %s2, 4
          %s141 = int_to_ptr.hbm [resolvable:$true] %s140
          %s142 = sshll.u32 [#allocation4], 4
          %s143 = int_to_ptr.vmem [resolvable:$true] %s142
          %145 = dma.hbm_to_vmem [thread:$0]  %s141, 16, %s143, [#allocation5]
        $region20: #{forward.3} parent=11 // pred_fallthru
          _
      $region12: #{forward.3} parent=5 // pred_fallthru
        _
      %p146 = scmp.lt.s32.totalorder %s11, 2
      // Predicated region
      $region21: #{forward.3} parent=5 // pred_check
        %p147 = pneg %p146
      $region22: #{forward.3} parent=5 // pred_check_branch
        %149 = sbr.rel (%p147) target = $region24
      $region23: #{forward.3} parent=5 // pred_region
        // Predicated region
        $region25: #{forward.3} parent=23 // pred_check
          %p150 = pneg %p31
        $region26: #{forward.3} parent=23 // pred_check_branch
          %152 = sbr.rel (%p150) target = $region28
        $region27: #{forward.3} parent=23 // pred_region
          %p153 = scmp.lt.s32.totalorder %s11, 1
          %s154 = scalar_select %p153, %s11, 1
          %s155 = smul.addr %s154, 10
          %s156 = smul.addr %s155, 8
          %s157 = scalar_lea.vmem %s0, %s156
        $region28: #{forward.3} parent=23 // pred_fallthru
          _
      $region24: #{forward.3} parent=5 // pred_fallthru
        _
      %p158 = scmp.le.s32.totalorder 1, %s11
      %p159 = scmp.lt.s32.totalorder %s11, 3
      %p160 = pnand %p158, %p159
      %p161 = pneg %p160
      // Predicated region
      $region29: #{forward.3} parent=5 // pred_check
        _
      $region30: #{forward.3} parent=5 // pred_check_branch
        %163 = sbr.rel (%p160) target = $region32
      $region31: #{forward.3} parent=5 // pred_region
        %s164 = ssub.s32 %s11, 1
        // Predicated region
        $region33: #{forward.3} parent=31 // pred_check
          %p165 = pneg %p58
        $region34: #{forward.3} parent=31 // pred_check_branch
          %167 = sbr.rel (%p165) target = $region36
        $region35: #{forward.3} parent=31 // pred_region
          %169 = dma.done [#allocation3], 1024
        $region36: #{forward.3} parent=31 // pred_fallthru
          _
        // Predicated region
        $region37: #{forward.3} parent=31 // pred_check
          %p170 = pneg %p79
        $region38: #{forward.3} parent=31 // pred_check_branch
          %172 = sbr.rel (%p170) target = $region40
        $region39: #{forward.3} parent=31 // pred_region
          %174 = dma.done [#allocation5], 16
        $region40: #{forward.3} parent=31 // pred_fallthru
          _
        %p175 = scmp.lt.s32.totalorder %s16, 1
        %s176 = scalar_select %p175, %s16, 1
        %s177 = smul.addr %s176, 10
        %s178 = smul.addr %s177, 8
        %s179 = scalar_lea.vmem %s0, %s178
        %p180 = pneg %p37
        %p181 = pneg %p34
        %p182 = pneg %p58
        %p183 = pneg %p55
        %p184 = pneg %p79
        %p185 = pneg %p76
        %p186 = pneg %p105
        %p187 = pneg %p102
        %p188 = scmp.lt.s32.totalorder %s16, 1
        %s189 = scalar_select %p188, %s16, 1
        %s190 = smul.addr %s189, 8
        %s191 = smul.addr %s190, 8
        %s192 = scalar_lea.vmem %s3, %s191
        %p193 = scmp.lt.s32.totalorder %s16, 1
        %s194 = scalar_select %p193, %s16, 1
        %s195 = smul.addr %s194, 10
        %s196 = smul.addr %s195, 8
        %s197 = scalar_lea.vmem %s0, %s196
        %p198 = scmp.lt.s32.totalorder %s16, 1
        %s199 = scalar_select %p198, %s16, 1
        %s200 = smul.addr %s199, 8
        %s201 = smul.addr %s200, 8
        %s202 = scalar_lea.vmem %s3, %s201
        %v203 = vld [vmem:[%s197] sm:$0xff]
        %v204 = vld [vmem:[%s197 + $0x8] sm:$0xff]
        %v205 = vld [vmem:[%s197 + $0x10] sm:$0xff]
        %v206 = vld [vmem:[%s197 + $0x18] sm:$0xff]
        %v207 = vld [vmem:[%s197 + $0x20] sm:$0xff]
        %v208 = vld [vmem:[%s197 + $0x28] sm:$0xff]
        %v209 = vld [vmem:[%s197 + $0x30] sm:$0xff]
        %v210 = vld [vmem:[%s197 + $0x38] sm:$0xff]
        %v211 = vld [vmem:[#allocation2] sm:$0xff]
        %v212 = vld [vmem:[#allocation2 + $0x8] sm:$0xff]
        %v213 = vld [vmem:[%s197 + $0x1] sm:$0xff]
        %v214 = vld [vmem:[%s197 + $0x9] sm:$0xff]
        %v215 = vld [vmem:[%s197 + $0x11] sm:$0xff]
        %v216 = vld [vmem:[%s197 + $0x19] sm:$0xff]
        %v217 = vld [vmem:[%s197 + $0x21] sm:$0xff]
        %v218 = vld [vmem:[%s197 + $0x29] sm:$0xff]
        %v219 = vld [vmem:[%s197 + $0x31] sm:$0xff]
        %v220 = vld [vmem:[%s197 + $0x39] sm:$0xff]
        %s221 = scalar_lea.vmem [#allocation2], 16
        %v222 = vld [vmem:[%s221] sm:$0xff]
        %v223 = vld [vmem:[%s221 + $0x8] sm:$0xff]
        %vm224 = vcmask 130048
        %v226 = vsel %vm224, %v213, 0
        %v229 = vsel %vm224, %v214, 0
        %v232 = vsel %vm224, %v215, 0
        %v235 = vsel %vm224, %v216, 0
        %v238 = vsel %vm224, %v217, 0
        %v241 = vsel %vm224, %v218, 0
        %v244 = vsel %vm224, %v219, 0
        %v247 = vsel %vm224, %v220, 0
        %249 = vmatpush.msra.mxu0 0.0
        %250 = vmatpush.msra.mxu0 0.0
        %251 = vmatpush.msra.mxu0 0.0
        %252 = vmatpush.msra.mxu0 0.0
        %253 = vmatpush.msra.mxu0 0.0
        %254 = vmatpush.msra.mxu0 0.0
        %255 = vmatpush.msra.mxu0 0.0
        %256 = vmatpush.msra.mxu0 0.0
        %257 = vmatpush.msra.mxu0 0.0
        %258 = vmatpush.msra.mxu0 0.0
        %259 = vmatpush.msra.mxu0 0.0
        %260 = vmatpush.msra.mxu0 0.0
        %261 = vmatpush.msra.mxu0 0.0
        %262 = vmatpush.msra.mxu0 0.0
        %263 = vmatpush.msra.mxu0 %v223
        %264 = vmatpush.msra.mxu0 %v222
        %265 = vmatmul.f32.gmra.mxu0 %v226
        %v266 = vpop.f32.mrf.mxu0
        %v267 = vadd.f32 0.0, %v266
        %268 = vmatmul.f32.gmra.mxu0 %v229
        %v269 = vpop.f32.mrf.mxu0
        %v270 = vadd.f32 0.0, %v269
        %271 = vmatmul.f32.gmra.mxu0 %v232
        %v272 = vpop.f32.mrf.mxu0
        %v273 = vadd.f32 0.0, %v272
        %274 = vmatmul.f32.gmra.mxu0 %v235
        %v275 = vpop.f32.mrf.mxu0
        %v276 = vadd.f32 0.0, %v275
        %277 = vmatmul.f32.gmra.mxu0 %v238
        %v278 = vpop.f32.mrf.mxu0
        %v279 = vadd.f32 0.0, %v278
        %280 = vmatmul.f32.gmra.mxu0 %v241
        %v281 = vpop.f32.mrf.mxu0
        %v282 = vadd.f32 0.0, %v281
        %283 = vmatmul.f32.gmra.mxu0 %v244
        %v284 = vpop.f32.mrf.mxu0
        %v285 = vadd.f32 0.0, %v284
        %286 = vmatmul.f32.gmra.mxu0 %v247
        %v287 = vpop.f32.mrf.mxu0
        %v288 = vadd.f32 0.0, %v287
        %289 = vdwg.mxu0
        %v291 = vsel %vm224, %v203, 0
        %v294 = vsel %vm224, %v204, 0
        %v297 = vsel %vm224, %v205, 0
        %v300 = vsel %vm224, %v206, 0
        %v303 = vsel %vm224, %v207, 0
        %v306 = vsel %vm224, %v208, 0
        %v309 = vsel %vm224, %v209, 0
        %v312 = vsel %vm224, %v210, 0
        %314 = vmatpush.msra.mxu0 0.0
        %315 = vmatpush.msra.mxu0 0.0
        %316 = vmatpush.msra.mxu0 0.0
        %317 = vmatpush.msra.mxu0 0.0
        %318 = vmatpush.msra.mxu0 0.0
        %319 = vmatpush.msra.mxu0 0.0
        %320 = vmatpush.msra.mxu0 0.0
        %321 = vmatpush.msra.mxu0 0.0
        %322 = vmatpush.msra.mxu0 0.0
        %323 = vmatpush.msra.mxu0 0.0
        %324 = vmatpush.msra.mxu0 0.0
        %325 = vmatpush.msra.mxu0 0.0
        %326 = vmatpush.msra.mxu0 0.0
        %327 = vmatpush.msra.mxu0 0.0
        %328 = vmatpush.msra.mxu0 %v212
        %329 = vmatpush.msra.mxu0 %v211
        %330 = vmatmul.f32.gmra.mxu0 %v291
        %v331 = vpop.f32.mrf.mxu0
        %v332 = vadd.f32 %v267, %v331
        %333 = vmatmul.f32.gmra.mxu0 %v294
        %v334 = vpop.f32.mrf.mxu0
        %v335 = vadd.f32 %v270, %v334
        %336 = vmatmul.f32.gmra.mxu0 %v297
        %v337 = vpop.f32.mrf.mxu0
        %v338 = vadd.f32 %v273, %v337
        %339 = vmatmul.f32.gmra.mxu0 %v300
        %v340 = vpop.f32.mrf.mxu0
        %v341 = vadd.f32 %v276, %v340
        %342 = vmatmul.f32.gmra.mxu0 %v303
        %v343 = vpop.f32.mrf.mxu0
        %v344 = vadd.f32 %v279, %v343
        %345 = vmatmul.f32.gmra.mxu0 %v306
        %v346 = vpop.f32.mrf.mxu0
        %v347 = vadd.f32 %v282, %v346
        %348 = vmatmul.f32.gmra.mxu0 %v309
        %v349 = vpop.f32.mrf.mxu0
        %v350 = vadd.f32 %v285, %v349
        %351 = vmatmul.f32.gmra.mxu0 %v312
        %v352 = vpop.f32.mrf.mxu0
        %v353 = vadd.f32 %v288, %v352
        %354 = vdwg.mxu0
        %v355 = vld [vmem:[%s197 + $0x8] sm:$0xff]
        %v356 = vld [vmem:[%s197 + $0x10] sm:$0xff]
        %v357 = vld [vmem:[%s197 + $0x18] sm:$0xff]
        %v358 = vld [vmem:[%s197 + $0x20] sm:$0xff]
        %v359 = vld [vmem:[%s197 + $0x28] sm:$0xff]
        %v360 = vld [vmem:[%s197 + $0x30] sm:$0xff]
        %v361 = vld [vmem:[%s197 + $0x38] sm:$0xff]
        %v362 = vld [vmem:[%s197 + $0x40] sm:$0xff]
        %s363 = scalar_lea.vmem [#allocation2], 32
        %v364 = vld [vmem:[%s363] sm:$0xff]
        %v365 = vld [vmem:[%s363 + $0x8] sm:$0xff]
        %v367 = vsel %vm224, %v355, 0
        %v370 = vsel %vm224, %v356, 0
        %v373 = vsel %vm224, %v357, 0
        %v376 = vsel %vm224, %v358, 0
        %v379 = vsel %vm224, %v359, 0
        %v382 = vsel %vm224, %v360, 0
        %v385 = vsel %vm224, %v361, 0
        %v388 = vsel %vm224, %v362, 0
        %390 = vmatpush.msra.mxu0 0.0
        %391 = vmatpush.msra.mxu0 0.0
        %392 = vmatpush.msra.mxu0 0.0
        %393 = vmatpush.msra.mxu0 0.0
        %394 = vmatpush.msra.mxu0 0.0
        %395 = vmatpush.msra.mxu0 0.0
        %396 = vmatpush.msra.mxu0 0.0
        %397 = vmatpush.msra.mxu0 0.0
        %398 = vmatpush.msra.mxu0 0.0
        %399 = vmatpush.msra.mxu0 0.0
        %400 = vmatpush.msra.mxu0 0.0
        %401 = vmatpush.msra.mxu0 0.0
        %402 = vmatpush.msra.mxu0 0.0
        %403 = vmatpush.msra.mxu0 0.0
        %404 = vmatpush.msra.mxu0 %v365
        %405 = vmatpush.msra.mxu0 %v364
        %406 = vmatmul.f32.gmra.mxu0 %v367
        %v407 = vpop.f32.mrf.mxu0
        %v408 = vadd.f32 0.0, %v407
        %409 = vmatmul.f32.gmra.mxu0 %v370
        %v410 = vpop.f32.mrf.mxu0
        %v411 = vadd.f32 0.0, %v410
        %412 = vmatmul.f32.gmra.mxu0 %v373
        %v413 = vpop.f32.mrf.mxu0
        %v414 = vadd.f32 0.0, %v413
        %415 = vmatmul.f32.gmra.mxu0 %v376
        %v416 = vpop.f32.mrf.mxu0
        %v417 = vadd.f32 0.0, %v416
        %418 = vmatmul.f32.gmra.mxu0 %v379
        %v419 = vpop.f32.mrf.mxu0
        %v420 = vadd.f32 0.0, %v419
        %421 = vmatmul.f32.gmra.mxu0 %v382
        %v422 = vpop.f32.mrf.mxu0
        %v423 = vadd.f32 0.0, %v422
        %424 = vmatmul.f32.gmra.mxu0 %v385
        %v425 = vpop.f32.mrf.mxu0
        %v426 = vadd.f32 0.0, %v425
        %427 = vmatmul.f32.gmra.mxu0 %v388
        %v428 = vpop.f32.mrf.mxu0
        %v429 = vadd.f32 0.0, %v428
        %430 = vdwg.mxu0
        %v431 = vadd.f32 %v332, %v408
        %v432 = vadd.f32 %v335, %v411
        %v433 = vadd.f32 %v338, %v414
        %v434 = vadd.f32 %v341, %v417
        %v435 = vadd.f32 %v344, %v420
        %v436 = vadd.f32 %v347, %v423
        %v437 = vadd.f32 %v350, %v426
        %v438 = vadd.f32 %v353, %v429
        %v439 = vld [vmem:[%s197 + $0x9] sm:$0xff]
        %v440 = vld [vmem:[%s197 + $0x11] sm:$0xff]
        %v441 = vld [vmem:[%s197 + $0x19] sm:$0xff]
        %v442 = vld [vmem:[%s197 + $0x21] sm:$0xff]
        %v443 = vld [vmem:[%s197 + $0x29] sm:$0xff]
        %v444 = vld [vmem:[%s197 + $0x31] sm:$0xff]
        %v445 = vld [vmem:[%s197 + $0x39] sm:$0xff]
        %v446 = vld [vmem:[%s197 + $0x41] sm:$0xff]
        %s447 = scalar_lea.vmem [#allocation2], 48
        %v448 = vld [vmem:[%s447] sm:$0xff]
        %v449 = vld [vmem:[%s447 + $0x8] sm:$0xff]
        %v451 = vsel %vm224, %v439, 0
        %v454 = vsel %vm224, %v440, 0
        %v457 = vsel %vm224, %v441, 0
        %v460 = vsel %vm224, %v442, 0
        %v463 = vsel %vm224, %v443, 0
        %v466 = vsel %vm224, %v444, 0
        %v469 = vsel %vm224, %v445, 0
        %v472 = vsel %vm224, %v446, 0
        %474 = vmatpush.msra.mxu0 0.0
        %475 = vmatpush.msra.mxu0 0.0
        %476 = vmatpush.msra.mxu0 0.0
        %477 = vmatpush.msra.mxu0 0.0
        %478 = vmatpush.msra.mxu0 0.0
        %479 = vmatpush.msra.mxu0 0.0
        %480 = vmatpush.msra.mxu0 0.0
        %481 = vmatpush.msra.mxu0 0.0
        %482 = vmatpush.msra.mxu0 0.0
        %483 = vmatpush.msra.mxu0 0.0
        %484 = vmatpush.msra.mxu0 0.0
        %485 = vmatpush.msra.mxu0 0.0
        %486 = vmatpush.msra.mxu0 0.0
        %487 = vmatpush.msra.mxu0 0.0
        %488 = vmatpush.msra.mxu0 %v449
        %489 = vmatpush.msra.mxu0 %v448
        %490 = vmatmul.f32.gmra.mxu0 %v451
        %v491 = vpop.f32.mrf.mxu0
        %v492 = vadd.f32 0.0, %v491
        %493 = vmatmul.f32.gmra.mxu0 %v454
        %v494 = vpop.f32.mrf.mxu0
        %v495 = vadd.f32 0.0, %v494
        %496 = vmatmul.f32.gmra.mxu0 %v457
        %v497 = vpop.f32.mrf.mxu0
        %v498 = vadd.f32 0.0, %v497
        %499 = vmatmul.f32.gmra.mxu0 %v460
        %v500 = vpop.f32.mrf.mxu0
        %v501 = vadd.f32 0.0, %v500
        %502 = vmatmul.f32.gmra.mxu0 %v463
        %v503 = vpop.f32.mrf.mxu0
        %v504 = vadd.f32 0.0, %v503
        %505 = vmatmul.f32.gmra.mxu0 %v466
        %v506 = vpop.f32.mrf.mxu0
        %v507 = vadd.f32 0.0, %v506
        %508 = vmatmul.f32.gmra.mxu0 %v469
        %v509 = vpop.f32.mrf.mxu0
        %v510 = vadd.f32 0.0, %v509
        %511 = vmatmul.f32.gmra.mxu0 %v472
        %v512 = vpop.f32.mrf.mxu0
        %v513 = vadd.f32 0.0, %v512
        %514 = vdwg.mxu0
        %v515 = vadd.f32 %v431, %v492
        %v516 = vadd.f32 %v432, %v495
        %v517 = vadd.f32 %v433, %v498
        %v518 = vadd.f32 %v434, %v501
        %v519 = vadd.f32 %v435, %v504
        %v520 = vadd.f32 %v436, %v507
        %v521 = vadd.f32 %v437, %v510
        %v522 = vadd.f32 %v438, %v513
        %v523 = vld [vmem:[#allocation4] sm:$0x1]
        %v525 = vperm.slane %v523, 0
        %v527 = vadd.f32 %v515, %v525
        %v528 = vadd.f32 %v516, %v525
        %v529 = vadd.f32 %v517, %v525
        %v530 = vadd.f32 %v518, %v525
        %v531 = vadd.f32 %v519, %v525
        %v532 = vadd.f32 %v520, %v525
        %v533 = vadd.f32 %v521, %v525
        %v534 = vadd.f32 %v522, %v525
        %v535 = vmax.f32 %v527, 0.0
        %v536 = vmax.f32 %v528, 0.0
        %v537 = vmax.f32 %v529, 0.0
        %v538 = vmax.f32 %v530, 0.0
        %v539 = vmax.f32 %v531, 0.0
        %v540 = vmax.f32 %v532, 0.0
        %v541 = vmax.f32 %v533, 0.0
        %v542 = vmax.f32 %v534, 0.0
        %543 = vst [vmem:[%s202] sm:$0xff] %v535
        %544 = vst [vmem:[%s202 + $0x8] sm:$0xff] %v536
        %545 = vst [vmem:[%s202 + $0x10] sm:$0xff] %v537
        %546 = vst [vmem:[%s202 + $0x18] sm:$0xff] %v538
        %547 = vst [vmem:[%s202 + $0x20] sm:$0xff] %v539
        %548 = vst [vmem:[%s202 + $0x28] sm:$0xff] %v540
        %549 = vst [vmem:[%s202 + $0x30] sm:$0xff] %v541
        %550 = vst [vmem:[%s202 + $0x38] sm:$0xff] %v542
        %p551 = scmp.lt.s32.totalorder %s16, 1
        %s552 = scalar_select %p551, %s16, 1
        %s553 = smul.addr %s552, 8
        %s554 = smul.addr %s553, 8
        %s555 = scalar_lea.vmem %s3, %s554
        // Predicated region
        $region41: #{forward.3} parent=31 // pred_check
          %p556 = pneg %p102
        $region42: #{forward.3} parent=31 // pred_check_branch
          %558 = sbr.rel (%p556) target = $region44
        $region43: #{forward.3} parent=31 // pred_region
          _
        $region44: #{forward.3} parent=31 // pred_fallthru
          _
      $region32: #{forward.3} parent=5 // pred_fallthru
        _
      %p559 = scmp.le.s32.totalorder 2, %s11
      // Predicated region
      $region45: #{forward.3} parent=5 // pred_check
        %p560 = pneg %p559
      $region46: #{forward.3} parent=5 // pred_check_branch
        %562 = sbr.rel (%p560) target = $region48
      $region47: #{forward.3} parent=5 // pred_region
        %s563 = ssub.s32 %s11, 2
        // Predicated region
        $region49: #{forward.3} parent=47 // pred_check
          %p564 = pneg %p108
        $region50: #{forward.3} parent=47 // pred_check_branch
          %566 = sbr.rel (%p564) target = $region52
        $region51: #{forward.3} parent=47 // pred_region
          %p567 = scmp.lt.s32.totalorder %s17, 1
          %s568 = scalar_select %p567, %s17, 1
          %s569 = smul.addr %s568, 8
          %s570 = smul.addr %s569, 8
          %s571 = scalar_lea.vmem %s3, %s570
        $region52: #{forward.3} parent=47 // pred_fallthru
          _
      $region48: #{forward.3} parent=5 // pred_fallthru
        _
    $region6: #{forward.3} parent=1 // loop_footer
      %s15 = sadd.s32 1, %s11
    $region7: #{forward.3} parent=1 // loop_footer_branch
      %10 = sbr.rel target = $region3
    $region8: #{forward.3} parent=1 // loop_exit
      _
    %572 = vsyncpa [#allocation3], 1
    %s573 = scalar_lea.sflag [#allocation3], 1
    %574 = vsyncpa %s573, 1
    %575 = vsyncpa [#allocation5], 1

// kernel: forward.5
$region0: #{forward.5}
  #allocation0 [shape = 'u32[]', space=smem, size = 0x4, offset = 0x4, fixed_abs, tag = 'smem constant byte address 0x4 - core index']
  #allocation1 [shape = 'u32[72,128]{1,0:T(1,128)}', space=vmem, size = 0x9000, scoped, tag = 'internal scratch']
  %s0 = inlined_call_operand.vmem [shape: f32[2,3200], index: 0, kind: input, shape index: {}]
  %s1 = inlined_call_operand.vmem [shape: f32[2,6], index: 1, kind: input, shape index: {}]
  %s2 = inlined_call_operand.vmem [shape: f32[3200,32], index: 2, kind: input, shape index: {}]
  %s3 = inlined_call_operand.vmem [shape: f32[1,32], index: 3, kind: input, shape index: {}]
  %s4 = inlined_call_operand.vmem [shape: f32[1,32], index: 4, kind: input, shape index: {}]
  %s5 = inlined_call_operand.vmem [shape: f32[1,32], index: 5, kind: input, shape index: {}]
  %s6 = inlined_call_operand.vmem [shape: f32[32,64], index: 6, kind: input, shape index: {}]
  %s7 = inlined_call_operand.vmem [shape: f32[6,64], index: 7, kind: input, shape index: {}]
  %s8 = inlined_call_operand.vmem [shape: f32[1,64], index: 8, kind: input, shape index: {}]
  %s9 = inlined_call_operand.vmem [shape: f32[64,64], index: 9, kind: input, shape index: {}]
  %s10 = inlined_call_operand.vmem [shape: f32[1,64], index: 10, kind: input, shape index: {}]
  %s11 = inlined_call_operand.vmem [shape: f32[64,128], index: 11, kind: input, shape index: {}]
  %s12 = inlined_call_operand.vmem [shape: f32[1,128], index: 12, kind: input, shape index: {}]
  %s13 = inlined_call_operand.vmem [shape: f32[2,128], index: 13, kind: output, shape index: {}]
  %s14 = sld [smem:[#allocation0]]
  $region62: #{forward.5} parent=0
    _
  %s16 = ssub.s32 1, %s14
  %s17 = scalar_select 0, %s16, %s14
  // Predicated region
  $region2: #{forward.5} parent=0 // pred_check
    _
  $region3: #{forward.5} parent=0 // pred_check_branch
    %19 = sbr.rel (0) target = $region5
  $region4: #{forward.5} parent=0 // pred_region
    _
  $region5: #{forward.5} parent=0 // pred_fallthru
    _
  // Predicated region
  $region6: #{forward.5} parent=0 // pred_check
    _
  $region7: #{forward.5} parent=0 // pred_check_branch
    %21 = sbr.rel (0) target = $region9
  $region8: #{forward.5} parent=0 // pred_region
    _
  $region9: #{forward.5} parent=0 // pred_fallthru
    _
  // Predicated region
  $region10: #{forward.5} parent=0 // pred_check
    _
  $region11: #{forward.5} parent=0 // pred_check_branch
    %23 = sbr.rel (0) target = $region13
  $region12: #{forward.5} parent=0 // pred_region
    _
  $region13: #{forward.5} parent=0 // pred_fallthru
    _
  // Predicated region
  $region14: #{forward.5} parent=0 // pred_check
    _
  $region15: #{forward.5} parent=0 // pred_check_branch
    %25 = sbr.rel (0) target = $region17
  $region16: #{forward.5} parent=0 // pred_region
    _
  $region17: #{forward.5} parent=0 // pred_fallthru
    _
  // Predicated region
  $region18: #{forward.5} parent=0 // pred_check
    _
  $region19: #{forward.5} parent=0 // pred_check_branch
    %27 = sbr.rel (0) target = $region21
  $region20: #{forward.5} parent=0 // pred_region
    _
  $region21: #{forward.5} parent=0 // pred_fallthru
    _
  // Predicated region
  $region22: #{forward.5} parent=0 // pred_check
    _
  $region23: #{forward.5} parent=0 // pred_check_branch
    %29 = sbr.rel (0) target = $region25
  $region24: #{forward.5} parent=0 // pred_region
    _
  $region25: #{forward.5} parent=0 // pred_fallthru
    _
  // Predicated region
  $region26: #{forward.5} parent=0 // pred_check
    _
  $region27: #{forward.5} parent=0 // pred_check_branch
    %31 = sbr.rel (0) target = $region29
  $region28: #{forward.5} parent=0 // pred_region
    _
  $region29: #{forward.5} parent=0 // pred_fallthru
    _
  // Predicated region
  $region30: #{forward.5} parent=0 // pred_check
    _
  $region31: #{forward.5} parent=0 // pred_check_branch
    %33 = sbr.rel (0) target = $region33
  $region32: #{forward.5} parent=0 // pred_region
    _
  $region33: #{forward.5} parent=0 // pred_fallthru
    _
  // Predicated region
  $region34: #{forward.5} parent=0 // pred_check
    _
  $region35: #{forward.5} parent=0 // pred_check_branch
    %35 = sbr.rel (0) target = $region37
  $region36: #{forward.5} parent=0 // pred_region
    _
  $region37: #{forward.5} parent=0 // pred_fallthru
    _
  // Predicated region
  $region38: #{forward.5} parent=0 // pred_check
    _
  $region39: #{forward.5} parent=0 // pred_check_branch
    %37 = sbr.rel (0) target = $region41
  $region40: #{forward.5} parent=0 // pred_region
    _
  $region41: #{forward.5} parent=0 // pred_fallthru
    _
  // Predicated region
  $region42: #{forward.5} parent=0 // pred_check
    _
  $region43: #{forward.5} parent=0 // pred_check_branch
    %39 = sbr.rel (0) target = $region45
  $region44: #{forward.5} parent=0 // pred_region
    _
  $region45: #{forward.5} parent=0 // pred_fallthru
    _
  // Predicated region
  $region46: #{forward.5} parent=0 // pred_check
    _
  $region47: #{forward.5} parent=0 // pred_check_branch
    %41 = sbr.rel (0) target = $region49
  $region48: #{forward.5} parent=0 // pred_region
    _
  $region49: #{forward.5} parent=0 // pred_fallthru
    _
  // Predicated region
  $region50: #{forward.5} parent=0 // pred_check
    _
  $region51: #{forward.5} parent=0 // pred_check_branch
    %43 = sbr.rel (0) target = $region53
  $region52: #{forward.5} parent=0 // pred_region
    _
  $region53: #{forward.5} parent=0 // pred_fallthru
    _
  %v44 = vld [vmem:[%s0] sm:$0xff]
  %v45 = vld [vmem:[%s0 + $0x8] sm:$0xff]
  %v46 = vld [vmem:[%s0 + $0x10] sm:$0xff]
  %v47 = vld [vmem:[%s0 + $0x18] sm:$0xff]
  %v48 = vld [vmem:[%s0 + $0x20] sm:$0xff]
  %v49 = vld [vmem:[%s0 + $0x28] sm:$0xff]
  %v50 = vld [vmem:[%s0 + $0x30] sm:$0x3]
  %v51 = vld [vmem:[%s2] sm:$0xff]
  %v52 = vld [vmem:[%s2 + $0x8] sm:$0xff]
  %v53 = vld [vmem:[%s2 + $0x10] sm:$0xff]
  %v54 = vld [vmem:[%s2 + $0x18] sm:$0xff]
  %v55 = vld [vmem:[%s2 + $0x20] sm:$0xff]
  %v56 = vld [vmem:[%s2 + $0x28] sm:$0xff]
  %v57 = vld [vmem:[%s2 + $0x30] sm:$0xff]
  %v58 = vld [vmem:[%s2 + $0x38] sm:$0xff]
  %v59 = vld [vmem:[%s2 + $0x40] sm:$0xff]
  %v60 = vld [vmem:[%s2 + $0x48] sm:$0xff]
  %v61 = vld [vmem:[%s2 + $0x50] sm:$0xff]
  %v62 = vld [vmem:[%s2 + $0x58] sm:$0xff]
  %v63 = vld [vmem:[%s2 + $0x60] sm:$0xff]
  %v64 = vld [vmem:[%s2 + $0x68] sm:$0xff]
  %v65 = vld [vmem:[%s2 + $0x70] sm:$0xff]
  %v66 = vld [vmem:[%s2 + $0x78] sm:$0xff]
  %v67 = vld [vmem:[%s2 + $0x80] sm:$0xff]
  %v68 = vld [vmem:[%s2 + $0x88] sm:$0xff]
  %v69 = vld [vmem:[%s2 + $0x90] sm:$0xff]
  %v70 = vld [vmem:[%s2 + $0x98] sm:$0xff]
  %v71 = vld [vmem:[%s2 + $0xa0] sm:$0xff]
  %v72 = vld [vmem:[%s2 + $0xa8] sm:$0xff]
  %v73 = vld [vmem:[%s2 + $0xb0] sm:$0xff]
  %v74 = vld [vmem:[%s2 + $0xb8] sm:$0xff]
  %v75 = vld [vmem:[%s2 + $0xc0] sm:$0xff]
  %v76 = vld [vmem:[%s2 + $0xc8] sm:$0xff]
  %v77 = vld [vmem:[%s2 + $0xd0] sm:$0xff]
  %v78 = vld [vmem:[%s2 + $0xd8] sm:$0xff]
  %v79 = vld [vmem:[%s2 + $0xe0] sm:$0xff]
  %v80 = vld [vmem:[%s2 + $0xe8] sm:$0xff]
  %v81 = vld [vmem:[%s2 + $0xf0] sm:$0xff]
  %v82 = vld [vmem:[%s2 + $0xf8] sm:$0xff]
  %v83 = vld [vmem:[%s2 + $0x100] sm:$0xff]
  %v84 = vld [vmem:[%s2 + $0x108] sm:$0xff]
  %v85 = vld [vmem:[%s2 + $0x110] sm:$0xff]
  %v86 = vld [vmem:[%s2 + $0x118] sm:$0xff]
  %v87 = vld [vmem:[%s2 + $0x120] sm:$0xff]
  %v88 = vld [vmem:[%s2 + $0x128] sm:$0xff]
  %v89 = vld [vmem:[%s2 + $0x130] sm:$0xff]
  %v90 = vld [vmem:[%s2 + $0x138] sm:$0xff]
  %v91 = vld [vmem:[%s2 + $0x140] sm:$0xff]
  %v92 = vld [vmem:[%s2 + $0x148] sm:$0xff]
  %v93 = vld [vmem:[%s2 + $0x150] sm:$0xff]
  %v94 = vld [vmem:[%s2 + $0x158] sm:$0xff]
  %v95 = vld [vmem:[%s2 + $0x160] sm:$0xff]
  %v96 = vld [vmem:[%s2 + $0x168] sm:$0xff]
  %v97 = vld [vmem:[%s2 + $0x170] sm:$0xff]
  %v98 = vld [vmem:[%s2 + $0x178] sm:$0xff]
  %v99 = vld [vmem:[%s2 + $0x180] sm:$0xff]
  %v100 = vld [vmem:[%s2 + $0x188] sm:$0xff]
  %v101 = vld [vmem:[%s2 + $0x190] sm:$0xff]
  %v102 = vld [vmem:[%s2 + $0x198] sm:$0xff]
  %v103 = vld [vmem:[%s2 + $0x1a0] sm:$0xff]
  %v104 = vld [vmem:[%s2 + $0x1a8] sm:$0xff]
  %v105 = vld [vmem:[%s2 + $0x1b0] sm:$0xff]
  %v106 = vld [vmem:[%s2 + $0x1b8] sm:$0xff]
  %v107 = vld [vmem:[%s2 + $0x1c0] sm:$0xff]
  %v108 = vld [vmem:[%s2 + $0x1c8] sm:$0xff]
  %v109 = vld [vmem:[%s2 + $0x1d0] sm:$0xff]
  %v110 = vld [vmem:[%s2 + $0x1d8] sm:$0xff]
  %v111 = vld [vmem:[%s2 + $0x1e0] sm:$0xff]
  %v112 = vld [vmem:[%s2 + $0x1e8] sm:$0xff]
  %v113 = vld [vmem:[%s2 + $0x1f0] sm:$0xff]
  %v114 = vld [vmem:[%s2 + $0x1f8] sm:$0xff]
  %v115 = vld [vmem:[%s2 + $0x200] sm:$0xff]
  %v116 = vld [vmem:[%s2 + $0x208] sm:$0xff]
  %v117 = vld [vmem:[%s2 + $0x210] sm:$0xff]
  %v118 = vld [vmem:[%s2 + $0x218] sm:$0xff]
  %v119 = vld [vmem:[%s2 + $0x220] sm:$0xff]
  %v120 = vld [vmem:[%s2 + $0x228] sm:$0xff]
  %v121 = vld [vmem:[%s2 + $0x230] sm:$0xff]
  %v122 = vld [vmem:[%s2 + $0x238] sm:$0xff]
  %v123 = vld [vmem:[%s2 + $0x240] sm:$0xff]
  %v124 = vld [vmem:[%s2 + $0x248] sm:$0xff]
  %v125 = vld [vmem:[%s2 + $0x250] sm:$0xff]
  %v126 = vld [vmem:[%s2 + $0x258] sm:$0xff]
  %v127 = vld [vmem:[%s2 + $0x260] sm:$0xff]
  %v128 = vld [vmem:[%s2 + $0x268] sm:$0xff]
  %v129 = vld [vmem:[%s2 + $0x270] sm:$0xff]
  %v130 = vld [vmem:[%s2 + $0x278] sm:$0xff]
  %v131 = vld [vmem:[%s2 + $0x280] sm:$0xff]
  %v132 = vld [vmem:[%s2 + $0x288] sm:$0xff]
  %v133 = vld [vmem:[%s2 + $0x290] sm:$0xff]
  %v134 = vld [vmem:[%s2 + $0x298] sm:$0xff]
  %v135 = vld [vmem:[%s2 + $0x2a0] sm:$0xff]
  %v136 = vld [vmem:[%s2 + $0x2a8] sm:$0xff]
  %v137 = vld [vmem:[%s2 + $0x2b0] sm:$0xff]
  %v138 = vld [vmem:[%s2 + $0x2b8] sm:$0xff]
  %v139 = vld [vmem:[%s2 + $0x2c0] sm:$0xff]
  %v140 = vld [vmem:[%s2 + $0x2c8] sm:$0xff]
  %v141 = vld [vmem:[%s2 + $0x2d0] sm:$0xff]
  %v142 = vld [vmem:[%s2 + $0x2d8] sm:$0xff]
  %v143 = vld [vmem:[%s2 + $0x2e0] sm:$0xff]
  %v144 = vld [vmem:[%s2 + $0x2e8] sm:$0xff]
  %v145 = vld [vmem:[%s2 + $0x2f0] sm:$0xff]
  %v146 = vld [vmem:[%s2 + $0x2f8] sm:$0xff]
  %v147 = vld [vmem:[%s2 + $0x300] sm:$0xff]
  %v148 = vld [vmem:[%s2 + $0x308] sm:$0xff]
  %v149 = vld [vmem:[%s2 + $0x310] sm:$0xff]
  %v150 = vld [vmem:[%s2 + $0x318] sm:$0xff]
  %v151 = vld [vmem:[%s2 + $0x320] sm:$0xff]
  %v152 = vld [vmem:[%s2 + $0x328] sm:$0xff]
  %v153 = vld [vmem:[%s2 + $0x330] sm:$0xff]
  %v154 = vld [vmem:[%s2 + $0x338] sm:$0xff]
  %v155 = vld [vmem:[%s2 + $0x340] sm:$0xff]
  %v156 = vld [vmem:[%s2 + $0x348] sm:$0xff]
  %v157 = vld [vmem:[%s2 + $0x350] sm:$0xff]
  %v158 = vld [vmem:[%s2 + $0x358] sm:$0xff]
  %v159 = vld [vmem:[%s2 + $0x360] sm:$0xff]
  %v160 = vld [vmem:[%s2 + $0x368] sm:$0xff]
  %v161 = vld [vmem:[%s2 + $0x370] sm:$0xff]
  %v162 = vld [vmem:[%s2 + $0x378] sm:$0xff]
  %v163 = vld [vmem:[%s2 + $0x380] sm:$0xff]
  %v164 = vld [vmem:[%s2 + $0x388] sm:$0xff]
  %v165 = vld [vmem:[%s2 + $0x390] sm:$0xff]
  %v166 = vld [vmem:[%s2 + $0x398] sm:$0xff]
  %v167 = vld [vmem:[%s2 + $0x3a0] sm:$0xff]
  %v168 = vld [vmem:[%s2 + $0x3a8] sm:$0xff]
  %v169 = vld [vmem:[%s2 + $0x3b0] sm:$0xff]
  %v170 = vld [vmem:[%s2 + $0x3b8] sm:$0xff]
  %v171 = vld [vmem:[%s2 + $0x3c0] sm:$0xff]
  %v172 = vld [vmem:[%s2 + $0x3c8] sm:$0xff]
  %v173 = vld [vmem:[%s2 + $0x3d0] sm:$0xff]
  %v174 = vld [vmem:[%s2 + $0x3d8] sm:$0xff]
  %v175 = vld [vmem:[%s2 + $0x3e0] sm:$0xff]
  %v176 = vld [vmem:[%s2 + $0x3e8] sm:$0xff]
  %v177 = vld [vmem:[%s2 + $0x3f0] sm:$0xff]
  %v178 = vld [vmem:[%s2 + $0x3f8] sm:$0xff]
  %v179 = vld [vmem:[%s2 + $0x400] sm:$0xff]
  %v180 = vld [vmem:[%s2 + $0x408] sm:$0xff]
  %v181 = vld [vmem:[%s2 + $0x410] sm:$0xff]
  %v182 = vld [vmem:[%s2 + $0x418] sm:$0xff]
  %v183 = vld [vmem:[%s2 + $0x420] sm:$0xff]
  %v184 = vld [vmem:[%s2 + $0x428] sm:$0xff]
  %v185 = vld [vmem:[%s2 + $0x430] sm:$0xff]
  %v186 = vld [vmem:[%s2 + $0x438] sm:$0xff]
  %v187 = vld [vmem:[%s2 + $0x440] sm:$0xff]
  %v188 = vld [vmem:[%s2 + $0x448] sm:$0xff]
  %v189 = vld [vmem:[%s2 + $0x450] sm:$0xff]
  %v190 = vld [vmem:[%s2 + $0x458] sm:$0xff]
  %v191 = vld [vmem:[%s2 + $0x460] sm:$0xff]
  %v192 = vld [vmem:[%s2 + $0x468] sm:$0xff]
  %v193 = vld [vmem:[%s2 + $0x470] sm:$0xff]
  %v194 = vld [vmem:[%s2 + $0x478] sm:$0xff]
  %v195 = vld [vmem:[%s2 + $0x480] sm:$0xff]
  %v196 = vld [vmem:[%s2 + $0x488] sm:$0xff]
  %v197 = vld [vmem:[%s2 + $0x490] sm:$0xff]
  %v198 = vld [vmem:[%s2 + $0x498] sm:$0xff]
  %v199 = vld [vmem:[%s2 + $0x4a0] sm:$0xff]
  %v200 = vld [vmem:[%s2 + $0x4a8] sm:$0xff]
  %v201 = vld [vmem:[%s2 + $0x4b0] sm:$0xff]
  %v202 = vld [vmem:[%s2 + $0x4b8] sm:$0xff]
  %v203 = vld [vmem:[%s2 + $0x4c0] sm:$0xff]
  %v204 = vld [vmem:[%s2 + $0x4c8] sm:$0xff]
  %v205 = vld [vmem:[%s2 + $0x4d0] sm:$0xff]
  %v206 = vld [vmem:[%s2 + $0x4d8] sm:$0xff]
  %v207 = vld [vmem:[%s2 + $0x4e0] sm:$0xff]
  %v208 = vld [vmem:[%s2 + $0x4e8] sm:$0xff]
  %v209 = vld [vmem:[%s2 + $0x4f0] sm:$0xff]
  %v210 = vld [vmem:[%s2 + $0x4f8] sm:$0xff]
  %v211 = vld [vmem:[%s2 + $0x500] sm:$0xff]
  %v212 = vld [vmem:[%s2 + $0x508] sm:$0xff]
  %v213 = vld [vmem:[%s2 + $0x510] sm:$0xff]
  %v214 = vld [vmem:[%s2 + $0x518] sm:$0xff]
  %v215 = vld [vmem:[%s2 + $0x520] sm:$0xff]
  %v216 = vld [vmem:[%s2 + $0x528] sm:$0xff]
  %v217 = vld [vmem:[%s2 + $0x530] sm:$0xff]
  %v218 = vld [vmem:[%s2 + $0x538] sm:$0xff]
  %v219 = vld [vmem:[%s2 + $0x540] sm:$0xff]
  %v220 = vld [vmem:[%s2 + $0x548] sm:$0xff]
  %v221 = vld [vmem:[%s2 + $0x550] sm:$0xff]
  %v222 = vld [vmem:[%s2 + $0x558] sm:$0xff]
  %v223 = vld [vmem:[%s2 + $0x560] sm:$0xff]
  %v224 = vld [vmem:[%s2 + $0x568] sm:$0xff]
  %v225 = vld [vmem:[%s2 + $0x570] sm:$0xff]
  %v226 = vld [vmem:[%s2 + $0x578] sm:$0xff]
  %v227 = vld [vmem:[%s2 + $0x580] sm:$0xff]
  %v228 = vld [vmem:[%s2 + $0x588] sm:$0xff]
  %v229 = vld [vmem:[%s2 + $0x590] sm:$0xff]
  %v230 = vld [vmem:[%s2 + $0x598] sm:$0xff]
  %v231 = vld [vmem:[%s2 + $0x5a0] sm:$0xff]
  %v232 = vld [vmem:[%s2 + $0x5a8] sm:$0xff]
  %v233 = vld [vmem:[%s2 + $0x5b0] sm:$0xff]
  %v234 = vld [vmem:[%s2 + $0x5b8] sm:$0xff]
  %v235 = vld [vmem:[%s2 + $0x5c0] sm:$0xff]
  %v236 = vld [vmem:[%s2 + $0x5c8] sm:$0xff]
  %v237 = vld [vmem:[%s2 + $0x5d0] sm:$0xff]
  %v238 = vld [vmem:[%s2 + $0x5d8] sm:$0xff]
  %v239 = vld [vmem:[%s2 + $0x5e0] sm:$0xff]
  %v240 = vld [vmem:[%s2 + $0x5e8] sm:$0xff]
  %v241 = vld [vmem:[%s2 + $0x5f0] sm:$0xff]
  %v242 = vld [vmem:[%s2 + $0x5f8] sm:$0xff]
  %v243 = vld [vmem:[%s2 + $0x600] sm:$0xff]
  %v244 = vld [vmem:[%s2 + $0x608] sm:$0xff]
  %v245 = vld [vmem:[%s2 + $0x610] sm:$0xff]
  %v246 = vld [vmem:[%s2 + $0x618] sm:$0xff]
  %v247 = vld [vmem:[%s2 + $0x620] sm:$0xff]
  %v248 = vld [vmem:[%s2 + $0x628] sm:$0xff]
  %v249 = vld [vmem:[%s2 + $0x630] sm:$0xff]
  %v250 = vld [vmem:[%s2 + $0x638] sm:$0xff]
  %v251 = vld [vmem:[%s2 + $0x640] sm:$0xff]
  %v252 = vld [vmem:[%s2 + $0x648] sm:$0xff]
  %v253 = vld [vmem:[%s2 + $0x650] sm:$0xff]
  %v254 = vld [vmem:[%s2 + $0x658] sm:$0xff]
  %v255 = vld [vmem:[%s2 + $0x660] sm:$0xff]
  %v256 = vld [vmem:[%s2 + $0x668] sm:$0xff]
  %v257 = vld [vmem:[%s2 + $0x670] sm:$0xff]
  %v258 = vld [vmem:[%s2 + $0x678] sm:$0xff]
  %v259 = vld [vmem:[%s2 + $0x680] sm:$0xff]
  %v260 = vld [vmem:[%s2 + $0x688] sm:$0xff]
  %v261 = vld [vmem:[%s2 + $0x690] sm:$0xff]
  %v262 = vld [vmem:[%s2 + $0x698] sm:$0xff]
  %v263 = vld [vmem:[%s2 + $0x6a0] sm:$0xff]
  %v264 = vld [vmem:[%s2 + $0x6a8] sm:$0xff]
  %v265 = vld [vmem:[%s2 + $0x6b0] sm:$0xff]
  %v266 = vld [vmem:[%s2 + $0x6b8] sm:$0xff]
  %v267 = vld [vmem:[%s2 + $0x6c0] sm:$0xff]
  %v268 = vld [vmem:[%s2 + $0x6c8] sm:$0xff]
  %v269 = vld [vmem:[%s2 + $0x6d0] sm:$0xff]
  %v270 = vld [vmem:[%s2 + $0x6d8] sm:$0xff]
  %v271 = vld [vmem:[%s2 + $0x6e0] sm:$0xff]
  %v272 = vld [vmem:[%s2 + $0x6e8] sm:$0xff]
  %v273 = vld [vmem:[%s2 + $0x6f0] sm:$0xff]
  %v274 = vld [vmem:[%s2 + $0x6f8] sm:$0xff]
  %v275 = vld [vmem:[%s2 + $0x700] sm:$0xff]
  %v276 = vld [vmem:[%s2 + $0x708] sm:$0xff]
  %v277 = vld [vmem:[%s2 + $0x710] sm:$0xff]
  %v278 = vld [vmem:[%s2 + $0x718] sm:$0xff]
  %v279 = vld [vmem:[%s2 + $0x720] sm:$0xff]
  %v280 = vld [vmem:[%s2 + $0x728] sm:$0xff]
  %v281 = vld [vmem:[%s2 + $0x730] sm:$0xff]
  %v282 = vld [vmem:[%s2 + $0x738] sm:$0xff]
  %v283 = vld [vmem:[%s2 + $0x740] sm:$0xff]
  %v284 = vld [vmem:[%s2 + $0x748] sm:$0xff]
  %v285 = vld [vmem:[%s2 + $0x750] sm:$0xff]
  %v286 = vld [vmem:[%s2 + $0x758] sm:$0xff]
  %v287 = vld [vmem:[%s2 + $0x760] sm:$0xff]
  %v288 = vld [vmem:[%s2 + $0x768] sm:$0xff]
  %v289 = vld [vmem:[%s2 + $0x770] sm:$0xff]
  %v290 = vld [vmem:[%s2 + $0x778] sm:$0xff]
  %v291 = vld [vmem:[%s2 + $0x780] sm:$0xff]
  %v292 = vld [vmem:[%s2 + $0x788] sm:$0xff]
  %v293 = vld [vmem:[%s2 + $0x790] sm:$0xff]
  %v294 = vld [vmem:[%s2 + $0x798] sm:$0xff]
  %v295 = vld [vmem:[%s2 + $0x7a0] sm:$0xff]
  %v296 = vld [vmem:[%s2 + $0x7a8] sm:$0xff]
  %v297 = vld [vmem:[%s2 + $0x7b0] sm:$0xff]
  %v298 = vld [vmem:[%s2 + $0x7b8] sm:$0xff]
  %v299 = vld [vmem:[%s2 + $0x7c0] sm:$0xff]
  %v300 = vld [vmem:[%s2 + $0x7c8] sm:$0xff]
  %v301 = vld [vmem:[%s2 + $0x7d0] sm:$0xff]
  %v302 = vld [vmem:[%s2 + $0x7d8] sm:$0xff]
  %v303 = vld [vmem:[%s2 + $0x7e0] sm:$0xff]
  %v304 = vld [vmem:[%s2 + $0x7e8] sm:$0xff]
  %v305 = vld [vmem:[%s2 + $0x7f0] sm:$0xff]
  %v306 = vld [vmem:[%s2 + $0x7f8] sm:$0xff]
  %v307 = vld [vmem:[%s2 + $0x800] sm:$0xff]
  %v308 = vld [vmem:[%s2 + $0x808] sm:$0xff]
  %v309 = vld [vmem:[%s2 + $0x810] sm:$0xff]
  %v310 = vld [vmem:[%s2 + $0x818] sm:$0xff]
  %v311 = vld [vmem:[%s2 + $0x820] sm:$0xff]
  %v312 = vld [vmem:[%s2 + $0x828] sm:$0xff]
  %v313 = vld [vmem:[%s2 + $0x830] sm:$0xff]
  %v314 = vld [vmem:[%s2 + $0x838] sm:$0xff]
  %v315 = vld [vmem:[%s2 + $0x840] sm:$0xff]
  %v316 = vld [vmem:[%s2 + $0x848] sm:$0xff]
  %v317 = vld [vmem:[%s2 + $0x850] sm:$0xff]
  %v318 = vld [vmem:[%s2 + $0x858] sm:$0xff]
  %v319 = vld [vmem:[%s2 + $0x860] sm:$0xff]
  %v320 = vld [vmem:[%s2 + $0x868] sm:$0xff]
  %v321 = vld [vmem:[%s2 + $0x870] sm:$0xff]
  %v322 = vld [vmem:[%s2 + $0x878] sm:$0xff]
  %v323 = vld [vmem:[%s2 + $0x880] sm:$0xff]
  %v324 = vld [vmem:[%s2 + $0x888] sm:$0xff]
  %v325 = vld [vmem:[%s2 + $0x890] sm:$0xff]
  %v326 = vld [vmem:[%s2 + $0x898] sm:$0xff]
  %v327 = vld [vmem:[%s2 + $0x8a0] sm:$0xff]
  %v328 = vld [vmem:[%s2 + $0x8a8] sm:$0xff]
  %v329 = vld [vmem:[%s2 + $0x8b0] sm:$0xff]
  %v330 = vld [vmem:[%s2 + $0x8b8] sm:$0xff]
  %v331 = vld [vmem:[%s2 + $0x8c0] sm:$0xff]
  %v332 = vld [vmem:[%s2 + $0x8c8] sm:$0xff]
  %v333 = vld [vmem:[%s2 + $0x8d0] sm:$0xff]
  %v334 = vld [vmem:[%s2 + $0x8d8] sm:$0xff]
  %v335 = vld [vmem:[%s2 + $0x8e0] sm:$0xff]
  %v336 = vld [vmem:[%s2 + $0x8e8] sm:$0xff]
  %v337 = vld [vmem:[%s2 + $0x8f0] sm:$0xff]
  %v338 = vld [vmem:[%s2 + $0x8f8] sm:$0xff]
  %v339 = vld [vmem:[%s2 + $0x900] sm:$0xff]
  %v340 = vld [vmem:[%s2 + $0x908] sm:$0xff]
  %v341 = vld [vmem:[%s2 + $0x910] sm:$0xff]
  %v342 = vld [vmem:[%s2 + $0x918] sm:$0xff]
  %v343 = vld [vmem:[%s2 + $0x920] sm:$0xff]
  %v344 = vld [vmem:[%s2 + $0x928] sm:$0xff]
  %v345 = vld [vmem:[%s2 + $0x930] sm:$0xff]
  %v346 = vld [vmem:[%s2 + $0x938] sm:$0xff]
  %v347 = vld [vmem:[%s2 + $0x940] sm:$0xff]
  %v348 = vld [vmem:[%s2 + $0x948] sm:$0xff]
  %v349 = vld [vmem:[%s2 + $0x950] sm:$0xff]
  %v350 = vld [vmem:[%s2 + $0x958] sm:$0xff]
  %v351 = vld [vmem:[%s2 + $0x960] sm:$0xff]
  %v352 = vld [vmem:[%s2 + $0x968] sm:$0xff]
  %v353 = vld [vmem:[%s2 + $0x970] sm:$0xff]
  %v354 = vld [vmem:[%s2 + $0x978] sm:$0xff]
  %v355 = vld [vmem:[%s2 + $0x980] sm:$0xff]
  %v356 = vld [vmem:[%s2 + $0x988] sm:$0xff]
  %v357 = vld [vmem:[%s2 + $0x990] sm:$0xff]
  %v358 = vld [vmem:[%s2 + $0x998] sm:$0xff]
  %v359 = vld [vmem:[%s2 + $0x9a0] sm:$0xff]
  %v360 = vld [vmem:[%s2 + $0x9a8] sm:$0xff]
  %v361 = vld [vmem:[%s2 + $0x9b0] sm:$0xff]
  %v362 = vld [vmem:[%s2 + $0x9b8] sm:$0xff]
  %v363 = vld [vmem:[%s2 + $0x9c0] sm:$0xff]
  %v364 = vld [vmem:[%s2 + $0x9c8] sm:$0xff]
  %v365 = vld [vmem:[%s2 + $0x9d0] sm:$0xff]
  %v366 = vld [vmem:[%s2 + $0x9d8] sm:$0xff]
  %v367 = vld [vmem:[%s2 + $0x9e0] sm:$0xff]
  %v368 = vld [vmem:[%s2 + $0x9e8] sm:$0xff]
  %v369 = vld [vmem:[%s2 + $0x9f0] sm:$0xff]
  %v370 = vld [vmem:[%s2 + $0x9f8] sm:$0xff]
  %v371 = vld [vmem:[%s2 + $0xa00] sm:$0xff]
  %v372 = vld [vmem:[%s2 + $0xa08] sm:$0xff]
  %v373 = vld [vmem:[%s2 + $0xa10] sm:$0xff]
  %v374 = vld [vmem:[%s2 + $0xa18] sm:$0xff]
  %v375 = vld [vmem:[%s2 + $0xa20] sm:$0xff]
  %v376 = vld [vmem:[%s2 + $0xa28] sm:$0xff]
  %v377 = vld [vmem:[%s2 + $0xa30] sm:$0xff]
  %v378 = vld [vmem:[%s2 + $0xa38] sm:$0xff]
  %v379 = vld [vmem:[%s2 + $0xa40] sm:$0xff]
  %v380 = vld [vmem:[%s2 + $0xa48] sm:$0xff]
  %v381 = vld [vmem:[%s2 + $0xa50] sm:$0xff]
  %v382 = vld [vmem:[%s2 + $0xa58] sm:$0xff]
  %v383 = vld [vmem:[%s2 + $0xa60] sm:$0xff]
  %v384 = vld [vmem:[%s2 + $0xa68] sm:$0xff]
  %v385 = vld [vmem:[%s2 + $0xa70] sm:$0xff]
  %v386 = vld [vmem:[%s2 + $0xa78] sm:$0xff]
  %v387 = vld [vmem:[%s2 + $0xa80] sm:$0xff]
  %v388 = vld [vmem:[%s2 + $0xa88] sm:$0xff]
  %v389 = vld [vmem:[%s2 + $0xa90] sm:$0xff]
  %v390 = vld [vmem:[%s2 + $0xa98] sm:$0xff]
  %v391 = vld [vmem:[%s2 + $0xaa0] sm:$0xff]
  %v392 = vld [vmem:[%s2 + $0xaa8] sm:$0xff]
  %v393 = vld [vmem:[%s2 + $0xab0] sm:$0xff]
  %v394 = vld [vmem:[%s2 + $0xab8] sm:$0xff]
  %v395 = vld [vmem:[%s2 + $0xac0] sm:$0xff]
  %v396 = vld [vmem:[%s2 + $0xac8] sm:$0xff]
  %v397 = vld [vmem:[%s2 + $0xad0] sm:$0xff]
  %v398 = vld [vmem:[%s2 + $0xad8] sm:$0xff]
  %v399 = vld [vmem:[%s2 + $0xae0] sm:$0xff]
  %v400 = vld [vmem:[%s2 + $0xae8] sm:$0xff]
  %v401 = vld [vmem:[%s2 + $0xaf0] sm:$0xff]
  %v402 = vld [vmem:[%s2 + $0xaf8] sm:$0xff]
  %v403 = vld [vmem:[%s2 + $0xb00] sm:$0xff]
  %v404 = vld [vmem:[%s2 + $0xb08] sm:$0xff]
  %v405 = vld [vmem:[%s2 + $0xb10] sm:$0xff]
  %v406 = vld [vmem:[%s2 + $0xb18] sm:$0xff]
  %v407 = vld [vmem:[%s2 + $0xb20] sm:$0xff]
  %v408 = vld [vmem:[%s2 + $0xb28] sm:$0xff]
  %v409 = vld [vmem:[%s2 + $0xb30] sm:$0xff]
  %v410 = vld [vmem:[%s2 + $0xb38] sm:$0xff]
  %v411 = vld [vmem:[%s2 + $0xb40] sm:$0xff]
  %v412 = vld [vmem:[%s2 + $0xb48] sm:$0xff]
  %v413 = vld [vmem:[%s2 + $0xb50] sm:$0xff]
  %v414 = vld [vmem:[%s2 + $0xb58] sm:$0xff]
  %v415 = vld [vmem:[%s2 + $0xb60] sm:$0xff]
  %v416 = vld [vmem:[%s2 + $0xb68] sm:$0xff]
  %v417 = vld [vmem:[%s2 + $0xb70] sm:$0xff]
  %v418 = vld [vmem:[%s2 + $0xb78] sm:$0xff]
  %v419 = vld [vmem:[%s2 + $0xb80] sm:$0xff]
  %v420 = vld [vmem:[%s2 + $0xb88] sm:$0xff]
  %v421 = vld [vmem:[%s2 + $0xb90] sm:$0xff]
  %v422 = vld [vmem:[%s2 + $0xb98] sm:$0xff]
  %v423 = vld [vmem:[%s2 + $0xba0] sm:$0xff]
  %v424 = vld [vmem:[%s2 + $0xba8] sm:$0xff]
  %v425 = vld [vmem:[%s2 + $0xbb0] sm:$0xff]
  %v426 = vld [vmem:[%s2 + $0xbb8] sm:$0xff]
  %v427 = vld [vmem:[%s2 + $0xbc0] sm:$0xff]
  %v428 = vld [vmem:[%s2 + $0xbc8] sm:$0xff]
  %v429 = vld [vmem:[%s2 + $0xbd0] sm:$0xff]
  %v430 = vld [vmem:[%s2 + $0xbd8] sm:$0xff]
  %v431 = vld [vmem:[%s2 + $0xbe0] sm:$0xff]
  %v432 = vld [vmem:[%s2 + $0xbe8] sm:$0xff]
  %v433 = vld [vmem:[%s2 + $0xbf0] sm:$0xff]
  %v434 = vld [vmem:[%s2 + $0xbf8] sm:$0xff]
  %v435 = vld [vmem:[%s2 + $0xc00] sm:$0xff]
  %v436 = vld [vmem:[%s2 + $0xc08] sm:$0xff]
  %v437 = vld [vmem:[%s2 + $0xc10] sm:$0xff]
  %v438 = vld [vmem:[%s2 + $0xc18] sm:$0xff]
  %v439 = vld [vmem:[%s2 + $0xc20] sm:$0xff]
  %v440 = vld [vmem:[%s2 + $0xc28] sm:$0xff]
  %v441 = vld [vmem:[%s2 + $0xc30] sm:$0xff]
  %v442 = vld [vmem:[%s2 + $0xc38] sm:$0xff]
  %v443 = vld [vmem:[%s2 + $0xc40] sm:$0xff]
  %v444 = vld [vmem:[%s2 + $0xc48] sm:$0xff]
  %v445 = vld [vmem:[%s2 + $0xc50] sm:$0xff]
  %v446 = vld [vmem:[%s2 + $0xc58] sm:$0xff]
  %v447 = vld [vmem:[%s2 + $0xc60] sm:$0xff]
  %v448 = vld [vmem:[%s2 + $0xc68] sm:$0xff]
  %v449 = vld [vmem:[%s2 + $0xc70] sm:$0xff]
  %v450 = vld [vmem:[%s2 + $0xc78] sm:$0xff]
  %v451 = vld [vmem:[%s3] sm:$0x1]
  %v453 = vperm.slane %v451, 0
  %462 = vst [vmem:[#allocation1] ss:$4 sm:$0xff] %v44
  %s463 = scalar_lea.vmem [#allocation1], 32
  %464 = vst [vmem:[%s463] ss:$4 sm:$0xff] %v45
  %v465 = vld.sshfl [vmem:[#allocation1] sm:$0xff pattern:$0x73625140]
  %v466 = vld.sshfl [vmem:[#allocation1 + $0x8] sm:$0xff pattern:$0x73625140]
  %v467 = vld.sshfl [vmem:[#allocation1 + $0x10] sm:$0xff pattern:$0x73625140]
  %v468 = vld.sshfl [vmem:[#allocation1 + $0x18] sm:$0xff pattern:$0x73625140]
  %v469 = vld.sshfl [vmem:[#allocation1 + $0x20] sm:$0xff pattern:$0x73625140]
  %v470 = vld.sshfl [vmem:[#allocation1 + $0x28] sm:$0xff pattern:$0x73625140]
  %v471 = vld.sshfl [vmem:[#allocation1 + $0x30] sm:$0xff pattern:$0x73625140]
  %v472 = vld.sshfl [vmem:[#allocation1 + $0x38] sm:$0xff pattern:$0x73625140]
  %473 = vst [vmem:[#allocation1] ss:$4 sm:$0xff] %v46
  %474 = vst [vmem:[%s463] ss:$4 sm:$0xff] %v47
  %v475 = vld.sshfl [vmem:[#allocation1] sm:$0xff pattern:$0x73625140]
  %v476 = vld.sshfl [vmem:[#allocation1 + $0x8] sm:$0xff pattern:$0x73625140]
  %v477 = vld.sshfl [vmem:[#allocation1 + $0x10] sm:$0xff pattern:$0x73625140]
  %v478 = vld.sshfl [vmem:[#allocation1 + $0x18] sm:$0xff pattern:$0x73625140]
  %v479 = vld.sshfl [vmem:[#allocation1 + $0x20] sm:$0xff pattern:$0x73625140]
  %v480 = vld.sshfl [vmem:[#allocation1 + $0x28] sm:$0xff pattern:$0x73625140]
  %v481 = vld.sshfl [vmem:[#allocation1 + $0x30] sm:$0xff pattern:$0x73625140]
  %v482 = vld.sshfl [vmem:[#allocation1 + $0x38] sm:$0xff pattern:$0x73625140]
  %483 = vst [vmem:[#allocation1] ss:$4 sm:$0xff] %v48
  %484 = vst [vmem:[%s463] ss:$4 sm:$0xff] %v49
  %v485 = vld.sshfl [vmem:[#allocation1] sm:$0xff pattern:$0x73625140]
  %v486 = vld.sshfl [vmem:[#allocation1 + $0x8] sm:$0xff pattern:$0x73625140]
  %v487 = vld.sshfl [vmem:[#allocation1 + $0x10] sm:$0xff pattern:$0x73625140]
  %v488 = vld.sshfl [vmem:[#allocation1 + $0x18] sm:$0xff pattern:$0x73625140]
  %v489 = vld.sshfl [vmem:[#allocation1 + $0x20] sm:$0xff pattern:$0x73625140]
  %v490 = vld.sshfl [vmem:[#allocation1 + $0x28] sm:$0xff pattern:$0x73625140]
  %v491 = vld.sshfl [vmem:[#allocation1 + $0x30] sm:$0xff pattern:$0x73625140]
  %v492 = vld.sshfl [vmem:[#allocation1 + $0x38] sm:$0xff pattern:$0x73625140]
  %493 = vst [vmem:[#allocation1] ss:$4 sm:$0xff] %v50
  %v494 = vld.sshfl [vmem:[#allocation1] sm:$0xff pattern:$0x73625140]
  %520 = vmatpush.msra.mxu0 %v66
  %521 = vmatpush.msra.mxu0 %v65
  %522 = vmatpush.msra.mxu0 %v64
  %523 = vmatpush.msra.mxu0 %v63
  %524 = vmatpush.msra.mxu0 %v62
  %525 = vmatpush.msra.mxu0 %v61
  %526 = vmatpush.msra.mxu0 %v60
  %527 = vmatpush.msra.mxu0 %v59
  %528 = vmatpush.msra.mxu0 %v58
  %529 = vmatpush.msra.mxu0 %v57
  %530 = vmatpush.msra.mxu0 %v56
  %531 = vmatpush.msra.mxu0 %v55
  %532 = vmatpush.msra.mxu0 %v54
  %533 = vmatpush.msra.mxu0 %v53
  %534 = vmatpush.msra.mxu0 %v52
  %535 = vmatpush.msra.mxu0 %v51
  %536 = vmatmul.f32.gmra.mxu0 %v465
  %v537 = vpop.f32.mrf.mxu0
  %v538 = vadd.f32 %v453, %v537
  %539 = vdwg.mxu0
  %540 = vmatpush.msra.mxu0 %v82
  %541 = vmatpush.msra.mxu0 %v81
  %542 = vmatpush.msra.mxu0 %v80
  %543 = vmatpush.msra.mxu0 %v79
  %544 = vmatpush.msra.mxu0 %v78
  %545 = vmatpush.msra.mxu0 %v77
  %546 = vmatpush.msra.mxu0 %v76
  %547 = vmatpush.msra.mxu0 %v75
  %548 = vmatpush.msra.mxu0 %v74
  %549 = vmatpush.msra.mxu0 %v73
  %550 = vmatpush.msra.mxu0 %v72
  %551 = vmatpush.msra.mxu0 %v71
  %552 = vmatpush.msra.mxu0 %v70
  %553 = vmatpush.msra.mxu0 %v69
  %554 = vmatpush.msra.mxu0 %v68
  %555 = vmatpush.msra.mxu0 %v67
  %556 = vmatmul.f32.gmra.mxu0 %v466
  %v557 = vpop.f32.mrf.mxu0
  %v558 = vadd.f32 %v538, %v557
  %559 = vdwg.mxu0
  %560 = vmatpush.msra.mxu0 %v98
  %561 = vmatpush.msra.mxu0 %v97
  %562 = vmatpush.msra.mxu0 %v96
  %563 = vmatpush.msra.mxu0 %v95
  %564 = vmatpush.msra.mxu0 %v94
  %565 = vmatpush.msra.mxu0 %v93
  %566 = vmatpush.msra.mxu0 %v92
  %567 = vmatpush.msra.mxu0 %v91
  %568 = vmatpush.msra.mxu0 %v90
  %569 = vmatpush.msra.mxu0 %v89
  %570 = vmatpush.msra.mxu0 %v88
  %571 = vmatpush.msra.mxu0 %v87
  %572 = vmatpush.msra.mxu0 %v86
  %573 = vmatpush.msra.mxu0 %v85
  %574 = vmatpush.msra.mxu0 %v84
  %575 = vmatpush.msra.mxu0 %v83
  %576 = vmatmul.f32.gmra.mxu0 %v467
  %v577 = vpop.f32.mrf.mxu0
  %v578 = vadd.f32 %v558, %v577
  %579 = vdwg.mxu0
  %580 = vmatpush.msra.mxu0 %v114
  %581 = vmatpush.msra.mxu0 %v113
  %582 = vmatpush.msra.mxu0 %v112
  %583 = vmatpush.msra.mxu0 %v111
  %584 = vmatpush.msra.mxu0 %v110
  %585 = vmatpush.msra.mxu0 %v109
  %586 = vmatpush.msra.mxu0 %v108
  %587 = vmatpush.msra.mxu0 %v107
  %588 = vmatpush.msra.mxu0 %v106
  %589 = vmatpush.msra.mxu0 %v105
  %590 = vmatpush.msra.mxu0 %v104
  %591 = vmatpush.msra.mxu0 %v103
  %592 = vmatpush.msra.mxu0 %v102
  %593 = vmatpush.msra.mxu0 %v101
  %594 = vmatpush.msra.mxu0 %v100
  %595 = vmatpush.msra.mxu0 %v99
  %596 = vmatmul.f32.gmra.mxu0 %v468
  %v597 = vpop.f32.mrf.mxu0
  %v598 = vadd.f32 %v578, %v597
  %599 = vdwg.mxu0
  %600 = vmatpush.msra.mxu0 %v130
  %601 = vmatpush.msra.mxu0 %v129
  %602 = vmatpush.msra.mxu0 %v128
  %603 = vmatpush.msra.mxu0 %v127
  %604 = vmatpush.msra.mxu0 %v126
  %605 = vmatpush.msra.mxu0 %v125
  %606 = vmatpush.msra.mxu0 %v124
  %607 = vmatpush.msra.mxu0 %v123
  %608 = vmatpush.msra.mxu0 %v122
  %609 = vmatpush.msra.mxu0 %v121
  %610 = vmatpush.msra.mxu0 %v120
  %611 = vmatpush.msra.mxu0 %v119
  %612 = vmatpush.msra.mxu0 %v118
  %613 = vmatpush.msra.mxu0 %v117
  %614 = vmatpush.msra.mxu0 %v116
  %615 = vmatpush.msra.mxu0 %v115
  %616 = vmatmul.f32.gmra.mxu0 %v469
  %v617 = vpop.f32.mrf.mxu0
  %v618 = vadd.f32 %v598, %v617
  %619 = vdwg.mxu0
  %620 = vmatpush.msra.mxu0 %v146
  %621 = vmatpush.msra.mxu0 %v145
  %622 = vmatpush.msra.mxu0 %v144
  %623 = vmatpush.msra.mxu0 %v143
  %624 = vmatpush.msra.mxu0 %v142
  %625 = vmatpush.msra.mxu0 %v141
  %626 = vmatpush.msra.mxu0 %v140
  %627 = vmatpush.msra.mxu0 %v139
  %628 = vmatpush.msra.mxu0 %v138
  %629 = vmatpush.msra.mxu0 %v137
  %630 = vmatpush.msra.mxu0 %v136
  %631 = vmatpush.msra.mxu0 %v135
  %632 = vmatpush.msra.mxu0 %v134
  %633 = vmatpush.msra.mxu0 %v133
  %634 = vmatpush.msra.mxu0 %v132
  %635 = vmatpush.msra.mxu0 %v131
  %636 = vmatmul.f32.gmra.mxu0 %v470
  %v637 = vpop.f32.mrf.mxu0
  %v638 = vadd.f32 %v618, %v637
  %639 = vdwg.mxu0
  %640 = vmatpush.msra.mxu0 %v162
  %641 = vmatpush.msra.mxu0 %v161
  %642 = vmatpush.msra.mxu0 %v160
  %643 = vmatpush.msra.mxu0 %v159
  %644 = vmatpush.msra.mxu0 %v158
  %645 = vmatpush.msra.mxu0 %v157
  %646 = vmatpush.msra.mxu0 %v156
  %647 = vmatpush.msra.mxu0 %v155
  %648 = vmatpush.msra.mxu0 %v154
  %649 = vmatpush.msra.mxu0 %v153
  %650 = vmatpush.msra.mxu0 %v152
  %651 = vmatpush.msra.mxu0 %v151
  %652 = vmatpush.msra.mxu0 %v150
  %653 = vmatpush.msra.mxu0 %v149
  %654 = vmatpush.msra.mxu0 %v148
  %655 = vmatpush.msra.mxu0 %v147
  %656 = vmatmul.f32.gmra.mxu0 %v471
  %v657 = vpop.f32.mrf.mxu0
  %v658 = vadd.f32 %v638, %v657
  %659 = vdwg.mxu0
  %660 = vmatpush.msra.mxu0 %v178
  %661 = vmatpush.msra.mxu0 %v177
  %662 = vmatpush.msra.mxu0 %v176
  %663 = vmatpush.msra.mxu0 %v175
  %664 = vmatpush.msra.mxu0 %v174
  %665 = vmatpush.msra.mxu0 %v173
  %666 = vmatpush.msra.mxu0 %v172
  %667 = vmatpush.msra.mxu0 %v171
  %668 = vmatpush.msra.mxu0 %v170
  %669 = vmatpush.msra.mxu0 %v169
  %670 = vmatpush.msra.mxu0 %v168
  %671 = vmatpush.msra.mxu0 %v167
  %672 = vmatpush.msra.mxu0 %v166
  %673 = vmatpush.msra.mxu0 %v165
  %674 = vmatpush.msra.mxu0 %v164
  %675 = vmatpush.msra.mxu0 %v163
  %676 = vmatmul.f32.gmra.mxu0 %v472
  %v677 = vpop.f32.mrf.mxu0
  %v678 = vadd.f32 %v658, %v677
  %679 = vdwg.mxu0
  %680 = vmatpush.msra.mxu0 %v194
  %681 = vmatpush.msra.mxu0 %v193
  %682 = vmatpush.msra.mxu0 %v192
  %683 = vmatpush.msra.mxu0 %v191
  %684 = vmatpush.msra.mxu0 %v190
  %685 = vmatpush.msra.mxu0 %v189
  %686 = vmatpush.msra.mxu0 %v188
  %687 = vmatpush.msra.mxu0 %v187
  %688 = vmatpush.msra.mxu0 %v186
  %689 = vmatpush.msra.mxu0 %v185
  %690 = vmatpush.msra.mxu0 %v184
  %691 = vmatpush.msra.mxu0 %v183
  %692 = vmatpush.msra.mxu0 %v182
  %693 = vmatpush.msra.mxu0 %v181
  %694 = vmatpush.msra.mxu0 %v180
  %695 = vmatpush.msra.mxu0 %v179
  %696 = vmatmul.f32.gmra.mxu0 %v475
  %v697 = vpop.f32.mrf.mxu0
  %v698 = vadd.f32 %v678, %v697
  %699 = vdwg.mxu0
  %700 = vmatpush.msra.mxu0 %v210
  %701 = vmatpush.msra.mxu0 %v209
  %702 = vmatpush.msra.mxu0 %v208
  %703 = vmatpush.msra.mxu0 %v207
  %704 = vmatpush.msra.mxu0 %v206
  %705 = vmatpush.msra.mxu0 %v205
  %706 = vmatpush.msra.mxu0 %v204
  %707 = vmatpush.msra.mxu0 %v203
  %708 = vmatpush.msra.mxu0 %v202
  %709 = vmatpush.msra.mxu0 %v201
  %710 = vmatpush.msra.mxu0 %v200
  %711 = vmatpush.msra.mxu0 %v199
  %712 = vmatpush.msra.mxu0 %v198
  %713 = vmatpush.msra.mxu0 %v197
  %714 = vmatpush.msra.mxu0 %v196
  %715 = vmatpush.msra.mxu0 %v195
  %716 = vmatmul.f32.gmra.mxu0 %v476
  %v717 = vpop.f32.mrf.mxu0
  %v718 = vadd.f32 %v698, %v717
  %719 = vdwg.mxu0
  %720 = vmatpush.msra.mxu0 %v226
  %721 = vmatpush.msra.mxu0 %v225
  %722 = vmatpush.msra.mxu0 %v224
  %723 = vmatpush.msra.mxu0 %v223
  %724 = vmatpush.msra.mxu0 %v222
  %725 = vmatpush.msra.mxu0 %v221
  %726 = vmatpush.msra.mxu0 %v220
  %727 = vmatpush.msra.mxu0 %v219
  %728 = vmatpush.msra.mxu0 %v218
  %729 = vmatpush.msra.mxu0 %v217
  %730 = vmatpush.msra.mxu0 %v216
  %731 = vmatpush.msra.mxu0 %v215
  %732 = vmatpush.msra.mxu0 %v214
  %733 = vmatpush.msra.mxu0 %v213
  %734 = vmatpush.msra.mxu0 %v212
  %735 = vmatpush.msra.mxu0 %v211
  %736 = vmatmul.f32.gmra.mxu0 %v477
  %v737 = vpop.f32.mrf.mxu0
  %v738 = vadd.f32 %v718, %v737
  %739 = vdwg.mxu0
  %740 = vmatpush.msra.mxu0 %v242
  %741 = vmatpush.msra.mxu0 %v241
  %742 = vmatpush.msra.mxu0 %v240
  %743 = vmatpush.msra.mxu0 %v239
  %744 = vmatpush.msra.mxu0 %v238
  %745 = vmatpush.msra.mxu0 %v237
  %746 = vmatpush.msra.mxu0 %v236
  %747 = vmatpush.msra.mxu0 %v235
  %748 = vmatpush.msra.mxu0 %v234
  %749 = vmatpush.msra.mxu0 %v233
  %750 = vmatpush.msra.mxu0 %v232
  %751 = vmatpush.msra.mxu0 %v231
  %752 = vmatpush.msra.mxu0 %v230
  %753 = vmatpush.msra.mxu0 %v229
  %754 = vmatpush.msra.mxu0 %v228
  %755 = vmatpush.msra.mxu0 %v227
  %756 = vmatmul.f32.gmra.mxu0 %v478
  %v757 = vpop.f32.mrf.mxu0
  %v758 = vadd.f32 %v738, %v757
  %759 = vdwg.mxu0
  %760 = vmatpush.msra.mxu0 %v258
  %761 = vmatpush.msra.mxu0 %v257
  %762 = vmatpush.msra.mxu0 %v256
  %763 = vmatpush.msra.mxu0 %v255
  %764 = vmatpush.msra.mxu0 %v254
  %765 = vmatpush.msra.mxu0 %v253
  %766 = vmatpush.msra.mxu0 %v252
  %767 = vmatpush.msra.mxu0 %v251
  %768 = vmatpush.msra.mxu0 %v250
  %769 = vmatpush.msra.mxu0 %v249
  %770 = vmatpush.msra.mxu0 %v248
  %771 = vmatpush.msra.mxu0 %v247
  %772 = vmatpush.msra.mxu0 %v246
  %773 = vmatpush.msra.mxu0 %v245
  %774 = vmatpush.msra.mxu0 %v244
  %775 = vmatpush.msra.mxu0 %v243
  %776 = vmatmul.f32.gmra.mxu0 %v479
  %v777 = vpop.f32.mrf.mxu0
  %v778 = vadd.f32 %v758, %v777
  %779 = vdwg.mxu0
  %780 = vmatpush.msra.mxu0 %v274
  %781 = vmatpush.msra.mxu0 %v273
  %782 = vmatpush.msra.mxu0 %v272
  %783 = vmatpush.msra.mxu0 %v271
  %784 = vmatpush.msra.mxu0 %v270
  %785 = vmatpush.msra.mxu0 %v269
  %786 = vmatpush.msra.mxu0 %v268
  %787 = vmatpush.msra.mxu0 %v267
  %788 = vmatpush.msra.mxu0 %v266
  %789 = vmatpush.msra.mxu0 %v265
  %790 = vmatpush.msra.mxu0 %v264
  %791 = vmatpush.msra.mxu0 %v263
  %792 = vmatpush.msra.mxu0 %v262
  %793 = vmatpush.msra.mxu0 %v261
  %794 = vmatpush.msra.mxu0 %v260
  %795 = vmatpush.msra.mxu0 %v259
  %796 = vmatmul.f32.gmra.mxu0 %v480
  %v797 = vpop.f32.mrf.mxu0
  %v798 = vadd.f32 %v778, %v797
  %799 = vdwg.mxu0
  %800 = vmatpush.msra.mxu0 %v290
  %801 = vmatpush.msra.mxu0 %v289
  %802 = vmatpush.msra.mxu0 %v288
  %803 = vmatpush.msra.mxu0 %v287
  %804 = vmatpush.msra.mxu0 %v286
  %805 = vmatpush.msra.mxu0 %v285
  %806 = vmatpush.msra.mxu0 %v284
  %807 = vmatpush.msra.mxu0 %v283
  %808 = vmatpush.msra.mxu0 %v282
  %809 = vmatpush.msra.mxu0 %v281
  %810 = vmatpush.msra.mxu0 %v280
  %811 = vmatpush.msra.mxu0 %v279
  %812 = vmatpush.msra.mxu0 %v278
  %813 = vmatpush.msra.mxu0 %v277
  %814 = vmatpush.msra.mxu0 %v276
  %815 = vmatpush.msra.mxu0 %v275
  %816 = vmatmul.f32.gmra.mxu0 %v481
  %v817 = vpop.f32.mrf.mxu0
  %v818 = vadd.f32 %v798, %v817
  %819 = vdwg.mxu0
  %820 = vmatpush.msra.mxu0 %v306
  %821 = vmatpush.msra.mxu0 %v305
  %822 = vmatpush.msra.mxu0 %v304
  %823 = vmatpush.msra.mxu0 %v303
  %824 = vmatpush.msra.mxu0 %v302
  %825 = vmatpush.msra.mxu0 %v301
  %826 = vmatpush.msra.mxu0 %v300
  %827 = vmatpush.msra.mxu0 %v299
  %828 = vmatpush.msra.mxu0 %v298
  %829 = vmatpush.msra.mxu0 %v297
  %830 = vmatpush.msra.mxu0 %v296
  %831 = vmatpush.msra.mxu0 %v295
  %832 = vmatpush.msra.mxu0 %v294
  %833 = vmatpush.msra.mxu0 %v293
  %834 = vmatpush.msra.mxu0 %v292
  %835 = vmatpush.msra.mxu0 %v291
  %836 = vmatmul.f32.gmra.mxu0 %v482
  %v837 = vpop.f32.mrf.mxu0
  %v838 = vadd.f32 %v818, %v837
  %839 = vdwg.mxu0
  %840 = vmatpush.msra.mxu0 %v322
  %841 = vmatpush.msra.mxu0 %v321
  %842 = vmatpush.msra.mxu0 %v320
  %843 = vmatpush.msra.mxu0 %v319
  %844 = vmatpush.msra.mxu0 %v318
  %845 = vmatpush.msra.mxu0 %v317
  %846 = vmatpush.msra.mxu0 %v316
  %847 = vmatpush.msra.mxu0 %v315
  %848 = vmatpush.msra.mxu0 %v314
  %849 = vmatpush.msra.mxu0 %v313
  %850 = vmatpush.msra.mxu0 %v312
  %851 = vmatpush.msra.mxu0 %v311
  %852 = vmatpush.msra.mxu0 %v310
  %853 = vmatpush.msra.mxu0 %v309
  %854 = vmatpush.msra.mxu0 %v308
  %855 = vmatpush.msra.mxu0 %v307
  %856 = vmatmul.f32.gmra.mxu0 %v485
  %v857 = vpop.f32.mrf.mxu0
  %v858 = vadd.f32 %v838, %v857
  %859 = vdwg.mxu0
  %860 = vmatpush.msra.mxu0 %v338
  %861 = vmatpush.msra.mxu0 %v337
  %862 = vmatpush.msra.mxu0 %v336
  %863 = vmatpush.msra.mxu0 %v335
  %864 = vmatpush.msra.mxu0 %v334
  %865 = vmatpush.msra.mxu0 %v333
  %866 = vmatpush.msra.mxu0 %v332
  %867 = vmatpush.msra.mxu0 %v331
  %868 = vmatpush.msra.mxu0 %v330
  %869 = vmatpush.msra.mxu0 %v329
  %870 = vmatpush.msra.mxu0 %v328
  %871 = vmatpush.msra.mxu0 %v327
  %872 = vmatpush.msra.mxu0 %v326
  %873 = vmatpush.msra.mxu0 %v325
  %874 = vmatpush.msra.mxu0 %v324
  %875 = vmatpush.msra.mxu0 %v323
  %876 = vmatmul.f32.gmra.mxu0 %v486
  %v877 = vpop.f32.mrf.mxu0
  %v878 = vadd.f32 %v858, %v877
  %879 = vdwg.mxu0
  %880 = vmatpush.msra.mxu0 %v354
  %881 = vmatpush.msra.mxu0 %v353
  %882 = vmatpush.msra.mxu0 %v352
  %883 = vmatpush.msra.mxu0 %v351
  %884 = vmatpush.msra.mxu0 %v350
  %885 = vmatpush.msra.mxu0 %v349
  %886 = vmatpush.msra.mxu0 %v348
  %887 = vmatpush.msra.mxu0 %v347
  %888 = vmatpush.msra.mxu0 %v346
  %889 = vmatpush.msra.mxu0 %v345
  %890 = vmatpush.msra.mxu0 %v344
  %891 = vmatpush.msra.mxu0 %v343
  %892 = vmatpush.msra.mxu0 %v342
  %893 = vmatpush.msra.mxu0 %v341
  %894 = vmatpush.msra.mxu0 %v340
  %895 = vmatpush.msra.mxu0 %v339
  %896 = vmatmul.f32.gmra.mxu0 %v487
  %v897 = vpop.f32.mrf.mxu0
  %v898 = vadd.f32 %v878, %v897
  %899 = vdwg.mxu0
  %900 = vmatpush.msra.mxu0 %v370
  %901 = vmatpush.msra.mxu0 %v369
  %902 = vmatpush.msra.mxu0 %v368
  %903 = vmatpush.msra.mxu0 %v367
  %904 = vmatpush.msra.mxu0 %v366
  %905 = vmatpush.msra.mxu0 %v365
  %906 = vmatpush.msra.mxu0 %v364
  %907 = vmatpush.msra.mxu0 %v363
  %908 = vmatpush.msra.mxu0 %v362
  %909 = vmatpush.msra.mxu0 %v361
  %910 = vmatpush.msra.mxu0 %v360
  %911 = vmatpush.msra.mxu0 %v359
  %912 = vmatpush.msra.mxu0 %v358
  %913 = vmatpush.msra.mxu0 %v357
  %914 = vmatpush.msra.mxu0 %v356
  %915 = vmatpush.msra.mxu0 %v355
  %916 = vmatmul.f32.gmra.mxu0 %v488
  %v917 = vpop.f32.mrf.mxu0
  %v918 = vadd.f32 %v898, %v917
  %919 = vdwg.mxu0
  %920 = vmatpush.msra.mxu0 %v386
  %921 = vmatpush.msra.mxu0 %v385
  %922 = vmatpush.msra.mxu0 %v384
  %923 = vmatpush.msra.mxu0 %v383
  %924 = vmatpush.msra.mxu0 %v382
  %925 = vmatpush.msra.mxu0 %v381
  %926 = vmatpush.msra.mxu0 %v380
  %927 = vmatpush.msra.mxu0 %v379
  %928 = vmatpush.msra.mxu0 %v378
  %929 = vmatpush.msra.mxu0 %v377
  %930 = vmatpush.msra.mxu0 %v376
  %931 = vmatpush.msra.mxu0 %v375
  %932 = vmatpush.msra.mxu0 %v374
  %933 = vmatpush.msra.mxu0 %v373
  %934 = vmatpush.msra.mxu0 %v372
  %935 = vmatpush.msra.mxu0 %v371
  %936 = vmatmul.f32.gmra.mxu0 %v489
  %v937 = vpop.f32.mrf.mxu0
  %v938 = vadd.f32 %v918, %v937
  %939 = vdwg.mxu0
  %940 = vmatpush.msra.mxu0 %v402
  %941 = vmatpush.msra.mxu0 %v401
  %942 = vmatpush.msra.mxu0 %v400
  %943 = vmatpush.msra.mxu0 %v399
  %944 = vmatpush.msra.mxu0 %v398
  %945 = vmatpush.msra.mxu0 %v397
  %946 = vmatpush.msra.mxu0 %v396
  %947 = vmatpush.msra.mxu0 %v395
  %948 = vmatpush.msra.mxu0 %v394
  %949 = vmatpush.msra.mxu0 %v393
  %950 = vmatpush.msra.mxu0 %v392
  %951 = vmatpush.msra.mxu0 %v391
  %952 = vmatpush.msra.mxu0 %v390
  %953 = vmatpush.msra.mxu0 %v389
  %954 = vmatpush.msra.mxu0 %v388
  %955 = vmatpush.msra.mxu0 %v387
  %956 = vmatmul.f32.gmra.mxu0 %v490
  %v957 = vpop.f32.mrf.mxu0
  %v958 = vadd.f32 %v938, %v957
  %959 = vdwg.mxu0
  %960 = vmatpush.msra.mxu0 %v418
  %961 = vmatpush.msra.mxu0 %v417
  %962 = vmatpush.msra.mxu0 %v416
  %963 = vmatpush.msra.mxu0 %v415
  %964 = vmatpush.msra.mxu0 %v414
  %965 = vmatpush.msra.mxu0 %v413
  %966 = vmatpush.msra.mxu0 %v412
  %967 = vmatpush.msra.mxu0 %v411
  %968 = vmatpush.msra.mxu0 %v410
  %969 = vmatpush.msra.mxu0 %v409
  %970 = vmatpush.msra.mxu0 %v408
  %971 = vmatpush.msra.mxu0 %v407
  %972 = vmatpush.msra.mxu0 %v406
  %973 = vmatpush.msra.mxu0 %v405
  %974 = vmatpush.msra.mxu0 %v404
  %975 = vmatpush.msra.mxu0 %v403
  %976 = vmatmul.f32.gmra.mxu0 %v491
  %v977 = vpop.f32.mrf.mxu0
  %v978 = vadd.f32 %v958, %v977
  %979 = vdwg.mxu0
  %980 = vmatpush.msra.mxu0 %v434
  %981 = vmatpush.msra.mxu0 %v433
  %982 = vmatpush.msra.mxu0 %v432
  %983 = vmatpush.msra.mxu0 %v431
  %984 = vmatpush.msra.mxu0 %v430
  %985 = vmatpush.msra.mxu0 %v429
  %986 = vmatpush.msra.mxu0 %v428
  %987 = vmatpush.msra.mxu0 %v427
  %988 = vmatpush.msra.mxu0 %v426
  %989 = vmatpush.msra.mxu0 %v425
  %990 = vmatpush.msra.mxu0 %v424
  %991 = vmatpush.msra.mxu0 %v423
  %992 = vmatpush.msra.mxu0 %v422
  %993 = vmatpush.msra.mxu0 %v421
  %994 = vmatpush.msra.mxu0 %v420
  %995 = vmatpush.msra.mxu0 %v419
  %996 = vmatmul.f32.gmra.mxu0 %v492
  %v997 = vpop.f32.mrf.mxu0
  %v998 = vadd.f32 %v978, %v997
  %999 = vdwg.mxu0
  %1000 = vmatpush.msra.mxu0 %v450
  %1001 = vmatpush.msra.mxu0 %v449
  %1002 = vmatpush.msra.mxu0 %v448
  %1003 = vmatpush.msra.mxu0 %v447
  %1004 = vmatpush.msra.mxu0 %v446
  %1005 = vmatpush.msra.mxu0 %v445
  %1006 = vmatpush.msra.mxu0 %v444
  %1007 = vmatpush.msra.mxu0 %v443
  %1008 = vmatpush.msra.mxu0 %v442
  %1009 = vmatpush.msra.mxu0 %v441
  %1010 = vmatpush.msra.mxu0 %v440
  %1011 = vmatpush.msra.mxu0 %v439
  %1012 = vmatpush.msra.mxu0 %v438
  %1013 = vmatpush.msra.mxu0 %v437
  %1014 = vmatpush.msra.mxu0 %v436
  %1015 = vmatpush.msra.mxu0 %v435
  %1016 = vmatmul.f32.gmra.mxu0 %v494
  %v1017 = vpop.f32.mrf.mxu0
  %v1018 = vadd.f32 %v998, %v1017
  %1019 = vdwg.mxu0
  %vm1020 = vcmask 254976
  %v1021 = vsel %vm1020, %v1018, 0.0
  %1022 = vadd.xlane.f32.xlu0 %v1021
  %v1023 = vpop.xlane.xlu0 %1022
  %v1024 = vrcp.pop 32.0
  %v1025 = vmul.f32 32.0, %v1024
  %v1026 = vsub.f32 1.0, %v1025
  %v1027 = vmul.f32 %v1024, %v1026
  %v1028 = vadd.f32 %v1024, %v1027
  %vm1029 = vweird.f32 %v1024
  %v1030 = vsel %vm1029, %v1024, %v1028
  %v1031 = vmul.f32 %v1023, %v1030
  %v1032 = vsub.f32 %v1018, %v1031
  %v1033 = vmul.f32 %v1032, %v1032
  %v1034 = vsel %vm1020, %v1033, 0.0
  %1035 = vadd.xlane.f32.xlu0 %v1034
  %v1036 = vpop.xlane.xlu0 %1035
  %v1037 = vmul.f32 %v1036, %v1030
  %v1038 = vadd.f32 %v1037, 1e-05
  %v1039 = vrsqrt.pop %v1038
  %v1040 = vmul.f32 %v1039, %v1038
  %v1041 = vmul.f32 %v1040, %v1039
  %v1042 = vmul.f32 0.5, %v1041
  %v1043 = vsub.f32 1.5, %v1042
  %v1044 = vmul.f32 %v1039, %v1043
  %vm1045 = vweird.f32 %v1038
  %vm1046 = vweird.f32 %v1039
  %vm1047 = vmor %vm1045, %vm1046
  %v1048 = vsel %vm1047, %v1039, %v1044
  %v1049 = vmul.f32 %v1032, %v1048
  %v1050 = vld [vmem:[%s4] sm:$0x1]
  %v1052 = vperm.slane %v1050, 0
  %v1054 = vmul.f32 %v1049, %v1052
  %v1055 = vld [vmem:[%s5] sm:$0x1]
  %v1057 = vperm.slane %v1055, 0
  %v1059 = vadd.f32 %v1054, %v1057
  %v1060 = vld [vmem:[%s6] sm:$0xff]
  %v1061 = vld [vmem:[%s6 + $0x8] sm:$0xff]
  %v1062 = vld [vmem:[%s6 + $0x10] sm:$0xff]
  %v1063 = vld [vmem:[%s6 + $0x18] sm:$0xff]
  %v1064 = vld [vmem:[%s1] sm:$0x3]
  %v1065 = vld [vmem:[%s7] sm:$0x3f]
  %vm1066 = vcmask 48128
  %v1068 = vsel %vm1066, %v1064, 0
  %vm1070 = vcmask 1045504
  %v1072 = vsel %vm1070, %v1065, 0
  %1074 = vmatpush.msra.mxu0 0.0
  %1075 = vmatpush.msra.mxu0 0.0
  %1076 = vmatpush.msra.mxu0 0.0
  %1077 = vmatpush.msra.mxu0 0.0
  %1078 = vmatpush.msra.mxu0 0.0
  %1079 = vmatpush.msra.mxu0 0.0
  %1080 = vmatpush.msra.mxu0 0.0
  %1081 = vmatpush.msra.mxu0 0.0
  %1082 = vmatpush.msra.mxu0 0.0
  %1083 = vmatpush.msra.mxu0 0.0
  %1084 = vmatpush.msra.mxu0 0.0
  %1085 = vmatpush.msra.mxu0 0.0
  %1086 = vmatpush.msra.mxu0 0.0
  %1087 = vmatpush.msra.mxu0 0.0
  %1088 = vmatpush.msra.mxu0 0.0
  %1089 = vmatpush.msra.mxu0 %v1072
  %1090 = vmatmul.f32.gmra.mxu0 %v1068
  %v1091 = vpop.f32.mrf.mxu0
  %v1092 = vadd.f32 0.0, %v1091
  %1093 = vdwg.mxu0
  %vm1094 = vcmask 261120
  %v1096 = vsel %vm1094, %v1059, 0
  %1098 = vmatpush.msra.mxu0 0.0
  %1099 = vmatpush.msra.mxu0 0.0
  %1100 = vmatpush.msra.mxu0 0.0
  %1101 = vmatpush.msra.mxu0 0.0
  %1102 = vmatpush.msra.mxu0 0.0
  %1103 = vmatpush.msra.mxu0 0.0
  %1104 = vmatpush.msra.mxu0 0.0
  %1105 = vmatpush.msra.mxu0 0.0
  %1106 = vmatpush.msra.mxu0 0.0
  %1107 = vmatpush.msra.mxu0 0.0
  %1108 = vmatpush.msra.mxu0 0.0
  %1109 = vmatpush.msra.mxu0 0.0
  %1110 = vmatpush.msra.mxu0 %v1063
  %1111 = vmatpush.msra.mxu0 %v1062
  %1112 = vmatpush.msra.mxu0 %v1061
  %1113 = vmatpush.msra.mxu0 %v1060
  %1114 = vmatmul.f32.gmra.mxu0 %v1096
  %v1115 = vpop.f32.mrf.mxu0
  %v1116 = vadd.f32 %v1092, %v1115
  %1117 = vdwg.mxu0
  %v1118 = vld [vmem:[%s8] sm:$0x1]
  %v1120 = vperm.slane %v1118, 0
  %v1122 = vadd.f32 %v1116, %v1120
  %v1123 = vmax.f32 %v1122, 0.0
  %v1124 = vld [vmem:[%s9] sm:$0xff]
  %v1125 = vld [vmem:[%s9 + $0x8] sm:$0xff]
  %v1126 = vld [vmem:[%s9 + $0x10] sm:$0xff]
  %v1127 = vld [vmem:[%s9 + $0x18] sm:$0xff]
  %v1128 = vld [vmem:[%s9 + $0x20] sm:$0xff]
  %v1129 = vld [vmem:[%s9 + $0x28] sm:$0xff]
  %v1130 = vld [vmem:[%s9 + $0x30] sm:$0xff]
  %v1131 = vld [vmem:[%s9 + $0x38] sm:$0xff]
  %v1132 = vld [vmem:[%s10] sm:$0x1]
  %v1134 = vperm.slane %v1132, 0
  %vm1136 = vcmask 523264
  %v1138 = vsel %vm1136, %v1123, 0
  %1140 = vmatpush.msra.mxu0 0.0
  %1141 = vmatpush.msra.mxu0 0.0
  %1142 = vmatpush.msra.mxu0 0.0
  %1143 = vmatpush.msra.mxu0 0.0
  %1144 = vmatpush.msra.mxu0 0.0
  %1145 = vmatpush.msra.mxu0 0.0
  %1146 = vmatpush.msra.mxu0 0.0
  %1147 = vmatpush.msra.mxu0 0.0
  %1148 = vmatpush.msra.mxu0 %v1131
  %1149 = vmatpush.msra.mxu0 %v1130
  %1150 = vmatpush.msra.mxu0 %v1129
  %1151 = vmatpush.msra.mxu0 %v1128
  %1152 = vmatpush.msra.mxu0 %v1127
  %1153 = vmatpush.msra.mxu0 %v1126
  %1154 = vmatpush.msra.mxu0 %v1125
  %1155 = vmatpush.msra.mxu0 %v1124
  %1156 = vmatmul.f32.gmra.mxu0 %v1138
  %v1157 = vpop.f32.mrf.mxu0
  %v1158 = vadd.f32 %v1134, %v1157
  %1159 = vdwg.mxu0
  %v1160 = vmax.f32 %v1158, 0.0
  %v1161 = vld [vmem:[%s11] sm:$0xff]
  %v1162 = vld [vmem:[%s11 + $0x8] sm:$0xff]
  %v1163 = vld [vmem:[%s11 + $0x10] sm:$0xff]
  %v1164 = vld [vmem:[%s11 + $0x18] sm:$0xff]
  %v1165 = vld [vmem:[%s11 + $0x20] sm:$0xff]
  %v1166 = vld [vmem:[%s11 + $0x28] sm:$0xff]
  %v1167 = vld [vmem:[%s11 + $0x30] sm:$0xff]
  %v1168 = vld [vmem:[%s11 + $0x38] sm:$0xff]
  %v1169 = vld [vmem:[%s12] sm:$0x1]
  %v1171 = vperm.slane %v1169, 0
  %v1174 = vsel %vm1136, %v1160, 0
  %1176 = vmatpush.msra.mxu0 0.0
  %1177 = vmatpush.msra.mxu0 0.0
  %1178 = vmatpush.msra.mxu0 0.0
  %1179 = vmatpush.msra.mxu0 0.0
  %1180 = vmatpush.msra.mxu0 0.0
  %1181 = vmatpush.msra.mxu0 0.0
  %1182 = vmatpush.msra.mxu0 0.0
  %1183 = vmatpush.msra.mxu0 0.0
  %1184 = vmatpush.msra.mxu0 %v1168
  %1185 = vmatpush.msra.mxu0 %v1167
  %1186 = vmatpush.msra.mxu0 %v1166
  %1187 = vmatpush.msra.mxu0 %v1165
  %1188 = vmatpush.msra.mxu0 %v1164
  %1189 = vmatpush.msra.mxu0 %v1163
  %1190 = vmatpush.msra.mxu0 %v1162
  %1191 = vmatpush.msra.mxu0 %v1161
  %1192 = vmatmul.f32.gmra.mxu0 %v1174
  %v1193 = vpop.f32.mrf.mxu0
  %v1194 = vadd.f32 %v1171, %v1193
  %1195 = vdwg.mxu0
  %1196 = vst [vmem:[%s13] sm:$0x3] %v1194
  // Predicated region
  $region54: #{forward.5} parent=0 // pred_check
    _
  $region55: #{forward.5} parent=0 // pred_check_branch
    %1198 = sbr.rel (0) target = $region57
  $region56: #{forward.5} parent=0 // pred_region
    _
  $region57: #{forward.5} parent=0 // pred_fallthru
    _
  // Predicated region
  $region58: #{forward.5} parent=0 // pred_check
    _
  $region59: #{forward.5} parent=0 // pred_check_branch
    %1200 = sbr.rel (0) target = $region61
  $region60: #{forward.5} parent=0 // pred_region
    _
  $region61: #{forward.5} parent=0 // pred_fallthru
    _

</llo_original>
